<compile_context>
chip_gen: v5e
topology: v5e:2x2
jax: 0.10.0
libtpu: 0.0.40
codegen_flags: <defaults>
</compile_context>

<pallas_src>
import jax
import jax.numpy as jnp
from jax.experimental import pallas as pl
from jax.experimental.pallas import tpu as pltpu

IN_DIM = 784        # 1*28*28
HIDDEN = 500
HIDDEN_PAD = 512    # lane/sublane friendly padding of 500


def _round_up(n, m):
    return (n + m - 1) // m * m


def _tpu_defaults():
    """(max batch tile, vmem limit) per TPU generation; conservative fallback."""
    try:
        vmem_cap = int(pltpu.get_tpu_info().vmem_capacity_bytes)
    except Exception:
        vmem_cap = 64 * 1024 * 1024
    if vmem_cap >= 100 * 1024 * 1024:          # v5e / v6e: 128 MiB VMEM per core
        return 1024, 64 * 1024 * 1024
    return 512, 32 * 1024 * 1024               # v7x: 64 MiB VMEM per core


_TB_CAP, _VMEM_LIMIT = _tpu_defaults()


# ---------------------------------------------------------------------------
# Kernel
# ---------------------------------------------------------------------------
def vae_forward_kernel(x_ref, eps_ref,
                       w1_ref, b1_ref,
                       w2_ref, b2_ref,      # fused mu||logvar projection
                       w3_ref, b3_ref,
                       w4_ref, b4_ref,
                       recon_ref, mu_ref, logvar_ref,
                       lat_sc):
    bf16 = jnp.bfloat16
    zp = w3_ref.shape[0]          # padded internal latent width (128)
    zd = eps_ref.shape[-1]        # true latent width (z_dim)

    # ---- encode ----
    h1 = jnp.dot(x_ref[...], w1_ref[...],
                 preferred_element_type=jnp.float32) + b1_ref[...]
    h1 = jnp.maximum(h1, 0.0)                                 # (TB, 512)

    # single fused matmul for [mu || logvar] -> lane-dense (TB, 2*zp)
    mulv = jnp.dot(h1.astype(bf16), w2_ref[...],
                   preferred_element_type=jnp.float32) + b2_ref[...]
    mu_w = mulv[:, :zp]                                       # (TB, zp)
    lv_w = mulv[:, zp:]                                       # (TB, zp)

    # ---- reparameterize: std = exp(0.5*logvar); z = mu + eps*std (eps ~ U[0,1)) ----
    # Widen the unpadded eps (TB, zd) to (TB, zp) through the latent scratch; padded
    # lanes stay 0 so z's padded lanes are finite (w3's padded rows are zero anyway).
    lat_sc[...] = jnp.zeros_like(lat_sc)
    lat_sc[:, :zd] = eps_ref[...]
    eps_wide = lat_sc[...]
    std = jnp.exp(0.5 * lv_w)
    z = mu_w + eps_wide * std                                 # (TB, zp)

    # ---- decode ----
    h3 = jnp.dot(z.astype(bf16), w3_ref[...],
                 preferred_element_type=jnp.float32) + b3_ref[...]
    h3 = jnp.maximum(h3, 0.0)                                 # (TB, 512)
    logits = jnp.dot(h3.astype(bf16), w4_ref[...],
                     preferred_element_type=jnp.float32) + b4_ref[...]
    # sigmoid(x) = 0.5*(tanh(0.5x)+1): single EUP transcendental; bf16 store halves bytes
    recon_ref[...] = (0.5 * jnp.tanh(0.5 * logits) + 0.5).astype(recon_ref.dtype)

    # ---- narrow (unpadded) mu / logvar outputs via the latent scratch ----
    lat_sc[...] = mu_w
    mu_ref[...] = lat_sc[:, :zd]
    lat_sc[...] = lv_w
    logvar_ref[...] = lat_sc[:, :zd]


# ---------------------------------------------------------------------------
# Wrapper
# ---------------------------------------------------------------------------
@jax.jit
def vae_forward(x, eps, params):
    """x: (B, 1, 28, 28) or (B, 784); eps: (B, z_dim) uniform noise; params: prepared.

    Returns (recon[bf16], mu[f32], logvar[f32])."""
    B = x.shape[0]
    z_dim = eps.shape[-1]
    zp = params["w3"].shape[0]                                # padded internal latent width

    # batch tiling: pad B to a multiple of 8 (sublane), then pick the largest tile from a
    # fixed menu that still yields >= 4 grid steps (>= 2 per TensorCore under megacore).
    b8 = _round_up(B, 8)
    if b8 <= 128:
        tb = b8
    else:
        tb = 128
        for cand in (_TB_CAP, _TB_CAP // 2, 256):
            if cand >= 256 and b8 >= 4 * cand:
                tb = cand
                break
    b_pad = _round_up(b8, tb)
    grid = (b_pad // tb,)

    # bf16 x: cast fuses into the reshape/pad copy (no-op if the producer already holds bf16)
    x2d = x.reshape(B, IN_DIM).astype(jnp.bfloat16)
    xp = jnp.pad(x2d, ((0, b_pad - B), (0, 0)))
    ep = jnp.pad(eps.astype(jnp.float32), ((0, b_pad - B), (0, 0)))   # stays unpadded in lanes

    row = lambda i: (i, 0)      # tiled over batch
    const = lambda i: (0, 0)    # weights/biases: same block every step -> VMEM resident

    in_specs = [
        pl.BlockSpec((tb, IN_DIM), row),                      # x (bf16)
        pl.BlockSpec((tb, z_dim), row),                       # eps (f32, unpadded lanes)
        pl.BlockSpec((IN_DIM, HIDDEN_PAD), const),            # w1 (bf16)
        pl.BlockSpec((1, HIDDEN_PAD), const),                 # b1 (f32)
        pl.BlockSpec((HIDDEN_PAD, 2 * zp), const),            # w2 = [w21 || w22] (bf16)
        pl.BlockSpec((1, 2 * zp), const),                     # b2 = [b21 || b22] (f32)
        pl.BlockSpec((zp, HIDDEN_PAD), const),                # w3 (bf16)
        pl.BlockSpec((1, HIDDEN_PAD), const),                 # b3 (f32)
        pl.BlockSpec((HIDDEN_PAD, IN_DIM), const),            # w4 (bf16)
        pl.BlockSpec((1, IN_DIM), const),                     # b4 (f32)
    ]
    out_specs = (
        pl.BlockSpec((tb, IN_DIM), row),                      # recon (bf16)
        pl.BlockSpec((tb, z_dim), row),                       # mu (f32, unpadded)
        pl.BlockSpec((tb, z_dim), row),                       # logvar (f32, unpadded)
    )
    out_shape = (
        jax.ShapeDtypeStruct((b_pad, IN_DIM), jnp.bfloat16),
        jax.ShapeDtypeStruct((b_pad, z_dim), jnp.float32),
        jax.ShapeDtypeStruct((b_pad, z_dim), jnp.float32),
    )

    # advisory cost estimate so XLA schedules the custom call well vs. the pad/slice ops
    mm = IN_DIM * HIDDEN_PAD + HIDDEN_PAD * 2 * zp + zp * HIDDEN_PAD + HIDDEN_PAD * IN_DIM
    cost = pl.CostEstimate(
        flops=2 * b_pad * mm,
        transcendentals=b_pad * (zp + IN_DIM),
        bytes_accessed=(b_pad * IN_DIM * 2            # x in (bf16)
                        + b_pad * z_dim * 4           # eps in
                        + b_pad * IN_DIM * 2          # recon out (bf16)
                        + 2 * b_pad * z_dim * 4       # mu, logvar out
                        + 2 * mm                      # bf16 weights (resident, read once)
                        + 4 * (2 * HIDDEN_PAD + 2 * zp + IN_DIM)),   # f32 biases
    )

    recon, mu, logvar = pl.pallas_call(
        vae_forward_kernel,
        grid=grid,
        in_specs=in_specs,
        out_specs=out_specs,
        out_shape=out_shape,
        scratch_shapes=[pltpu.VMEM((tb, zp), jnp.float32)],   # latent widen/narrow scratch
        compiler_params=pltpu.CompilerParams(
            dimension_semantics=("parallel",),                # megacore sharding on v7x
            vmem_limit_bytes=_VMEM_LIMIT,
        ),
        cost_estimate=cost,
    )(xp, ep,
      params["w1"], params["b1"],
      params["w2"], params["b2"],
      params["w3"], params["b3"],
      params["w4"], params["b4"])

    return recon[:B], mu[:B], logvar[:B]


# ---------------------------------------------------------------------------
# Parameters
# ---------------------------------------------------------------------------
def init_params(key, z_dim):
    """Raw f32 params mimicking nn.Linear default init; weights stored (in, out)."""
    def linear(key, fan_in, fan_out):
        kw, kb = jax.random.split(key)
        bound = 1.0 / jnp.sqrt(fan_in)
        w = jax.random.uniform(kw, (fan_in, fan_out), jnp.float32, -bound, bound)
        b = jax.random.uniform(kb, (fan_out,), jnp.float32, -bound, bound)
        return w, b

    k1, k21, k22, k3, k4 = jax.random.split(key, 5)
    w1, b1 = linear(k1, IN_DIM, HIDDEN)
    w21, b21 = linear(k21, HIDDEN, z_dim)
    w22, b22 = linear(k22, HIDDEN, z_dim)
    w3, b3 = linear(k3, z_dim, HIDDEN)
    w4, b4 = linear(k4, HIDDEN, IN_DIM)
    return dict(w1=w1, b1=b1, w21=w21, b21=b21, w22=w22, b22=b22,
                w3=w3, b3=b3, w4=w4, b4=b4)


def prepare_params(raw, z_dim):
    """Pad (500->512, z_dim->128), fuse fc21/fc22, cast weights to bf16 (biases stay f32)."""
    zp = _round_up(z_dim, 128)
    bf16 = jnp.bfloat16

    def pad2(w, rows, cols):
        return jnp.pad(w, ((0, rows - w.shape[0]), (0, cols - w.shape[1])))

    w1 = pad2(raw["w1"], IN_DIM, HIDDEN_PAD).astype(bf16)
    b1 = jnp.pad(raw["b1"], (0, HIDDEN_PAD - HIDDEN)).reshape(1, HIDDEN_PAD)

    w2 = jnp.zeros((HIDDEN_PAD, 2 * zp), jnp.float32)
    w2 = w2.at[:HIDDEN, :z_dim].set(raw["w21"])
    w2 = w2.at[:HIDDEN, zp:zp + z_dim].set(raw["w22"])
    w2 = w2.astype(bf16)
    b2 = jnp.zeros((1, 2 * zp), jnp.float32)
    b2 = b2.at[0, :z_dim].set(raw["b21"])
    b2 = b2.at[0, zp:zp + z_dim].set(raw["b22"])

    w3 = pad2(raw["w3"], zp, HIDDEN_PAD).astype(bf16)         # padded rows are zero
    b3 = jnp.pad(raw["b3"], (0, HIDDEN_PAD - HIDDEN)).reshape(1, HIDDEN_PAD)

    w4 = pad2(raw["w4"], HIDDEN_PAD, IN_DIM).astype(bf16)
    b4 = raw["b4"].reshape(1, IN_DIM)

    return dict(w1=w1, b1=b1, w2=w2, b2=b2, w3=w3, b3=b3, w4=w4, b4=b4)


# ---------------------------------------------------------------------------
# References (for in-script validation)
# ---------------------------------------------------------------------------
def reference_mirrored(x, eps, prep, z_dim):
    """Mirrors the kernel math (padded bf16 weights, bf16 MXU inputs, f32 acc)."""
    bf16 = jnp.bfloat16
    zp = prep["w3"].shape[0]
    B = x.shape[0]
    x2d = x.reshape(B, IN_DIM).astype(bf16)
    epsw = jnp.pad(eps.astype(jnp.float32), ((0, 0), (0, zp - z_dim)))
    h1 = jnp.maximum(jnp.dot(x2d, prep["w1"],
                             preferred_element_type=jnp.float32) + prep["b1"], 0.0)
    mulv = jnp.dot(h1.astype(bf16), prep["w2"],
                   preferred_element_type=jnp.float32) + prep["b2"]
    mu, logvar = mulv[:, :zp], mulv[:, zp:]
    z = mu + epsw * jnp.exp(0.5 * logvar)
    h3 = jnp.maximum(jnp.dot(z.astype(bf16), prep["w3"],
                             preferred_element_type=jnp.float32) + prep["b3"], 0.0)
    logits = jnp.dot(h3.astype(bf16), prep["w4"],
                     preferred_element_type=jnp.float32) + prep["b4"]
    recon = jax.nn.sigmoid(logits)
    return recon, mu[:, :z_dim], logvar[:, :z_dim]


def reference_f32(x, eps, raw):
    """Pure f32 reference matching the PyTorch module semantics."""
    B = x.shape[0]
    x2d = x.reshape(B, IN_DIM)
    h1 = jnp.maximum(x2d @ raw["w1"] + raw["b1"], 0.0)
    mu = h1 @ raw["w21"] + raw["b21"]
    logvar = h1 @ raw["w22"] + raw["b22"]
    z = mu + eps * jnp.exp(0.5 * logvar)
    h3 = jnp.maximum(z @ raw["w3"] + raw["b3"], 0.0)
    recon = jax.nn.sigmoid(h3 @ raw["w4"] + raw["b4"])
    return recon, mu, logvar


# ---------------------------------------------------------------------------
if __name__ == "__main__":
    key = jax.random.PRNGKey(0)
    k_params, k_x, k_eps = jax.random.split(key, 3)

    B, z_dim = 8, 16
    raw = init_params(k_params, z_dim)
    prep = prepare_params(raw, z_dim)

    x = jax.random.uniform(k_x, (B, 1, 28, 28), jnp.float32)       # MNIST-like NCHW
    eps = jax.random.uniform(k_eps, (B, z_dim), jnp.float32)       # torch.rand_like (U[0,1))

    recon, mu, logvar = vae_forward(x, eps, prep)
    jax.block_until_ready((recon, mu, logvar))

    # shape / dtype / range sanity
    assert recon.shape == (B, IN_DIM) and recon.dtype == jnp.bfloat16
    assert mu.shape == (B, z_dim) and logvar.shape == (B, z_dim)
    assert bool(jnp.all((recon >= 0.0) & (recon <= 1.0)))

    recon_f32 = recon.astype(jnp.float32)

    # check against a reference that mirrors the kernel math (bf16 weights/inputs)
    # recon is a bf16 output -> ~1e-2 absolute tolerance; mu/logvar stay f32.
    r_m, mu_m, lv_m = reference_mirrored(x, eps, prep, z_dim)
    assert bool(jnp.allclose(recon_f32, r_m, atol=2e-2))
    assert bool(jnp.allclose(mu, mu_m, atol=2e-3, rtol=2e-3))
    assert bool(jnp.allclose(logvar, lv_m, atol=2e-3, rtol=2e-3))

    # semantic check against the full-f32 PyTorch-equivalent reference
    # (looser tolerance accounts for bf16 weight / output rounding)
    r_f, mu_f, lv_f = reference_f32(x, eps, raw)
    assert bool(jnp.allclose(recon_f32, r_f, atol=1e-1))
    assert bool(jnp.allclose(mu, mu_f, atol=1e-1))
    assert bool(jnp.allclose(logvar, lv_f, atol=1e-1))

    print("KERNEL_OK")
</pallas_src>

<mosaic_0001>
module attributes {stable_mosaic.version = 11 : i64} {
  func.func @vae_forward_kernel(%arg0: i32, %arg1: memref<8x784xbf16, #tpu.memory_space<vmem>>, %arg2: memref<8x16xf32, #tpu.memory_space<vmem>>, %arg3: memref<784x512xbf16, #tpu.memory_space<vmem>>, %arg4: memref<1x512xf32, #tpu.memory_space<vmem>>, %arg5: memref<512x256xbf16, #tpu.memory_space<vmem>>, %arg6: memref<1x256xf32, #tpu.memory_space<vmem>>, %arg7: memref<128x512xbf16, #tpu.memory_space<vmem>>, %arg8: memref<1x512xf32, #tpu.memory_space<vmem>>, %arg9: memref<512x784xbf16, #tpu.memory_space<vmem>>, %arg10: memref<1x784xf32, #tpu.memory_space<vmem>>, %arg11: memref<8x784xbf16, #tpu.memory_space<vmem>>, %arg12: memref<8x16xf32, #tpu.memory_space<vmem>>, %arg13: memref<8x16xf32, #tpu.memory_space<vmem>>, %arg14: memref<8x128xf32, #tpu.memory_space<vmem>>) attributes {dimension_semantics = [#tpu.dimension_semantics<parallel>], iteration_bounds = array<i64: 1>, scalar_prefetch = 0 : i64, scratch_operands = 1 : i64, tpu.core_type = #tpu.core_type<tc>, window_params = [{transform_indices = @transform_0, window_bounds = array<i64: 8, 784>}, {transform_indices = @transform_1, window_bounds = array<i64: 8, 16>}, {pipeline_mode = #tpu.pipeline_mode<synchronous>, transform_indices = @transform_2, window_bounds = array<i64: 784, 512>}, {pipeline_mode = #tpu.pipeline_mode<synchronous>, transform_indices = @transform_3, window_bounds = array<i64: 1, 512>}, {pipeline_mode = #tpu.pipeline_mode<synchronous>, transform_indices = @transform_4, window_bounds = array<i64: 512, 256>}, {pipeline_mode = #tpu.pipeline_mode<synchronous>, transform_indices = @transform_5, window_bounds = array<i64: 1, 256>}, {pipeline_mode = #tpu.pipeline_mode<synchronous>, transform_indices = @transform_6, window_bounds = array<i64: 128, 512>}, {pipeline_mode = #tpu.pipeline_mode<synchronous>, transform_indices = @transform_7, window_bounds = array<i64: 1, 512>}, {pipeline_mode = #tpu.pipeline_mode<synchronous>, transform_indices = @transform_8, window_bounds = array<i64: 512, 784>}, {pipeline_mode = #tpu.pipeline_mode<synchronous>, transform_indices = @transform_9, window_bounds = array<i64: 1, 784>}, {transform_indices = @transform_10, window_bounds = array<i64: 8, 784>}, {transform_indices = @transform_11, window_bounds = array<i64: 8, 16>}, {transform_indices = @transform_12, window_bounds = array<i64: 8, 16>}]} {
    %c0 = arith.constant 0 : index
    %c0_0 = arith.constant 0 : index
    %0 = vector.load %arg1[%c0, %c0_0] : memref<8x784xbf16, #tpu.memory_space<vmem>>, vector<8x784xbf16>
    %c0_1 = arith.constant 0 : index
    %c0_2 = arith.constant 0 : index
    %1 = vector.load %arg3[%c0_1, %c0_2] : memref<784x512xbf16, #tpu.memory_space<vmem>>, vector<784x512xbf16>
    %cst = arith.constant dense<0.000000e+00> : vector<8x512xf32>
    %2 = tpu.matmul %0, %1, %cst {dimension_numbers = #tpu.dot_dimension_numbers<[1], [0], [0], [1], [0, 0, 1, 1], [], []>} : vector<8x784xbf16>, vector<784x512xbf16>, vector<8x512xf32> -> vector<8x512xf32>
    %c0_3 = arith.constant 0 : index
    %c0_4 = arith.constant 0 : index
    %3 = vector.load %arg4[%c0_3, %c0_4] : memref<1x512xf32, #tpu.memory_space<vmem>>, vector<1x512xf32>
    %4 = vector.broadcast %3 : vector<1x512xf32> to vector<8x512xf32>
    %5 = arith.addf %2, %4 : vector<8x512xf32>
    %cst_5 = arith.constant 0.000000e+00 : f32
    %6 = vector.broadcast %cst_5 : f32 to vector<8x512xf32>
    %7 = arith.maximumf %5, %6 : vector<8x512xf32>
    %8 = arith.truncf %7 : vector<8x512xf32> to vector<8x512xbf16>
    %c0_6 = arith.constant 0 : index
    %c0_7 = arith.constant 0 : index
    %9 = vector.load %arg5[%c0_6, %c0_7] : memref<512x256xbf16, #tpu.memory_space<vmem>>, vector<512x256xbf16>
    %cst_8 = arith.constant dense<0.000000e+00> : vector<8x256xf32>
    %10 = tpu.matmul %8, %9, %cst_8 {dimension_numbers = #tpu.dot_dimension_numbers<[1], [0], [0], [1], [0, 0, 1, 1], [], []>} : vector<8x512xbf16>, vector<512x256xbf16>, vector<8x256xf32> -> vector<8x256xf32>
    %c0_9 = arith.constant 0 : index
    %c0_10 = arith.constant 0 : index
    %11 = vector.load %arg6[%c0_9, %c0_10] : memref<1x256xf32, #tpu.memory_space<vmem>>, vector<1x256xf32>
    %12 = vector.broadcast %11 : vector<1x256xf32> to vector<8x256xf32>
    %13 = arith.addf %10, %12 : vector<8x256xf32>
    %14 = vector.extract_strided_slice %13 {offsets = [0, 0], sizes = [8, 128], strides = [1, 1]} : vector<8x256xf32> to vector<8x128xf32>
    %15 = vector.extract_strided_slice %13 {offsets = [0, 128], sizes = [8, 128], strides = [1, 1]} : vector<8x256xf32> to vector<8x128xf32>
    %cst_11 = arith.constant 0.000000e+00 : f32
    %16 = vector.broadcast %cst_11 : f32 to vector<8x128xf32>
    %c0_12 = arith.constant 0 : index
    %c0_13 = arith.constant 0 : index
    %17 = vector.load %arg14[%c0_12, %c0_13] : memref<8x128xf32, #tpu.memory_space<vmem>>, vector<8x128xf32>
    tpu.vector_store %arg14[%c0_12, %c0_13], %16 {strides = array<i32>} : memref<8x128xf32, #tpu.memory_space<vmem>>, vector<8x128xf32>,
    %c0_14 = arith.constant 0 : index
    %c0_15 = arith.constant 0 : index
    %18 = vector.load %arg2[%c0_14, %c0_15] : memref<8x16xf32, #tpu.memory_space<vmem>>, vector<8x16xf32>
    %c0_16 = arith.constant 0 : index
    %c0_17 = arith.constant 0 : index
    %19 = vector.load %arg14[%c0_16, %c0_17] : memref<8x128xf32, #tpu.memory_space<vmem>>, vector<8x16xf32>
    tpu.vector_store %arg14[%c0_16, %c0_17], %18 {strides = array<i32>} : memref<8x128xf32, #tpu.memory_space<vmem>>, vector<8x16xf32>,
    %c0_18 = arith.constant 0 : index
    %c0_19 = arith.constant 0 : index
    %20 = vector.load %arg14[%c0_18, %c0_19] : memref<8x128xf32, #tpu.memory_space<vmem>>, vector<8x128xf32>
    %cst_20 = arith.constant 5.000000e-01 : f32
    %21 = vector.broadcast %cst_20 : f32 to vector<8x128xf32>
    %22 = arith.mulf %21, %15 : vector<8x128xf32>
    %23 = math.exp %22 : vector<8x128xf32>
    %24 = arith.mulf %20, %23 : vector<8x128xf32>
    %25 = arith.addf %14, %24 : vector<8x128xf32>
    %26 = arith.truncf %25 : vector<8x128xf32> to vector<8x128xbf16>
    %c0_21 = arith.constant 0 : index
    %c0_22 = arith.constant 0 : index
    %27 = vector.load %arg7[%c0_21, %c0_22] : memref<128x512xbf16, #tpu.memory_space<vmem>>, vector<128x512xbf16>
    %cst_23 = arith.constant dense<0.000000e+00> : vector<8x512xf32>
    %28 = tpu.matmul %26, %27, %cst_23 {dimension_numbers = #tpu.dot_dimension_numbers<[1], [0], [0], [1], [0, 0, 1, 1], [], []>} : vector<8x128xbf16>, vector<128x512xbf16>, vector<8x512xf32> -> vector<8x512xf32>
    %c0_24 = arith.constant 0 : index
    %c0_25 = arith.constant 0 : index
    %29 = vector.load %arg8[%c0_24, %c0_25] : memref<1x512xf32, #tpu.memory_space<vmem>>, vector<1x512xf32>
    %30 = vector.broadcast %29 : vector<1x512xf32> to vector<8x512xf32>
    %31 = arith.addf %28, %30 : vector<8x512xf32>
    %cst_26 = arith.constant 0.000000e+00 : f32
    %32 = vector.broadcast %cst_26 : f32 to vector<8x512xf32>
    %33 = arith.maximumf %31, %32 : vector<8x512xf32>
    %34 = arith.truncf %33 : vector<8x512xf32> to vector<8x512xbf16>
    %c0_27 = arith.constant 0 : index
    %c0_28 = arith.constant 0 : index
    %35 = vector.load %arg9[%c0_27, %c0_28] : memref<512x784xbf16, #tpu.memory_space<vmem>>, vector<512x784xbf16>
    %cst_29 = arith.constant dense<0.000000e+00> : vector<8x784xf32>
    %36 = tpu.matmul %34, %35, %cst_29 {dimension_numbers = #tpu.dot_dimension_numbers<[1], [0], [0], [1], [0, 0, 1, 1], [], []>} : vector<8x512xbf16>, vector<512x784xbf16>, vector<8x784xf32> -> vector<8x784xf32>
    %c0_30 = arith.constant 0 : index
    %c0_31 = arith.constant 0 : index
    %37 = vector.load %arg10[%c0_30, %c0_31] : memref<1x784xf32, #tpu.memory_space<vmem>>, vector<1x784xf32>
    %38 = vector.broadcast %37 : vector<1x784xf32> to vector<8x784xf32>
    %39 = arith.addf %36, %38 : vector<8x784xf32>
    %cst_32 = arith.constant 5.000000e-01 : f32
    %40 = vector.broadcast %cst_32 : f32 to vector<8x784xf32>
    %41 = arith.mulf %40, %39 : vector<8x784xf32>
    %42 = math.tanh %41 : vector<8x784xf32>
    %cst_33 = arith.constant 5.000000e-01 : f32
    %43 = vector.broadcast %cst_33 : f32 to vector<8x784xf32>
    %44 = arith.mulf %43, %42 : vector<8x784xf32>
    %cst_34 = arith.constant 5.000000e-01 : f32
    %45 = vector.broadcast %cst_34 : f32 to vector<8x784xf32>
    %46 = arith.addf %44, %45 : vector<8x784xf32>
    %47 = arith.truncf %46 : vector<8x784xf32> to vector<8x784xbf16>
    %c0_35 = arith.constant 0 : index
    %c0_36 = arith.constant 0 : index
    %48 = vector.load %arg11[%c0_35, %c0_36] : memref<8x784xbf16, #tpu.memory_space<vmem>>, vector<8x784xbf16>
    tpu.vector_store %arg11[%c0_35, %c0_36], %47 {strides = array<i32>} : memref<8x784xbf16, #tpu.memory_space<vmem>>, vector<8x784xbf16>,
    %c0_37 = arith.constant 0 : index
    %c0_38 = arith.constant 0 : index
    %49 = vector.load %arg14[%c0_37, %c0_38] : memref<8x128xf32, #tpu.memory_space<vmem>>, vector<8x128xf32>
    tpu.vector_store %arg14[%c0_37, %c0_38], %14 {strides = array<i32>} : memref<8x128xf32, #tpu.memory_space<vmem>>, vector<8x128xf32>,
    %c0_39 = arith.constant 0 : index
    %c0_40 = arith.constant 0 : index
    %50 = vector.load %arg14[%c0_39, %c0_40] : memref<8x128xf32, #tpu.memory_space<vmem>>, vector<8x16xf32>
    %c0_41 = arith.constant 0 : index
    %c0_42 = arith.constant 0 : index
    %51 = vector.load %arg12[%c0_41, %c0_42] : memref<8x16xf32, #tpu.memory_space<vmem>>, vector<8x16xf32>
    tpu.vector_store %arg12[%c0_41, %c0_42], %50 {strides = array<i32>} : memref<8x16xf32, #tpu.memory_space<vmem>>, vector<8x16xf32>,
    %c0_43 = arith.constant 0 : index
    %c0_44 = arith.constant 0 : index
    %52 = vector.load %arg14[%c0_43, %c0_44] : memref<8x128xf32, #tpu.memory_space<vmem>>, vector<8x128xf32>
    tpu.vector_store %arg14[%c0_43, %c0_44], %15 {strides = array<i32>} : memref<8x128xf32, #tpu.memory_space<vmem>>, vector<8x128xf32>,
    %c0_45 = arith.constant 0 : index
    %c0_46 = arith.constant 0 : index
    %53 = vector.load %arg14[%c0_45, %c0_46] : memref<8x128xf32, #tpu.memory_space<vmem>>, vector<8x16xf32>
    %c0_47 = arith.constant 0 : index
    %c0_48 = arith.constant 0 : index
    %54 = vector.load %arg13[%c0_47, %c0_48] : memref<8x16xf32, #tpu.memory_space<vmem>>, vector<8x16xf32>
    tpu.vector_store %arg13[%c0_47, %c0_48], %53 {strides = array<i32>} : memref<8x16xf32, #tpu.memory_space<vmem>>, vector<8x16xf32>,
    return
  }
  func.func @transform_0(%arg0: i32) -> (i32, i32) {
    %c0_i32 = arith.constant 0 : i32
    %c0_i32_0 = arith.constant 0 : i32
    return %arg0, %c0_i32 : i32, i32
  }
  func.func @transform_1(%arg0: i32) -> (i32, i32) {
    %c0_i32 = arith.constant 0 : i32
    %c0_i32_0 = arith.constant 0 : i32
    return %arg0, %c0_i32 : i32, i32
  }
  func.func @transform_2(%arg0: i32) -> (i32, i32) {
    %c0_i32 = arith.constant 0 : i32
    %c0_i32_0 = arith.constant 0 : i32
    %c0_i32_1 = arith.constant 0 : i32
    return %c0_i32, %c0_i32_0 : i32, i32
  }
  func.func @transform_3(%arg0: i32) -> (i32, i32) {
    %c0_i32 = arith.constant 0 : i32
    %c0_i32_0 = arith.constant 0 : i32
    %c0_i32_1 = arith.constant 0 : i32
    return %c0_i32, %c0_i32_0 : i32, i32
  }
  func.func @transform_4(%arg0: i32) -> (i32, i32) {
    %c0_i32 = arith.constant 0 : i32
    %c0_i32_0 = arith.constant 0 : i32
    %c0_i32_1 = arith.constant 0 : i32
    return %c0_i32, %c0_i32_0 : i32, i32
  }
  func.func @transform_5(%arg0: i32) -> (i32, i32) {
    %c0_i32 = arith.constant 0 : i32
    %c0_i32_0 = arith.constant 0 : i32
    %c0_i32_1 = arith.constant 0 : i32
    return %c0_i32, %c0_i32_0 : i32, i32
  }
  func.func @transform_6(%arg0: i32) -> (i32, i32) {
    %c0_i32 = arith.constant 0 : i32
    %c0_i32_0 = arith.constant 0 : i32
    %c0_i32_1 = arith.constant 0 : i32
    return %c0_i32, %c0_i32_0 : i32, i32
  }
  func.func @transform_7(%arg0: i32) -> (i32, i32) {
    %c0_i32 = arith.constant 0 : i32
    %c0_i32_0 = arith.constant 0 : i32
    %c0_i32_1 = arith.constant 0 : i32
    return %c0_i32, %c0_i32_0 : i32, i32
  }
  func.func @transform_8(%arg0: i32) -> (i32, i32) {
    %c0_i32 = arith.constant 0 : i32
    %c0_i32_0 = arith.constant 0 : i32
    %c0_i32_1 = arith.constant 0 : i32
    return %c0_i32, %c0_i32_0 : i32, i32
  }
  func.func @transform_9(%arg0: i32) -> (i32, i32) {
    %c0_i32 = arith.constant 0 : i32
    %c0_i32_0 = arith.constant 0 : i32
    %c0_i32_1 = arith.constant 0 : i32
    return %c0_i32, %c0_i32_0 : i32, i32
  }
  func.func @transform_10(%arg0: i32) -> (i32, i32) {
    %c0_i32 = arith.constant 0 : i32
    %c0_i32_0 = arith.constant 0 : i32
    return %arg0, %c0_i32 : i32, i32
  }
  func.func @transform_11(%arg0: i32) -> (i32, i32) {
    %c0_i32 = arith.constant 0 : i32
    %c0_i32_0 = arith.constant 0 : i32
    return %arg0, %c0_i32 : i32, i32
  }
  func.func @transform_12(%arg0: i32) -> (i32, i32) {
    %c0_i32 = arith.constant 0 : i32
    %c0_i32_0 = arith.constant 0 : i32
    return %arg0, %c0_i32 : i32, i32
  }
}

</mosaic_0001>

<llo_original>
// kernel: vae_forward.1
$region0: #{vae_forward.1}
  #allocation0 [shape = 'u32[]', space=smem, size = 0x4, offset = 0x4, fixed_abs, tag = 'smem constant byte address 0x4 - core index']
  #allocation1 [shape = 'u32[72,128]{1,0:T(1,128)}', space=vmem, size = 0x9000, scoped, tag = 'internal scratch']
  #allocation2 [shape = 'f32[8,128]{1,0:T(8,128)}', space=vmem, size = 0x1000, scoped, tag = 'scratch operand']
  %s0 = inlined_call_operand.vmem [shape: bf16[8,784], index: 0, kind: input, shape index: {}]
  %s1 = inlined_call_operand.vmem [shape: f32[8,16], index: 1, kind: input, shape index: {}]
  %s2 = inlined_call_operand.vmem [shape: bf16[784,512], index: 2, kind: input, shape index: {}]
  %s3 = inlined_call_operand.vmem [shape: f32[1,512], index: 3, kind: input, shape index: {}]
  %s4 = inlined_call_operand.vmem [shape: bf16[512,256], index: 4, kind: input, shape index: {}]
  %s5 = inlined_call_operand.vmem [shape: f32[1,256], index: 5, kind: input, shape index: {}]
  %s6 = inlined_call_operand.vmem [shape: bf16[128,512], index: 6, kind: input, shape index: {}]
  %s7 = inlined_call_operand.vmem [shape: f32[1,512], index: 7, kind: input, shape index: {}]
  %s8 = inlined_call_operand.vmem [shape: bf16[512,784], index: 8, kind: input, shape index: {}]
  %s9 = inlined_call_operand.vmem [shape: f32[1,784], index: 9, kind: input, shape index: {}]
  %s10 = inlined_call_operand.hbm [shape: bf16[8,784], index: 10, kind: output, shape index: {0}]
  %s11 = inlined_call_operand.hbm [shape: f32[8,16], index: 11, kind: output, shape index: {1}]
  %s12 = inlined_call_operand.hbm [shape: f32[8,16], index: 12, kind: output, shape index: {2}]
  %13 = xla_tuple %s10, %s11, %s12
  %s14 = sld [smem:[#allocation0]]
  $region66: #{vae_forward.1} parent=0
    _
  %s16 = ssub.s32 1, %s14
  %s17 = scalar_select 0, %s16, %s14
  $region1: #{vae_forward.1} parent=0
    #allocation3 [shape = 'u8[14336]{0}', space=vmem, size = 0x3800, scoped, tag = 'output window, operand 0, single buffered']
    #allocation4 [shape = 's32[1]{0}', space=sflag, size = 0x4, scoped, tag = 'scoped memory for vae_forward.1']
    #allocation5 [shape = 'u8[4096]{0}', space=vmem, size = 0x1000, scoped, tag = 'output window, operand 1, single buffered']
    #allocation6 [shape = 's32[1]{0}', space=sflag, size = 0x4, scoped, tag = 'scoped memory for vae_forward.1']
    #allocation7 [shape = 'u8[4096]{0}', space=vmem, size = 0x1000, scoped, tag = 'output window, operand 2, single buffered']
    %18 = vsyncpa [#allocation4], 0
    %19 = vsyncpa [#allocation6], 0
    // Predicated region
    $region2: #{vae_forward.1} parent=1 // pred_check
      _
    $region3: #{vae_forward.1} parent=1 // pred_check_branch
      %21 = sbr.rel (0) target = $region5
    $region4: #{vae_forward.1} parent=1 // pred_region
      _
    $region5: #{vae_forward.1} parent=1 // pred_fallthru
      _
    // Predicated region
    $region6: #{vae_forward.1} parent=1 // pred_check
      _
    $region7: #{vae_forward.1} parent=1 // pred_check_branch
      %23 = sbr.rel (0) target = $region9
    $region8: #{vae_forward.1} parent=1 // pred_region
      _
    $region9: #{vae_forward.1} parent=1 // pred_fallthru
      _
    // Predicated region
    $region10: #{vae_forward.1} parent=1 // pred_check
      _
    $region11: #{vae_forward.1} parent=1 // pred_check_branch
      %25 = sbr.rel (0) target = $region13
    $region12: #{vae_forward.1} parent=1 // pred_region
      _
    $region13: #{vae_forward.1} parent=1 // pred_fallthru
      _
    // Predicated region
    $region14: #{vae_forward.1} parent=1 // pred_check
      _
    $region15: #{vae_forward.1} parent=1 // pred_check_branch
      %27 = sbr.rel (0) target = $region17
    $region16: #{vae_forward.1} parent=1 // pred_region
      _
    $region17: #{vae_forward.1} parent=1 // pred_fallthru
      _
    // Predicated region
    $region18: #{vae_forward.1} parent=1 // pred_check
      _
    $region19: #{vae_forward.1} parent=1 // pred_check_branch
      %29 = sbr.rel (0) target = $region21
    $region20: #{vae_forward.1} parent=1 // pred_region
      _
    $region21: #{vae_forward.1} parent=1 // pred_fallthru
      _
    // Predicated region
    $region22: #{vae_forward.1} parent=1 // pred_check
      _
    $region23: #{vae_forward.1} parent=1 // pred_check_branch
      %31 = sbr.rel (0) target = $region25
    $region24: #{vae_forward.1} parent=1 // pred_region
      _
    $region25: #{vae_forward.1} parent=1 // pred_fallthru
      _
    // Predicated region
    $region26: #{vae_forward.1} parent=1 // pred_check
      _
    $region27: #{vae_forward.1} parent=1 // pred_check_branch
      %33 = sbr.rel (0) target = $region29
    $region28: #{vae_forward.1} parent=1 // pred_region
      _
    $region29: #{vae_forward.1} parent=1 // pred_fallthru
      _
    // Predicated region
    $region30: #{vae_forward.1} parent=1 // pred_check
      _
    $region31: #{vae_forward.1} parent=1 // pred_check_branch
      %35 = sbr.rel (0) target = $region33
    $region32: #{vae_forward.1} parent=1 // pred_region
      _
    $region33: #{vae_forward.1} parent=1 // pred_fallthru
      _
    // Predicated region
    $region34: #{vae_forward.1} parent=1 // pred_check
      _
    $region35: #{vae_forward.1} parent=1 // pred_check_branch
      %37 = sbr.rel (0) target = $region37
    $region36: #{vae_forward.1} parent=1 // pred_region
      _
    $region37: #{vae_forward.1} parent=1 // pred_fallthru
      _
    // Predicated region
    $region38: #{vae_forward.1} parent=1 // pred_check
      _
    $region39: #{vae_forward.1} parent=1 // pred_check_branch
      %39 = sbr.rel (0) target = $region41
    $region40: #{vae_forward.1} parent=1 // pred_region
      _
    $region41: #{vae_forward.1} parent=1 // pred_fallthru
      _
    %v41 = vld [vmem:[%s0] sm:$0xff]
    %v42 = vld [vmem:[%s0 + $0x8] sm:$0xff]
    %v43 = vld [vmem:[%s0 + $0x10] sm:$0xff]
    %v44 = vld [vmem:[%s0 + $0x18] sm:$0xf]
    %v45 = vld [vmem:[%s2] sm:$0xff]
    %v46 = vld [vmem:[%s2 + $0x8] sm:$0xff]
    %v47 = vld [vmem:[%s2 + $0x10] sm:$0xff]
    %v48 = vld [vmem:[%s2 + $0x18] sm:$0xff]
    %v49 = vld [vmem:[%s2 + $0x20] sm:$0xff]
    %v50 = vld [vmem:[%s2 + $0x28] sm:$0xff]
    %v51 = vld [vmem:[%s2 + $0x30] sm:$0xff]
    %v52 = vld [vmem:[%s2 + $0x38] sm:$0xff]
    %v53 = vld [vmem:[%s2 + $0x40] sm:$0xff]
    %v54 = vld [vmem:[%s2 + $0x48] sm:$0xff]
    %v55 = vld [vmem:[%s2 + $0x50] sm:$0xff]
    %v56 = vld [vmem:[%s2 + $0x58] sm:$0xff]
    %v57 = vld [vmem:[%s2 + $0x60] sm:$0xff]
    %v58 = vld [vmem:[%s2 + $0x68] sm:$0xff]
    %v59 = vld [vmem:[%s2 + $0x70] sm:$0xff]
    %v60 = vld [vmem:[%s2 + $0x78] sm:$0xff]
    %v61 = vld [vmem:[%s2 + $0x80] sm:$0xff]
    %v62 = vld [vmem:[%s2 + $0x88] sm:$0xff]
    %v63 = vld [vmem:[%s2 + $0x90] sm:$0xff]
    %v64 = vld [vmem:[%s2 + $0x98] sm:$0xff]
    %v65 = vld [vmem:[%s2 + $0xa0] sm:$0xff]
    %v66 = vld [vmem:[%s2 + $0xa8] sm:$0xff]
    %v67 = vld [vmem:[%s2 + $0xb0] sm:$0xff]
    %v68 = vld [vmem:[%s2 + $0xb8] sm:$0xff]
    %v69 = vld [vmem:[%s2 + $0xc0] sm:$0xff]
    %v70 = vld [vmem:[%s2 + $0xc8] sm:$0xff]
    %v71 = vld [vmem:[%s2 + $0xd0] sm:$0xff]
    %v72 = vld [vmem:[%s2 + $0xd8] sm:$0xff]
    %v73 = vld [vmem:[%s2 + $0xe0] sm:$0xff]
    %v74 = vld [vmem:[%s2 + $0xe8] sm:$0xff]
    %v75 = vld [vmem:[%s2 + $0xf0] sm:$0xff]
    %v76 = vld [vmem:[%s2 + $0xf8] sm:$0xff]
    %v77 = vld [vmem:[%s2 + $0x100] sm:$0xff]
    %v78 = vld [vmem:[%s2 + $0x108] sm:$0xff]
    %v79 = vld [vmem:[%s2 + $0x110] sm:$0xff]
    %v80 = vld [vmem:[%s2 + $0x118] sm:$0xff]
    %v81 = vld [vmem:[%s2 + $0x120] sm:$0xff]
    %v82 = vld [vmem:[%s2 + $0x128] sm:$0xff]
    %v83 = vld [vmem:[%s2 + $0x130] sm:$0xff]
    %v84 = vld [vmem:[%s2 + $0x138] sm:$0xff]
    %v85 = vld [vmem:[%s2 + $0x140] sm:$0xff]
    %v86 = vld [vmem:[%s2 + $0x148] sm:$0xff]
    %v87 = vld [vmem:[%s2 + $0x150] sm:$0xff]
    %v88 = vld [vmem:[%s2 + $0x158] sm:$0xff]
    %v89 = vld [vmem:[%s2 + $0x160] sm:$0xff]
    %v90 = vld [vmem:[%s2 + $0x168] sm:$0xff]
    %v91 = vld [vmem:[%s2 + $0x170] sm:$0xff]
    %v92 = vld [vmem:[%s2 + $0x178] sm:$0xff]
    %v93 = vld [vmem:[%s2 + $0x180] sm:$0xff]
    %v94 = vld [vmem:[%s2 + $0x188] sm:$0xff]
    %v95 = vld [vmem:[%s2 + $0x190] sm:$0xff]
    %v96 = vld [vmem:[%s2 + $0x198] sm:$0xff]
    %v97 = vld [vmem:[%s2 + $0x1a0] sm:$0xff]
    %v98 = vld [vmem:[%s2 + $0x1a8] sm:$0xff]
    %v99 = vld [vmem:[%s2 + $0x1b0] sm:$0xff]
    %v100 = vld [vmem:[%s2 + $0x1b8] sm:$0xff]
    %v101 = vld [vmem:[%s2 + $0x1c0] sm:$0xff]
    %v102 = vld [vmem:[%s2 + $0x1c8] sm:$0xff]
    %v103 = vld [vmem:[%s2 + $0x1d0] sm:$0xff]
    %v104 = vld [vmem:[%s2 + $0x1d8] sm:$0xff]
    %v105 = vld [vmem:[%s2 + $0x1e0] sm:$0xff]
    %v106 = vld [vmem:[%s2 + $0x1e8] sm:$0xff]
    %v107 = vld [vmem:[%s2 + $0x1f0] sm:$0xff]
    %v108 = vld [vmem:[%s2 + $0x1f8] sm:$0xff]
    %v109 = vld [vmem:[%s2 + $0x200] sm:$0xff]
    %v110 = vld [vmem:[%s2 + $0x208] sm:$0xff]
    %v111 = vld [vmem:[%s2 + $0x210] sm:$0xff]
    %v112 = vld [vmem:[%s2 + $0x218] sm:$0xff]
    %v113 = vld [vmem:[%s2 + $0x220] sm:$0xff]
    %v114 = vld [vmem:[%s2 + $0x228] sm:$0xff]
    %v115 = vld [vmem:[%s2 + $0x230] sm:$0xff]
    %v116 = vld [vmem:[%s2 + $0x238] sm:$0xff]
    %v117 = vld [vmem:[%s2 + $0x240] sm:$0xff]
    %v118 = vld [vmem:[%s2 + $0x248] sm:$0xff]
    %v119 = vld [vmem:[%s2 + $0x250] sm:$0xff]
    %v120 = vld [vmem:[%s2 + $0x258] sm:$0xff]
    %v121 = vld [vmem:[%s2 + $0x260] sm:$0xff]
    %v122 = vld [vmem:[%s2 + $0x268] sm:$0xff]
    %v123 = vld [vmem:[%s2 + $0x270] sm:$0xff]
    %v124 = vld [vmem:[%s2 + $0x278] sm:$0xff]
    %v125 = vld [vmem:[%s2 + $0x280] sm:$0xff]
    %v126 = vld [vmem:[%s2 + $0x288] sm:$0xff]
    %v127 = vld [vmem:[%s2 + $0x290] sm:$0xff]
    %v128 = vld [vmem:[%s2 + $0x298] sm:$0xff]
    %v129 = vld [vmem:[%s2 + $0x2a0] sm:$0xff]
    %v130 = vld [vmem:[%s2 + $0x2a8] sm:$0xff]
    %v131 = vld [vmem:[%s2 + $0x2b0] sm:$0xff]
    %v132 = vld [vmem:[%s2 + $0x2b8] sm:$0xff]
    %v133 = vld [vmem:[%s2 + $0x2c0] sm:$0xff]
    %v134 = vld [vmem:[%s2 + $0x2c8] sm:$0xff]
    %v135 = vld [vmem:[%s2 + $0x2d0] sm:$0xff]
    %v136 = vld [vmem:[%s2 + $0x2d8] sm:$0xff]
    %v137 = vld [vmem:[%s2 + $0x2e0] sm:$0xff]
    %v138 = vld [vmem:[%s2 + $0x2e8] sm:$0xff]
    %v139 = vld [vmem:[%s2 + $0x2f0] sm:$0xff]
    %v140 = vld [vmem:[%s2 + $0x2f8] sm:$0xff]
    %v141 = vld [vmem:[%s2 + $0x300] sm:$0xff]
    %v142 = vld [vmem:[%s2 + $0x308] sm:$0xff]
    %v143 = vld [vmem:[%s2 + $0x310] sm:$0xff]
    %v144 = vld [vmem:[%s2 + $0x318] sm:$0xff]
    %v145 = vld [vmem:[%s2 + $0x320] sm:$0xff]
    %v146 = vld [vmem:[%s2 + $0x328] sm:$0xff]
    %v147 = vld [vmem:[%s2 + $0x330] sm:$0xff]
    %v148 = vld [vmem:[%s2 + $0x338] sm:$0xff]
    %v149 = vld [vmem:[%s2 + $0x340] sm:$0xff]
    %v150 = vld [vmem:[%s2 + $0x348] sm:$0xff]
    %v151 = vld [vmem:[%s2 + $0x350] sm:$0xff]
    %v152 = vld [vmem:[%s2 + $0x358] sm:$0xff]
    %v153 = vld [vmem:[%s2 + $0x360] sm:$0xff]
    %v154 = vld [vmem:[%s2 + $0x368] sm:$0xff]
    %v155 = vld [vmem:[%s2 + $0x370] sm:$0xff]
    %v156 = vld [vmem:[%s2 + $0x378] sm:$0xff]
    %v157 = vld [vmem:[%s2 + $0x380] sm:$0xff]
    %v158 = vld [vmem:[%s2 + $0x388] sm:$0xff]
    %v159 = vld [vmem:[%s2 + $0x390] sm:$0xff]
    %v160 = vld [vmem:[%s2 + $0x398] sm:$0xff]
    %v161 = vld [vmem:[%s2 + $0x3a0] sm:$0xff]
    %v162 = vld [vmem:[%s2 + $0x3a8] sm:$0xff]
    %v163 = vld [vmem:[%s2 + $0x3b0] sm:$0xff]
    %v164 = vld [vmem:[%s2 + $0x3b8] sm:$0xff]
    %v165 = vld [vmem:[%s2 + $0x3c0] sm:$0xff]
    %v166 = vld [vmem:[%s2 + $0x3c8] sm:$0xff]
    %v167 = vld [vmem:[%s2 + $0x3d0] sm:$0xff]
    %v168 = vld [vmem:[%s2 + $0x3d8] sm:$0xff]
    %v169 = vld [vmem:[%s2 + $0x3e0] sm:$0xff]
    %v170 = vld [vmem:[%s2 + $0x3e8] sm:$0xff]
    %v171 = vld [vmem:[%s2 + $0x3f0] sm:$0xff]
    %v172 = vld [vmem:[%s2 + $0x3f8] sm:$0xff]
    %v173 = vld [vmem:[%s2 + $0x400] sm:$0xff]
    %v174 = vld [vmem:[%s2 + $0x408] sm:$0xff]
    %v175 = vld [vmem:[%s2 + $0x410] sm:$0xff]
    %v176 = vld [vmem:[%s2 + $0x418] sm:$0xff]
    %v177 = vld [vmem:[%s2 + $0x420] sm:$0xff]
    %v178 = vld [vmem:[%s2 + $0x428] sm:$0xff]
    %v179 = vld [vmem:[%s2 + $0x430] sm:$0xff]
    %v180 = vld [vmem:[%s2 + $0x438] sm:$0xff]
    %v181 = vld [vmem:[%s2 + $0x440] sm:$0xff]
    %v182 = vld [vmem:[%s2 + $0x448] sm:$0xff]
    %v183 = vld [vmem:[%s2 + $0x450] sm:$0xff]
    %v184 = vld [vmem:[%s2 + $0x458] sm:$0xff]
    %v185 = vld [vmem:[%s2 + $0x460] sm:$0xff]
    %v186 = vld [vmem:[%s2 + $0x468] sm:$0xff]
    %v187 = vld [vmem:[%s2 + $0x470] sm:$0xff]
    %v188 = vld [vmem:[%s2 + $0x478] sm:$0xff]
    %v189 = vld [vmem:[%s2 + $0x480] sm:$0xff]
    %v190 = vld [vmem:[%s2 + $0x488] sm:$0xff]
    %v191 = vld [vmem:[%s2 + $0x490] sm:$0xff]
    %v192 = vld [vmem:[%s2 + $0x498] sm:$0xff]
    %v193 = vld [vmem:[%s2 + $0x4a0] sm:$0xff]
    %v194 = vld [vmem:[%s2 + $0x4a8] sm:$0xff]
    %v195 = vld [vmem:[%s2 + $0x4b0] sm:$0xff]
    %v196 = vld [vmem:[%s2 + $0x4b8] sm:$0xff]
    %v197 = vld [vmem:[%s2 + $0x4c0] sm:$0xff]
    %v198 = vld [vmem:[%s2 + $0x4c8] sm:$0xff]
    %v199 = vld [vmem:[%s2 + $0x4d0] sm:$0xff]
    %v200 = vld [vmem:[%s2 + $0x4d8] sm:$0xff]
    %v201 = vld [vmem:[%s2 + $0x4e0] sm:$0xff]
    %v202 = vld [vmem:[%s2 + $0x4e8] sm:$0xff]
    %v203 = vld [vmem:[%s2 + $0x4f0] sm:$0xff]
    %v204 = vld [vmem:[%s2 + $0x4f8] sm:$0xff]
    %v205 = vld [vmem:[%s2 + $0x500] sm:$0xff]
    %v206 = vld [vmem:[%s2 + $0x508] sm:$0xff]
    %v207 = vld [vmem:[%s2 + $0x510] sm:$0xff]
    %v208 = vld [vmem:[%s2 + $0x518] sm:$0xff]
    %v209 = vld [vmem:[%s2 + $0x520] sm:$0xff]
    %v210 = vld [vmem:[%s2 + $0x528] sm:$0xff]
    %v211 = vld [vmem:[%s2 + $0x530] sm:$0xff]
    %v212 = vld [vmem:[%s2 + $0x538] sm:$0xff]
    %v213 = vld [vmem:[%s2 + $0x540] sm:$0xff]
    %v214 = vld [vmem:[%s2 + $0x548] sm:$0xff]
    %v215 = vld [vmem:[%s2 + $0x550] sm:$0xff]
    %v216 = vld [vmem:[%s2 + $0x558] sm:$0xff]
    %v217 = vld [vmem:[%s2 + $0x560] sm:$0xff]
    %v218 = vld [vmem:[%s2 + $0x568] sm:$0xff]
    %v219 = vld [vmem:[%s2 + $0x570] sm:$0xff]
    %v220 = vld [vmem:[%s2 + $0x578] sm:$0xff]
    %v221 = vld [vmem:[%s2 + $0x580] sm:$0xff]
    %v222 = vld [vmem:[%s2 + $0x588] sm:$0xff]
    %v223 = vld [vmem:[%s2 + $0x590] sm:$0xff]
    %v224 = vld [vmem:[%s2 + $0x598] sm:$0xff]
    %v225 = vld [vmem:[%s2 + $0x5a0] sm:$0xff]
    %v226 = vld [vmem:[%s2 + $0x5a8] sm:$0xff]
    %v227 = vld [vmem:[%s2 + $0x5b0] sm:$0xff]
    %v228 = vld [vmem:[%s2 + $0x5b8] sm:$0xff]
    %v229 = vld [vmem:[%s2 + $0x5c0] sm:$0xff]
    %v230 = vld [vmem:[%s2 + $0x5c8] sm:$0xff]
    %v231 = vld [vmem:[%s2 + $0x5d0] sm:$0xff]
    %v232 = vld [vmem:[%s2 + $0x5d8] sm:$0xff]
    %v233 = vld [vmem:[%s2 + $0x5e0] sm:$0xff]
    %v234 = vld [vmem:[%s2 + $0x5e8] sm:$0xff]
    %v235 = vld [vmem:[%s2 + $0x5f0] sm:$0xff]
    %v236 = vld [vmem:[%s2 + $0x5f8] sm:$0xff]
    %v237 = vld [vmem:[%s2 + $0x600] sm:$0xff]
    %v238 = vld [vmem:[%s2 + $0x608] sm:$0xff]
    %v239 = vld [vmem:[%s2 + $0x610] sm:$0xff]
    %v240 = vld [vmem:[%s2 + $0x618] sm:$0xff]
    %v241 = vld [vmem:[%s3] sm:$0xf]
    %v243 = vperm.slane %v241, 0
    %v244 = vperm.slane %v241, 1
    %v245 = vperm.slane %v241, 2
    %v246 = vperm.slane %v241, 3
    %v255 = vunpack.c.l.b16 %v41
    %v256 = vunpack.c.h.b16 %v41
    %v257 = vunpack.c.l.b16 %v42
    %v258 = vunpack.c.h.b16 %v42
    %v259 = vunpack.c.l.b16 %v43
    %v260 = vunpack.c.h.b16 %v43
    %v261 = vunpack.c.l.b16 %v44
    %v262 = vpack.c.b16 %v255, %v255
    %v263 = vpack.c.b16 %v256, %v256
    %v264 = vpack.c.b16 %v257, %v257
    %v265 = vpack.c.b16 %v258, %v258
    %v266 = vpack.c.b16 %v259, %v259
    %v267 = vpack.c.b16 %v260, %v260
    %v268 = vpack.c.b16 %v261, %v261
    %v471 = vunpack.c.l.b16 %v45
    %v472 = vunpack.c.h.b16 %v45
    %v473 = vunpack.c.l.b16 %v46
    %v474 = vunpack.c.h.b16 %v46
    %v475 = vunpack.c.l.b16 %v47
    %v476 = vunpack.c.h.b16 %v47
    %v477 = vunpack.c.l.b16 %v48
    %v478 = vunpack.c.h.b16 %v48
    %v479 = vunpack.c.l.b16 %v49
    %v480 = vunpack.c.h.b16 %v49
    %v481 = vunpack.c.l.b16 %v50
    %v482 = vunpack.c.h.b16 %v50
    %v483 = vunpack.c.l.b16 %v51
    %v484 = vunpack.c.h.b16 %v51
    %v485 = vunpack.c.l.b16 %v52
    %v486 = vunpack.c.h.b16 %v52
    %v487 = vunpack.c.l.b16 %v53
    %v488 = vunpack.c.h.b16 %v53
    %v489 = vunpack.c.l.b16 %v54
    %v490 = vunpack.c.h.b16 %v54
    %v491 = vunpack.c.l.b16 %v55
    %v492 = vunpack.c.h.b16 %v55
    %v493 = vunpack.c.l.b16 %v56
    %v494 = vunpack.c.h.b16 %v56
    %v495 = vunpack.c.l.b16 %v57
    %v496 = vunpack.c.h.b16 %v57
    %v497 = vunpack.c.l.b16 %v58
    %v498 = vunpack.c.h.b16 %v58
    %v499 = vunpack.c.l.b16 %v59
    %v500 = vunpack.c.h.b16 %v59
    %v501 = vunpack.c.l.b16 %v60
    %v502 = vunpack.c.h.b16 %v60
    %v503 = vunpack.c.l.b16 %v61
    %v504 = vunpack.c.h.b16 %v61
    %v505 = vunpack.c.l.b16 %v62
    %v506 = vunpack.c.h.b16 %v62
    %v507 = vunpack.c.l.b16 %v63
    %v508 = vunpack.c.h.b16 %v63
    %v509 = vunpack.c.l.b16 %v64
    %v510 = vunpack.c.h.b16 %v64
    %v511 = vunpack.c.l.b16 %v65
    %v512 = vunpack.c.h.b16 %v65
    %v513 = vunpack.c.l.b16 %v66
    %v514 = vunpack.c.h.b16 %v66
    %v515 = vunpack.c.l.b16 %v67
    %v516 = vunpack.c.h.b16 %v67
    %v517 = vunpack.c.l.b16 %v68
    %v518 = vunpack.c.h.b16 %v68
    %v519 = vunpack.c.l.b16 %v69
    %v520 = vunpack.c.h.b16 %v69
    %v521 = vunpack.c.l.b16 %v70
    %v522 = vunpack.c.h.b16 %v70
    %v523 = vunpack.c.l.b16 %v71
    %v524 = vunpack.c.h.b16 %v71
    %v525 = vunpack.c.l.b16 %v72
    %v526 = vunpack.c.h.b16 %v72
    %v527 = vunpack.c.l.b16 %v73
    %v528 = vunpack.c.h.b16 %v73
    %v529 = vunpack.c.l.b16 %v74
    %v530 = vunpack.c.h.b16 %v74
    %v531 = vunpack.c.l.b16 %v75
    %v532 = vunpack.c.h.b16 %v75
    %v533 = vunpack.c.l.b16 %v76
    %v534 = vunpack.c.h.b16 %v76
    %v535 = vunpack.c.l.b16 %v77
    %v536 = vunpack.c.h.b16 %v77
    %v537 = vunpack.c.l.b16 %v78
    %v538 = vunpack.c.h.b16 %v78
    %v539 = vunpack.c.l.b16 %v79
    %v540 = vunpack.c.h.b16 %v79
    %v541 = vunpack.c.l.b16 %v80
    %v542 = vunpack.c.h.b16 %v80
    %v543 = vunpack.c.l.b16 %v81
    %v544 = vunpack.c.h.b16 %v81
    %v545 = vunpack.c.l.b16 %v82
    %v546 = vunpack.c.h.b16 %v82
    %v547 = vunpack.c.l.b16 %v83
    %v548 = vunpack.c.h.b16 %v83
    %v549 = vunpack.c.l.b16 %v84
    %v550 = vunpack.c.h.b16 %v84
    %v551 = vunpack.c.l.b16 %v85
    %v552 = vunpack.c.h.b16 %v85
    %v553 = vunpack.c.l.b16 %v86
    %v554 = vunpack.c.h.b16 %v86
    %v555 = vunpack.c.l.b16 %v87
    %v556 = vunpack.c.h.b16 %v87
    %v557 = vunpack.c.l.b16 %v88
    %v558 = vunpack.c.h.b16 %v88
    %v559 = vunpack.c.l.b16 %v89
    %v560 = vunpack.c.h.b16 %v89
    %v561 = vunpack.c.l.b16 %v90
    %v562 = vunpack.c.h.b16 %v90
    %v563 = vunpack.c.l.b16 %v91
    %v564 = vunpack.c.h.b16 %v91
    %v565 = vunpack.c.l.b16 %v92
    %v566 = vunpack.c.h.b16 %v92
    %v567 = vunpack.c.l.b16 %v93
    %v568 = vunpack.c.h.b16 %v93
    %v569 = vunpack.c.l.b16 %v94
    %v570 = vunpack.c.h.b16 %v94
    %v571 = vunpack.c.l.b16 %v95
    %v572 = vunpack.c.h.b16 %v95
    %v573 = vunpack.c.l.b16 %v96
    %v574 = vunpack.c.h.b16 %v96
    %v575 = vunpack.c.l.b16 %v97
    %v576 = vunpack.c.h.b16 %v97
    %v577 = vunpack.c.l.b16 %v98
    %v578 = vunpack.c.h.b16 %v98
    %v579 = vunpack.c.l.b16 %v99
    %v580 = vunpack.c.h.b16 %v99
    %v581 = vunpack.c.l.b16 %v100
    %v582 = vunpack.c.h.b16 %v100
    %v583 = vunpack.c.l.b16 %v101
    %v584 = vunpack.c.h.b16 %v101
    %v585 = vunpack.c.l.b16 %v102
    %v586 = vunpack.c.h.b16 %v102
    %v587 = vunpack.c.l.b16 %v103
    %v588 = vunpack.c.h.b16 %v103
    %v589 = vunpack.c.l.b16 %v104
    %v590 = vunpack.c.h.b16 %v104
    %v591 = vunpack.c.l.b16 %v105
    %v592 = vunpack.c.h.b16 %v105
    %v593 = vunpack.c.l.b16 %v106
    %v594 = vunpack.c.h.b16 %v106
    %v595 = vunpack.c.l.b16 %v107
    %v596 = vunpack.c.h.b16 %v107
    %v597 = vunpack.c.l.b16 %v108
    %v598 = vunpack.c.h.b16 %v108
    %v599 = vunpack.c.l.b16 %v109
    %v600 = vunpack.c.h.b16 %v109
    %v601 = vunpack.c.l.b16 %v110
    %v602 = vunpack.c.h.b16 %v110
    %v603 = vunpack.c.l.b16 %v111
    %v604 = vunpack.c.h.b16 %v111
    %v605 = vunpack.c.l.b16 %v112
    %v606 = vunpack.c.h.b16 %v112
    %v607 = vunpack.c.l.b16 %v113
    %v608 = vunpack.c.h.b16 %v113
    %v609 = vunpack.c.l.b16 %v114
    %v610 = vunpack.c.h.b16 %v114
    %v611 = vunpack.c.l.b16 %v115
    %v612 = vunpack.c.h.b16 %v115
    %v613 = vunpack.c.l.b16 %v116
    %v614 = vunpack.c.h.b16 %v116
    %v615 = vunpack.c.l.b16 %v117
    %v616 = vunpack.c.h.b16 %v117
    %v617 = vunpack.c.l.b16 %v118
    %v618 = vunpack.c.h.b16 %v118
    %v619 = vunpack.c.l.b16 %v119
    %v620 = vunpack.c.h.b16 %v119
    %v621 = vunpack.c.l.b16 %v120
    %v622 = vunpack.c.h.b16 %v120
    %v623 = vunpack.c.l.b16 %v121
    %v624 = vunpack.c.h.b16 %v121
    %v625 = vunpack.c.l.b16 %v122
    %v626 = vunpack.c.h.b16 %v122
    %v627 = vunpack.c.l.b16 %v123
    %v628 = vunpack.c.h.b16 %v123
    %v629 = vunpack.c.l.b16 %v124
    %v630 = vunpack.c.h.b16 %v124
    %v631 = vunpack.c.l.b16 %v125
    %v632 = vunpack.c.h.b16 %v125
    %v633 = vunpack.c.l.b16 %v126
    %v634 = vunpack.c.h.b16 %v126
    %v635 = vunpack.c.l.b16 %v127
    %v636 = vunpack.c.h.b16 %v127
    %v637 = vunpack.c.l.b16 %v128
    %v638 = vunpack.c.h.b16 %v128
    %v639 = vunpack.c.l.b16 %v129
    %v640 = vunpack.c.h.b16 %v129
    %v641 = vunpack.c.l.b16 %v130
    %v642 = vunpack.c.h.b16 %v130
    %v643 = vunpack.c.l.b16 %v131
    %v644 = vunpack.c.h.b16 %v131
    %v645 = vunpack.c.l.b16 %v132
    %v646 = vunpack.c.h.b16 %v132
    %v647 = vunpack.c.l.b16 %v133
    %v648 = vunpack.c.h.b16 %v133
    %v649 = vunpack.c.l.b16 %v134
    %v650 = vunpack.c.h.b16 %v134
    %v651 = vunpack.c.l.b16 %v135
    %v652 = vunpack.c.h.b16 %v135
    %v653 = vunpack.c.l.b16 %v136
    %v654 = vunpack.c.h.b16 %v136
    %v655 = vunpack.c.l.b16 %v137
    %v656 = vunpack.c.h.b16 %v137
    %v657 = vunpack.c.l.b16 %v138
    %v658 = vunpack.c.h.b16 %v138
    %v659 = vunpack.c.l.b16 %v139
    %v660 = vunpack.c.h.b16 %v139
    %v661 = vunpack.c.l.b16 %v140
    %v662 = vunpack.c.h.b16 %v140
    %v663 = vunpack.c.l.b16 %v141
    %v664 = vunpack.c.h.b16 %v141
    %v665 = vunpack.c.l.b16 %v142
    %v666 = vunpack.c.h.b16 %v142
    %v667 = vunpack.c.l.b16 %v143
    %v668 = vunpack.c.h.b16 %v143
    %v669 = vunpack.c.l.b16 %v144
    %v670 = vunpack.c.h.b16 %v144
    %v671 = vunpack.c.l.b16 %v145
    %v672 = vunpack.c.h.b16 %v145
    %v673 = vunpack.c.l.b16 %v146
    %v674 = vunpack.c.h.b16 %v146
    %v675 = vunpack.c.l.b16 %v147
    %v676 = vunpack.c.h.b16 %v147
    %v677 = vunpack.c.l.b16 %v148
    %v678 = vunpack.c.h.b16 %v148
    %v679 = vunpack.c.l.b16 %v149
    %v680 = vunpack.c.h.b16 %v149
    %v681 = vunpack.c.l.b16 %v150
    %v682 = vunpack.c.h.b16 %v150
    %v683 = vunpack.c.l.b16 %v151
    %v684 = vunpack.c.h.b16 %v151
    %v685 = vunpack.c.l.b16 %v152
    %v686 = vunpack.c.h.b16 %v152
    %v687 = vunpack.c.l.b16 %v153
    %v688 = vunpack.c.h.b16 %v153
    %v689 = vunpack.c.l.b16 %v154
    %v690 = vunpack.c.h.b16 %v154
    %v691 = vunpack.c.l.b16 %v155
    %v692 = vunpack.c.h.b16 %v155
    %v693 = vunpack.c.l.b16 %v156
    %v694 = vunpack.c.h.b16 %v156
    %v695 = vunpack.c.l.b16 %v157
    %v696 = vunpack.c.h.b16 %v157
    %v697 = vunpack.c.l.b16 %v158
    %v698 = vunpack.c.h.b16 %v158
    %v699 = vunpack.c.l.b16 %v159
    %v700 = vunpack.c.h.b16 %v159
    %v701 = vunpack.c.l.b16 %v160
    %v702 = vunpack.c.h.b16 %v160
    %v703 = vunpack.c.l.b16 %v161
    %v704 = vunpack.c.h.b16 %v161
    %v705 = vunpack.c.l.b16 %v162
    %v706 = vunpack.c.h.b16 %v162
    %v707 = vunpack.c.l.b16 %v163
    %v708 = vunpack.c.h.b16 %v163
    %v709 = vunpack.c.l.b16 %v164
    %v710 = vunpack.c.h.b16 %v164
    %v711 = vunpack.c.l.b16 %v165
    %v712 = vunpack.c.h.b16 %v165
    %v713 = vunpack.c.l.b16 %v166
    %v714 = vunpack.c.h.b16 %v166
    %v715 = vunpack.c.l.b16 %v167
    %v716 = vunpack.c.h.b16 %v167
    %v717 = vunpack.c.l.b16 %v168
    %v718 = vunpack.c.h.b16 %v168
    %v719 = vunpack.c.l.b16 %v169
    %v720 = vunpack.c.h.b16 %v169
    %v721 = vunpack.c.l.b16 %v170
    %v722 = vunpack.c.h.b16 %v170
    %v723 = vunpack.c.l.b16 %v171
    %v724 = vunpack.c.h.b16 %v171
    %v725 = vunpack.c.l.b16 %v172
    %v726 = vunpack.c.h.b16 %v172
    %v727 = vunpack.c.l.b16 %v173
    %v728 = vunpack.c.h.b16 %v173
    %v729 = vunpack.c.l.b16 %v174
    %v730 = vunpack.c.h.b16 %v174
    %v731 = vunpack.c.l.b16 %v175
    %v732 = vunpack.c.h.b16 %v175
    %v733 = vunpack.c.l.b16 %v176
    %v734 = vunpack.c.h.b16 %v176
    %v735 = vunpack.c.l.b16 %v177
    %v736 = vunpack.c.h.b16 %v177
    %v737 = vunpack.c.l.b16 %v178
    %v738 = vunpack.c.h.b16 %v178
    %v739 = vunpack.c.l.b16 %v179
    %v740 = vunpack.c.h.b16 %v179
    %v741 = vunpack.c.l.b16 %v180
    %v742 = vunpack.c.h.b16 %v180
    %v743 = vunpack.c.l.b16 %v181
    %v744 = vunpack.c.h.b16 %v181
    %v745 = vunpack.c.l.b16 %v182
    %v746 = vunpack.c.h.b16 %v182
    %v747 = vunpack.c.l.b16 %v183
    %v748 = vunpack.c.h.b16 %v183
    %v749 = vunpack.c.l.b16 %v184
    %v750 = vunpack.c.h.b16 %v184
    %v751 = vunpack.c.l.b16 %v185
    %v752 = vunpack.c.h.b16 %v185
    %v753 = vunpack.c.l.b16 %v186
    %v754 = vunpack.c.h.b16 %v186
    %v755 = vunpack.c.l.b16 %v187
    %v756 = vunpack.c.h.b16 %v187
    %v757 = vunpack.c.l.b16 %v188
    %v758 = vunpack.c.h.b16 %v188
    %v759 = vunpack.c.l.b16 %v189
    %v760 = vunpack.c.h.b16 %v189
    %v761 = vunpack.c.l.b16 %v190
    %v762 = vunpack.c.h.b16 %v190
    %v763 = vunpack.c.l.b16 %v191
    %v764 = vunpack.c.h.b16 %v191
    %v765 = vunpack.c.l.b16 %v192
    %v766 = vunpack.c.h.b16 %v192
    %v767 = vunpack.c.l.b16 %v193
    %v768 = vunpack.c.h.b16 %v193
    %v769 = vunpack.c.l.b16 %v194
    %v770 = vunpack.c.h.b16 %v194
    %v771 = vunpack.c.l.b16 %v195
    %v772 = vunpack.c.h.b16 %v195
    %v773 = vunpack.c.l.b16 %v196
    %v774 = vunpack.c.h.b16 %v196
    %v775 = vunpack.c.l.b16 %v197
    %v776 = vunpack.c.h.b16 %v197
    %v777 = vunpack.c.l.b16 %v198
    %v778 = vunpack.c.h.b16 %v198
    %v779 = vunpack.c.l.b16 %v199
    %v780 = vunpack.c.h.b16 %v199
    %v781 = vunpack.c.l.b16 %v200
    %v782 = vunpack.c.h.b16 %v200
    %v783 = vunpack.c.l.b16 %v201
    %v784 = vunpack.c.h.b16 %v201
    %v785 = vunpack.c.l.b16 %v202
    %v786 = vunpack.c.h.b16 %v202
    %v787 = vunpack.c.l.b16 %v203
    %v788 = vunpack.c.h.b16 %v203
    %v789 = vunpack.c.l.b16 %v204
    %v790 = vunpack.c.h.b16 %v204
    %v791 = vunpack.c.l.b16 %v205
    %v792 = vunpack.c.h.b16 %v205
    %v793 = vunpack.c.l.b16 %v206
    %v794 = vunpack.c.h.b16 %v206
    %v795 = vunpack.c.l.b16 %v207
    %v796 = vunpack.c.h.b16 %v207
    %v797 = vunpack.c.l.b16 %v208
    %v798 = vunpack.c.h.b16 %v208
    %v799 = vunpack.c.l.b16 %v209
    %v800 = vunpack.c.h.b16 %v209
    %v801 = vunpack.c.l.b16 %v210
    %v802 = vunpack.c.h.b16 %v210
    %v803 = vunpack.c.l.b16 %v211
    %v804 = vunpack.c.h.b16 %v211
    %v805 = vunpack.c.l.b16 %v212
    %v806 = vunpack.c.h.b16 %v212
    %v807 = vunpack.c.l.b16 %v213
    %v808 = vunpack.c.h.b16 %v213
    %v809 = vunpack.c.l.b16 %v214
    %v810 = vunpack.c.h.b16 %v214
    %v811 = vunpack.c.l.b16 %v215
    %v812 = vunpack.c.h.b16 %v215
    %v813 = vunpack.c.l.b16 %v216
    %v814 = vunpack.c.h.b16 %v216
    %v815 = vunpack.c.l.b16 %v217
    %v816 = vunpack.c.h.b16 %v217
    %v817 = vunpack.c.l.b16 %v218
    %v818 = vunpack.c.h.b16 %v218
    %v819 = vunpack.c.l.b16 %v219
    %v820 = vunpack.c.h.b16 %v219
    %v821 = vunpack.c.l.b16 %v220
    %v822 = vunpack.c.h.b16 %v220
    %v823 = vunpack.c.l.b16 %v221
    %v824 = vunpack.c.h.b16 %v221
    %v825 = vunpack.c.l.b16 %v222
    %v826 = vunpack.c.h.b16 %v222
    %v827 = vunpack.c.l.b16 %v223
    %v828 = vunpack.c.h.b16 %v223
    %v829 = vunpack.c.l.b16 %v224
    %v830 = vunpack.c.h.b16 %v224
    %v831 = vunpack.c.l.b16 %v225
    %v832 = vunpack.c.h.b16 %v225
    %v833 = vunpack.c.l.b16 %v226
    %v834 = vunpack.c.h.b16 %v226
    %v835 = vunpack.c.l.b16 %v227
    %v836 = vunpack.c.h.b16 %v227
    %v837 = vunpack.c.l.b16 %v228
    %v838 = vunpack.c.h.b16 %v228
    %v839 = vunpack.c.l.b16 %v229
    %v840 = vunpack.c.h.b16 %v229
    %v841 = vunpack.c.l.b16 %v230
    %v842 = vunpack.c.h.b16 %v230
    %v843 = vunpack.c.l.b16 %v231
    %v844 = vunpack.c.h.b16 %v231
    %v845 = vunpack.c.l.b16 %v232
    %v846 = vunpack.c.h.b16 %v232
    %v847 = vunpack.c.l.b16 %v233
    %v848 = vunpack.c.h.b16 %v233
    %v849 = vunpack.c.l.b16 %v234
    %v850 = vunpack.c.h.b16 %v234
    %v851 = vunpack.c.l.b16 %v235
    %v852 = vunpack.c.h.b16 %v235
    %v853 = vunpack.c.l.b16 %v236
    %v854 = vunpack.c.h.b16 %v236
    %v855 = vunpack.c.l.b16 %v237
    %v856 = vunpack.c.h.b16 %v237
    %v857 = vunpack.c.l.b16 %v238
    %v858 = vunpack.c.h.b16 %v238
    %v859 = vunpack.c.l.b16 %v239
    %v860 = vunpack.c.h.b16 %v239
    %v861 = vunpack.c.l.b16 %v240
    %v862 = vunpack.c.h.b16 %v240
    %v863 = vpack.c.b16 %v475, %v471
    %v864 = vpack.c.b16 %v476, %v472
    %v865 = vpack.c.b16 %v477, %v473
    %v866 = vpack.c.b16 %v478, %v474
    %v867 = vpack.c.b16 %v483, %v479
    %v868 = vpack.c.b16 %v484, %v480
    %v869 = vpack.c.b16 %v485, %v481
    %v870 = vpack.c.b16 %v486, %v482
    %v871 = vpack.c.b16 %v491, %v487
    %v872 = vpack.c.b16 %v492, %v488
    %v873 = vpack.c.b16 %v493, %v489
    %v874 = vpack.c.b16 %v494, %v490
    %v875 = vpack.c.b16 %v499, %v495
    %v876 = vpack.c.b16 %v500, %v496
    %v877 = vpack.c.b16 %v501, %v497
    %v878 = vpack.c.b16 %v502, %v498
    %v879 = vpack.c.b16 %v507, %v503
    %v880 = vpack.c.b16 %v508, %v504
    %v881 = vpack.c.b16 %v509, %v505
    %v882 = vpack.c.b16 %v510, %v506
    %v883 = vpack.c.b16 %v515, %v511
    %v884 = vpack.c.b16 %v516, %v512
    %v885 = vpack.c.b16 %v517, %v513
    %v886 = vpack.c.b16 %v518, %v514
    %v887 = vpack.c.b16 %v523, %v519
    %v888 = vpack.c.b16 %v524, %v520
    %v889 = vpack.c.b16 %v525, %v521
    %v890 = vpack.c.b16 %v526, %v522
    %v891 = vpack.c.b16 %v531, %v527
    %v892 = vpack.c.b16 %v532, %v528
    %v893 = vpack.c.b16 %v533, %v529
    %v894 = vpack.c.b16 %v534, %v530
    %v895 = vpack.c.b16 %v539, %v535
    %v896 = vpack.c.b16 %v540, %v536
    %v897 = vpack.c.b16 %v541, %v537
    %v898 = vpack.c.b16 %v542, %v538
    %v899 = vpack.c.b16 %v547, %v543
    %v900 = vpack.c.b16 %v548, %v544
    %v901 = vpack.c.b16 %v549, %v545
    %v902 = vpack.c.b16 %v550, %v546
    %v903 = vpack.c.b16 %v555, %v551
    %v904 = vpack.c.b16 %v556, %v552
    %v905 = vpack.c.b16 %v557, %v553
    %v906 = vpack.c.b16 %v558, %v554
    %v907 = vpack.c.b16 %v563, %v559
    %v908 = vpack.c.b16 %v564, %v560
    %v909 = vpack.c.b16 %v565, %v561
    %v910 = vpack.c.b16 %v566, %v562
    %v911 = vpack.c.b16 %v571, %v567
    %v912 = vpack.c.b16 %v572, %v568
    %v913 = vpack.c.b16 %v573, %v569
    %v914 = vpack.c.b16 %v574, %v570
    %v915 = vpack.c.b16 %v579, %v575
    %v916 = vpack.c.b16 %v580, %v576
    %v917 = vpack.c.b16 %v581, %v577
    %v918 = vpack.c.b16 %v582, %v578
    %v919 = vpack.c.b16 %v587, %v583
    %v920 = vpack.c.b16 %v588, %v584
    %v921 = vpack.c.b16 %v589, %v585
    %v922 = vpack.c.b16 %v590, %v586
    %v923 = vpack.c.b16 %v595, %v591
    %v924 = vpack.c.b16 %v596, %v592
    %v925 = vpack.c.b16 %v597, %v593
    %v926 = vpack.c.b16 %v598, %v594
    %v927 = vpack.c.b16 %v603, %v599
    %v928 = vpack.c.b16 %v604, %v600
    %v929 = vpack.c.b16 %v605, %v601
    %v930 = vpack.c.b16 %v606, %v602
    %v931 = vpack.c.b16 %v611, %v607
    %v932 = vpack.c.b16 %v612, %v608
    %v933 = vpack.c.b16 %v613, %v609
    %v934 = vpack.c.b16 %v614, %v610
    %v935 = vpack.c.b16 %v619, %v615
    %v936 = vpack.c.b16 %v620, %v616
    %v937 = vpack.c.b16 %v621, %v617
    %v938 = vpack.c.b16 %v622, %v618
    %v939 = vpack.c.b16 %v627, %v623
    %v940 = vpack.c.b16 %v628, %v624
    %v941 = vpack.c.b16 %v629, %v625
    %v942 = vpack.c.b16 %v630, %v626
    %v943 = vpack.c.b16 %v635, %v631
    %v944 = vpack.c.b16 %v636, %v632
    %v945 = vpack.c.b16 %v637, %v633
    %v946 = vpack.c.b16 %v638, %v634
    %v947 = vpack.c.b16 %v643, %v639
    %v948 = vpack.c.b16 %v644, %v640
    %v949 = vpack.c.b16 %v645, %v641
    %v950 = vpack.c.b16 %v646, %v642
    %v951 = vpack.c.b16 %v651, %v647
    %v952 = vpack.c.b16 %v652, %v648
    %v953 = vpack.c.b16 %v653, %v649
    %v954 = vpack.c.b16 %v654, %v650
    %v955 = vpack.c.b16 %v659, %v655
    %v956 = vpack.c.b16 %v660, %v656
    %v957 = vpack.c.b16 %v661, %v657
    %v958 = vpack.c.b16 %v662, %v658
    %v959 = vpack.c.b16 %v667, %v663
    %v960 = vpack.c.b16 %v668, %v664
    %v961 = vpack.c.b16 %v669, %v665
    %v962 = vpack.c.b16 %v670, %v666
    %v963 = vpack.c.b16 %v675, %v671
    %v964 = vpack.c.b16 %v676, %v672
    %v965 = vpack.c.b16 %v677, %v673
    %v966 = vpack.c.b16 %v678, %v674
    %v967 = vpack.c.b16 %v683, %v679
    %v968 = vpack.c.b16 %v684, %v680
    %v969 = vpack.c.b16 %v685, %v681
    %v970 = vpack.c.b16 %v686, %v682
    %v971 = vpack.c.b16 %v691, %v687
    %v972 = vpack.c.b16 %v692, %v688
    %v973 = vpack.c.b16 %v693, %v689
    %v974 = vpack.c.b16 %v694, %v690
    %v975 = vpack.c.b16 %v699, %v695
    %v976 = vpack.c.b16 %v700, %v696
    %v977 = vpack.c.b16 %v701, %v697
    %v978 = vpack.c.b16 %v702, %v698
    %v979 = vpack.c.b16 %v707, %v703
    %v980 = vpack.c.b16 %v708, %v704
    %v981 = vpack.c.b16 %v709, %v705
    %v982 = vpack.c.b16 %v710, %v706
    %v983 = vpack.c.b16 %v715, %v711
    %v984 = vpack.c.b16 %v716, %v712
    %v985 = vpack.c.b16 %v717, %v713
    %v986 = vpack.c.b16 %v718, %v714
    %v987 = vpack.c.b16 %v723, %v719
    %v988 = vpack.c.b16 %v724, %v720
    %v989 = vpack.c.b16 %v725, %v721
    %v990 = vpack.c.b16 %v726, %v722
    %v991 = vpack.c.b16 %v731, %v727
    %v992 = vpack.c.b16 %v732, %v728
    %v993 = vpack.c.b16 %v733, %v729
    %v994 = vpack.c.b16 %v734, %v730
    %v995 = vpack.c.b16 %v739, %v735
    %v996 = vpack.c.b16 %v740, %v736
    %v997 = vpack.c.b16 %v741, %v737
    %v998 = vpack.c.b16 %v742, %v738
    %v999 = vpack.c.b16 %v747, %v743
    %v1000 = vpack.c.b16 %v748, %v744
    %v1001 = vpack.c.b16 %v749, %v745
    %v1002 = vpack.c.b16 %v750, %v746
    %v1003 = vpack.c.b16 %v755, %v751
    %v1004 = vpack.c.b16 %v756, %v752
    %v1005 = vpack.c.b16 %v757, %v753
    %v1006 = vpack.c.b16 %v758, %v754
    %v1007 = vpack.c.b16 %v763, %v759
    %v1008 = vpack.c.b16 %v764, %v760
    %v1009 = vpack.c.b16 %v765, %v761
    %v1010 = vpack.c.b16 %v766, %v762
    %v1011 = vpack.c.b16 %v771, %v767
    %v1012 = vpack.c.b16 %v772, %v768
    %v1013 = vpack.c.b16 %v773, %v769
    %v1014 = vpack.c.b16 %v774, %v770
    %v1015 = vpack.c.b16 %v779, %v775
    %v1016 = vpack.c.b16 %v780, %v776
    %v1017 = vpack.c.b16 %v781, %v777
    %v1018 = vpack.c.b16 %v782, %v778
    %v1019 = vpack.c.b16 %v787, %v783
    %v1020 = vpack.c.b16 %v788, %v784
    %v1021 = vpack.c.b16 %v789, %v785
    %v1022 = vpack.c.b16 %v790, %v786
    %v1023 = vpack.c.b16 %v795, %v791
    %v1024 = vpack.c.b16 %v796, %v792
    %v1025 = vpack.c.b16 %v797, %v793
    %v1026 = vpack.c.b16 %v798, %v794
    %v1027 = vpack.c.b16 %v803, %v799
    %v1028 = vpack.c.b16 %v804, %v800
    %v1029 = vpack.c.b16 %v805, %v801
    %v1030 = vpack.c.b16 %v806, %v802
    %v1031 = vpack.c.b16 %v811, %v807
    %v1032 = vpack.c.b16 %v812, %v808
    %v1033 = vpack.c.b16 %v813, %v809
    %v1034 = vpack.c.b16 %v814, %v810
    %v1035 = vpack.c.b16 %v819, %v815
    %v1036 = vpack.c.b16 %v820, %v816
    %v1037 = vpack.c.b16 %v821, %v817
    %v1038 = vpack.c.b16 %v822, %v818
    %v1039 = vpack.c.b16 %v827, %v823
    %v1040 = vpack.c.b16 %v828, %v824
    %v1041 = vpack.c.b16 %v829, %v825
    %v1042 = vpack.c.b16 %v830, %v826
    %v1043 = vpack.c.b16 %v835, %v831
    %v1044 = vpack.c.b16 %v836, %v832
    %v1045 = vpack.c.b16 %v837, %v833
    %v1046 = vpack.c.b16 %v838, %v834
    %v1047 = vpack.c.b16 %v843, %v839
    %v1048 = vpack.c.b16 %v844, %v840
    %v1049 = vpack.c.b16 %v845, %v841
    %v1050 = vpack.c.b16 %v846, %v842
    %v1051 = vpack.c.b16 %v851, %v847
    %v1052 = vpack.c.b16 %v852, %v848
    %v1053 = vpack.c.b16 %v853, %v849
    %v1054 = vpack.c.b16 %v854, %v850
    %v1055 = vpack.c.b16 %v859, %v855
    %v1056 = vpack.c.b16 %v860, %v856
    %v1057 = vpack.c.b16 %v861, %v857
    %v1058 = vpack.c.b16 %v862, %v858
    %vm1255 = vcmask 130048
    %v1257 = vsel %vm1255, %v268, 0
    %1259 = vmatpush.bf16.msra.mxu0 %v891
    %1260 = vmatpush.bf16.msra.mxu0 %v887
    %1261 = vmatpush.bf16.msra.mxu0 %v883
    %1262 = vmatpush.bf16.msra.mxu0 %v879
    %1263 = vmatpush.bf16.msra.mxu0 %v875
    %1264 = vmatpush.bf16.msra.mxu0 %v871
    %1265 = vmatpush.bf16.msra.mxu0 %v867
    %1266 = vmatpush.bf16.msra.mxu0 %v863
    %1267 = vmatmul.bf16.gmra.mxu0 %v262
    %v1268 = vpop.f32.mrf.mxu0
    %v1269 = vadd.f32 %v243, %v1268
    %v1270 = vpop.f32.mrf.mxu0
    %1271 = vdwg.mxu0
    %1272 = vmatpush.bf16.msra.mxu0 %v923
    %1273 = vmatpush.bf16.msra.mxu0 %v919
    %1274 = vmatpush.bf16.msra.mxu0 %v915
    %1275 = vmatpush.bf16.msra.mxu0 %v911
    %1276 = vmatpush.bf16.msra.mxu0 %v907
    %1277 = vmatpush.bf16.msra.mxu0 %v903
    %1278 = vmatpush.bf16.msra.mxu0 %v899
    %1279 = vmatpush.bf16.msra.mxu0 %v895
    %1280 = vmatmul.bf16.gmra.mxu0 %v263
    %v1281 = vpop.f32.mrf.mxu0
    %v1282 = vadd.f32 %v1269, %v1281
    %v1283 = vpop.f32.mrf.mxu0
    %1284 = vdwg.mxu0
    %1285 = vmatpush.bf16.msra.mxu0 %v955
    %1286 = vmatpush.bf16.msra.mxu0 %v951
    %1287 = vmatpush.bf16.msra.mxu0 %v947
    %1288 = vmatpush.bf16.msra.mxu0 %v943
    %1289 = vmatpush.bf16.msra.mxu0 %v939
    %1290 = vmatpush.bf16.msra.mxu0 %v935
    %1291 = vmatpush.bf16.msra.mxu0 %v931
    %1292 = vmatpush.bf16.msra.mxu0 %v927
    %1293 = vmatmul.bf16.gmra.mxu0 %v264
    %v1294 = vpop.f32.mrf.mxu0
    %v1295 = vadd.f32 %v1282, %v1294
    %v1296 = vpop.f32.mrf.mxu0
    %1297 = vdwg.mxu0
    %1298 = vmatpush.bf16.msra.mxu0 %v987
    %1299 = vmatpush.bf16.msra.mxu0 %v983
    %1300 = vmatpush.bf16.msra.mxu0 %v979
    %1301 = vmatpush.bf16.msra.mxu0 %v975
    %1302 = vmatpush.bf16.msra.mxu0 %v971
    %1303 = vmatpush.bf16.msra.mxu0 %v967
    %1304 = vmatpush.bf16.msra.mxu0 %v963
    %1305 = vmatpush.bf16.msra.mxu0 %v959
    %1306 = vmatmul.bf16.gmra.mxu0 %v265
    %v1307 = vpop.f32.mrf.mxu0
    %v1308 = vadd.f32 %v1295, %v1307
    %v1309 = vpop.f32.mrf.mxu0
    %1310 = vdwg.mxu0
    %1311 = vmatpush.bf16.msra.mxu0 %v1019
    %1312 = vmatpush.bf16.msra.mxu0 %v1015
    %1313 = vmatpush.bf16.msra.mxu0 %v1011
    %1314 = vmatpush.bf16.msra.mxu0 %v1007
    %1315 = vmatpush.bf16.msra.mxu0 %v1003
    %1316 = vmatpush.bf16.msra.mxu0 %v999
    %1317 = vmatpush.bf16.msra.mxu0 %v995
    %1318 = vmatpush.bf16.msra.mxu0 %v991
    %1319 = vmatmul.bf16.gmra.mxu0 %v266
    %v1320 = vpop.f32.mrf.mxu0
    %v1321 = vadd.f32 %v1308, %v1320
    %v1322 = vpop.f32.mrf.mxu0
    %1323 = vdwg.mxu0
    %1324 = vmatpush.bf16.msra.mxu0 %v1051
    %1325 = vmatpush.bf16.msra.mxu0 %v1047
    %1326 = vmatpush.bf16.msra.mxu0 %v1043
    %1327 = vmatpush.bf16.msra.mxu0 %v1039
    %1328 = vmatpush.bf16.msra.mxu0 %v1035
    %1329 = vmatpush.bf16.msra.mxu0 %v1031
    %1330 = vmatpush.bf16.msra.mxu0 %v1027
    %1331 = vmatpush.bf16.msra.mxu0 %v1023
    %1332 = vmatmul.bf16.gmra.mxu0 %v267
    %v1333 = vpop.f32.mrf.mxu0
    %v1334 = vadd.f32 %v1321, %v1333
    %v1335 = vpop.f32.mrf.mxu0
    %1336 = vdwg.mxu0
    %1337 = vmatpush.bf16.msra.mxu0 0
    %1338 = vmatpush.bf16.msra.mxu0 0
    %1339 = vmatpush.bf16.msra.mxu0 0
    %1340 = vmatpush.bf16.msra.mxu0 0
    %1341 = vmatpush.bf16.msra.mxu0 0
    %1342 = vmatpush.bf16.msra.mxu0 0
    %1343 = vmatpush.bf16.msra.mxu0 0
    %1344 = vmatpush.bf16.msra.mxu0 %v1055
    %1345 = vmatmul.bf16.gmra.mxu0 %v1257
    %v1346 = vpop.f32.mrf.mxu0
    %v1347 = vadd.f32 %v1334, %v1346
    %v1348 = vpop.f32.mrf.mxu0
    %1349 = vdwg.mxu0
    %1350 = vmatpush.bf16.msra.mxu0 %v892
    %1351 = vmatpush.bf16.msra.mxu0 %v888
    %1352 = vmatpush.bf16.msra.mxu0 %v884
    %1353 = vmatpush.bf16.msra.mxu0 %v880
    %1354 = vmatpush.bf16.msra.mxu0 %v876
    %1355 = vmatpush.bf16.msra.mxu0 %v872
    %1356 = vmatpush.bf16.msra.mxu0 %v868
    %1357 = vmatpush.bf16.msra.mxu0 %v864
    %1358 = vmatmul.bf16.gmra.mxu0 %v262
    %v1359 = vpop.f32.mrf.mxu0
    %v1360 = vadd.f32 %v244, %v1359
    %v1361 = vpop.f32.mrf.mxu0
    %1362 = vdwg.mxu0
    %1363 = vmatpush.bf16.msra.mxu0 %v924
    %1364 = vmatpush.bf16.msra.mxu0 %v920
    %1365 = vmatpush.bf16.msra.mxu0 %v916
    %1366 = vmatpush.bf16.msra.mxu0 %v912
    %1367 = vmatpush.bf16.msra.mxu0 %v908
    %1368 = vmatpush.bf16.msra.mxu0 %v904
    %1369 = vmatpush.bf16.msra.mxu0 %v900
    %1370 = vmatpush.bf16.msra.mxu0 %v896
    %1371 = vmatmul.bf16.gmra.mxu0 %v263
    %v1372 = vpop.f32.mrf.mxu0
    %v1373 = vadd.f32 %v1360, %v1372
    %v1374 = vpop.f32.mrf.mxu0
    %1375 = vdwg.mxu0
    %1376 = vmatpush.bf16.msra.mxu0 %v956
    %1377 = vmatpush.bf16.msra.mxu0 %v952
    %1378 = vmatpush.bf16.msra.mxu0 %v948
    %1379 = vmatpush.bf16.msra.mxu0 %v944
    %1380 = vmatpush.bf16.msra.mxu0 %v940
    %1381 = vmatpush.bf16.msra.mxu0 %v936
    %1382 = vmatpush.bf16.msra.mxu0 %v932
    %1383 = vmatpush.bf16.msra.mxu0 %v928
    %1384 = vmatmul.bf16.gmra.mxu0 %v264
    %v1385 = vpop.f32.mrf.mxu0
    %v1386 = vadd.f32 %v1373, %v1385
    %v1387 = vpop.f32.mrf.mxu0
    %1388 = vdwg.mxu0
    %1389 = vmatpush.bf16.msra.mxu0 %v988
    %1390 = vmatpush.bf16.msra.mxu0 %v984
    %1391 = vmatpush.bf16.msra.mxu0 %v980
    %1392 = vmatpush.bf16.msra.mxu0 %v976
    %1393 = vmatpush.bf16.msra.mxu0 %v972
    %1394 = vmatpush.bf16.msra.mxu0 %v968
    %1395 = vmatpush.bf16.msra.mxu0 %v964
    %1396 = vmatpush.bf16.msra.mxu0 %v960
    %1397 = vmatmul.bf16.gmra.mxu0 %v265
    %v1398 = vpop.f32.mrf.mxu0
    %v1399 = vadd.f32 %v1386, %v1398
    %v1400 = vpop.f32.mrf.mxu0
    %1401 = vdwg.mxu0
    %1402 = vmatpush.bf16.msra.mxu0 %v1020
    %1403 = vmatpush.bf16.msra.mxu0 %v1016
    %1404 = vmatpush.bf16.msra.mxu0 %v1012
    %1405 = vmatpush.bf16.msra.mxu0 %v1008
    %1406 = vmatpush.bf16.msra.mxu0 %v1004
    %1407 = vmatpush.bf16.msra.mxu0 %v1000
    %1408 = vmatpush.bf16.msra.mxu0 %v996
    %1409 = vmatpush.bf16.msra.mxu0 %v992
    %1410 = vmatmul.bf16.gmra.mxu0 %v266
    %v1411 = vpop.f32.mrf.mxu0
    %v1412 = vadd.f32 %v1399, %v1411
    %v1413 = vpop.f32.mrf.mxu0
    %1414 = vdwg.mxu0
    %1415 = vmatpush.bf16.msra.mxu0 %v1052
    %1416 = vmatpush.bf16.msra.mxu0 %v1048
    %1417 = vmatpush.bf16.msra.mxu0 %v1044
    %1418 = vmatpush.bf16.msra.mxu0 %v1040
    %1419 = vmatpush.bf16.msra.mxu0 %v1036
    %1420 = vmatpush.bf16.msra.mxu0 %v1032
    %1421 = vmatpush.bf16.msra.mxu0 %v1028
    %1422 = vmatpush.bf16.msra.mxu0 %v1024
    %1423 = vmatmul.bf16.gmra.mxu0 %v267
    %v1424 = vpop.f32.mrf.mxu0
    %v1425 = vadd.f32 %v1412, %v1424
    %v1426 = vpop.f32.mrf.mxu0
    %1427 = vdwg.mxu0
    %1428 = vmatpush.bf16.msra.mxu0 0
    %1429 = vmatpush.bf16.msra.mxu0 0
    %1430 = vmatpush.bf16.msra.mxu0 0
    %1431 = vmatpush.bf16.msra.mxu0 0
    %1432 = vmatpush.bf16.msra.mxu0 0
    %1433 = vmatpush.bf16.msra.mxu0 0
    %1434 = vmatpush.bf16.msra.mxu0 0
    %1435 = vmatpush.bf16.msra.mxu0 %v1056
    %1436 = vmatmul.bf16.gmra.mxu0 %v1257
    %v1437 = vpop.f32.mrf.mxu0
    %v1438 = vadd.f32 %v1425, %v1437
    %v1439 = vpop.f32.mrf.mxu0
    %1440 = vdwg.mxu0
    %1441 = vmatpush.bf16.msra.mxu0 %v893
    %1442 = vmatpush.bf16.msra.mxu0 %v889
    %1443 = vmatpush.bf16.msra.mxu0 %v885
    %1444 = vmatpush.bf16.msra.mxu0 %v881
    %1445 = vmatpush.bf16.msra.mxu0 %v877
    %1446 = vmatpush.bf16.msra.mxu0 %v873
    %1447 = vmatpush.bf16.msra.mxu0 %v869
    %1448 = vmatpush.bf16.msra.mxu0 %v865
    %1449 = vmatmul.bf16.gmra.mxu0 %v262
    %v1450 = vpop.f32.mrf.mxu0
    %v1451 = vadd.f32 %v245, %v1450
    %v1452 = vpop.f32.mrf.mxu0
    %1453 = vdwg.mxu0
    %1454 = vmatpush.bf16.msra.mxu0 %v925
    %1455 = vmatpush.bf16.msra.mxu0 %v921
    %1456 = vmatpush.bf16.msra.mxu0 %v917
    %1457 = vmatpush.bf16.msra.mxu0 %v913
    %1458 = vmatpush.bf16.msra.mxu0 %v909
    %1459 = vmatpush.bf16.msra.mxu0 %v905
    %1460 = vmatpush.bf16.msra.mxu0 %v901
    %1461 = vmatpush.bf16.msra.mxu0 %v897
    %1462 = vmatmul.bf16.gmra.mxu0 %v263
    %v1463 = vpop.f32.mrf.mxu0
    %v1464 = vadd.f32 %v1451, %v1463
    %v1465 = vpop.f32.mrf.mxu0
    %1466 = vdwg.mxu0
    %1467 = vmatpush.bf16.msra.mxu0 %v957
    %1468 = vmatpush.bf16.msra.mxu0 %v953
    %1469 = vmatpush.bf16.msra.mxu0 %v949
    %1470 = vmatpush.bf16.msra.mxu0 %v945
    %1471 = vmatpush.bf16.msra.mxu0 %v941
    %1472 = vmatpush.bf16.msra.mxu0 %v937
    %1473 = vmatpush.bf16.msra.mxu0 %v933
    %1474 = vmatpush.bf16.msra.mxu0 %v929
    %1475 = vmatmul.bf16.gmra.mxu0 %v264
    %v1476 = vpop.f32.mrf.mxu0
    %v1477 = vadd.f32 %v1464, %v1476
    %v1478 = vpop.f32.mrf.mxu0
    %1479 = vdwg.mxu0
    %1480 = vmatpush.bf16.msra.mxu0 %v989
    %1481 = vmatpush.bf16.msra.mxu0 %v985
    %1482 = vmatpush.bf16.msra.mxu0 %v981
    %1483 = vmatpush.bf16.msra.mxu0 %v977
    %1484 = vmatpush.bf16.msra.mxu0 %v973
    %1485 = vmatpush.bf16.msra.mxu0 %v969
    %1486 = vmatpush.bf16.msra.mxu0 %v965
    %1487 = vmatpush.bf16.msra.mxu0 %v961
    %1488 = vmatmul.bf16.gmra.mxu0 %v265
    %v1489 = vpop.f32.mrf.mxu0
    %v1490 = vadd.f32 %v1477, %v1489
    %v1491 = vpop.f32.mrf.mxu0
    %1492 = vdwg.mxu0
    %1493 = vmatpush.bf16.msra.mxu0 %v1021
    %1494 = vmatpush.bf16.msra.mxu0 %v1017
    %1495 = vmatpush.bf16.msra.mxu0 %v1013
    %1496 = vmatpush.bf16.msra.mxu0 %v1009
    %1497 = vmatpush.bf16.msra.mxu0 %v1005
    %1498 = vmatpush.bf16.msra.mxu0 %v1001
    %1499 = vmatpush.bf16.msra.mxu0 %v997
    %1500 = vmatpush.bf16.msra.mxu0 %v993
    %1501 = vmatmul.bf16.gmra.mxu0 %v266
    %v1502 = vpop.f32.mrf.mxu0
    %v1503 = vadd.f32 %v1490, %v1502
    %v1504 = vpop.f32.mrf.mxu0
    %1505 = vdwg.mxu0
    %1506 = vmatpush.bf16.msra.mxu0 %v1053
    %1507 = vmatpush.bf16.msra.mxu0 %v1049
    %1508 = vmatpush.bf16.msra.mxu0 %v1045
    %1509 = vmatpush.bf16.msra.mxu0 %v1041
    %1510 = vmatpush.bf16.msra.mxu0 %v1037
    %1511 = vmatpush.bf16.msra.mxu0 %v1033
    %1512 = vmatpush.bf16.msra.mxu0 %v1029
    %1513 = vmatpush.bf16.msra.mxu0 %v1025
    %1514 = vmatmul.bf16.gmra.mxu0 %v267
    %v1515 = vpop.f32.mrf.mxu0
    %v1516 = vadd.f32 %v1503, %v1515
    %v1517 = vpop.f32.mrf.mxu0
    %1518 = vdwg.mxu0
    %1519 = vmatpush.bf16.msra.mxu0 0
    %1520 = vmatpush.bf16.msra.mxu0 0
    %1521 = vmatpush.bf16.msra.mxu0 0
    %1522 = vmatpush.bf16.msra.mxu0 0
    %1523 = vmatpush.bf16.msra.mxu0 0
    %1524 = vmatpush.bf16.msra.mxu0 0
    %1525 = vmatpush.bf16.msra.mxu0 0
    %1526 = vmatpush.bf16.msra.mxu0 %v1057
    %1527 = vmatmul.bf16.gmra.mxu0 %v1257
    %v1528 = vpop.f32.mrf.mxu0
    %v1529 = vadd.f32 %v1516, %v1528
    %v1530 = vpop.f32.mrf.mxu0
    %1531 = vdwg.mxu0
    %1532 = vmatpush.bf16.msra.mxu0 %v894
    %1533 = vmatpush.bf16.msra.mxu0 %v890
    %1534 = vmatpush.bf16.msra.mxu0 %v886
    %1535 = vmatpush.bf16.msra.mxu0 %v882
    %1536 = vmatpush.bf16.msra.mxu0 %v878
    %1537 = vmatpush.bf16.msra.mxu0 %v874
    %1538 = vmatpush.bf16.msra.mxu0 %v870
    %1539 = vmatpush.bf16.msra.mxu0 %v866
    %1540 = vmatmul.bf16.gmra.mxu0 %v262
    %v1541 = vpop.f32.mrf.mxu0
    %v1542 = vadd.f32 %v246, %v1541
    %v1543 = vpop.f32.mrf.mxu0
    %1544 = vdwg.mxu0
    %1545 = vmatpush.bf16.msra.mxu0 %v926
    %1546 = vmatpush.bf16.msra.mxu0 %v922
    %1547 = vmatpush.bf16.msra.mxu0 %v918
    %1548 = vmatpush.bf16.msra.mxu0 %v914
    %1549 = vmatpush.bf16.msra.mxu0 %v910
    %1550 = vmatpush.bf16.msra.mxu0 %v906
    %1551 = vmatpush.bf16.msra.mxu0 %v902
    %1552 = vmatpush.bf16.msra.mxu0 %v898
    %1553 = vmatmul.bf16.gmra.mxu0 %v263
    %v1554 = vpop.f32.mrf.mxu0
    %v1555 = vadd.f32 %v1542, %v1554
    %v1556 = vpop.f32.mrf.mxu0
    %1557 = vdwg.mxu0
    %1558 = vmatpush.bf16.msra.mxu0 %v958
    %1559 = vmatpush.bf16.msra.mxu0 %v954
    %1560 = vmatpush.bf16.msra.mxu0 %v950
    %1561 = vmatpush.bf16.msra.mxu0 %v946
    %1562 = vmatpush.bf16.msra.mxu0 %v942
    %1563 = vmatpush.bf16.msra.mxu0 %v938
    %1564 = vmatpush.bf16.msra.mxu0 %v934
    %1565 = vmatpush.bf16.msra.mxu0 %v930
    %1566 = vmatmul.bf16.gmra.mxu0 %v264
    %v1567 = vpop.f32.mrf.mxu0
    %v1568 = vadd.f32 %v1555, %v1567
    %v1569 = vpop.f32.mrf.mxu0
    %1570 = vdwg.mxu0
    %1571 = vmatpush.bf16.msra.mxu0 %v990
    %1572 = vmatpush.bf16.msra.mxu0 %v986
    %1573 = vmatpush.bf16.msra.mxu0 %v982
    %1574 = vmatpush.bf16.msra.mxu0 %v978
    %1575 = vmatpush.bf16.msra.mxu0 %v974
    %1576 = vmatpush.bf16.msra.mxu0 %v970
    %1577 = vmatpush.bf16.msra.mxu0 %v966
    %1578 = vmatpush.bf16.msra.mxu0 %v962
    %1579 = vmatmul.bf16.gmra.mxu0 %v265
    %v1580 = vpop.f32.mrf.mxu0
    %v1581 = vadd.f32 %v1568, %v1580
    %v1582 = vpop.f32.mrf.mxu0
    %1583 = vdwg.mxu0
    %1584 = vmatpush.bf16.msra.mxu0 %v1022
    %1585 = vmatpush.bf16.msra.mxu0 %v1018
    %1586 = vmatpush.bf16.msra.mxu0 %v1014
    %1587 = vmatpush.bf16.msra.mxu0 %v1010
    %1588 = vmatpush.bf16.msra.mxu0 %v1006
    %1589 = vmatpush.bf16.msra.mxu0 %v1002
    %1590 = vmatpush.bf16.msra.mxu0 %v998
    %1591 = vmatpush.bf16.msra.mxu0 %v994
    %1592 = vmatmul.bf16.gmra.mxu0 %v266
    %v1593 = vpop.f32.mrf.mxu0
    %v1594 = vadd.f32 %v1581, %v1593
    %v1595 = vpop.f32.mrf.mxu0
    %1596 = vdwg.mxu0
    %1597 = vmatpush.bf16.msra.mxu0 %v1054
    %1598 = vmatpush.bf16.msra.mxu0 %v1050
    %1599 = vmatpush.bf16.msra.mxu0 %v1046
    %1600 = vmatpush.bf16.msra.mxu0 %v1042
    %1601 = vmatpush.bf16.msra.mxu0 %v1038
    %1602 = vmatpush.bf16.msra.mxu0 %v1034
    %1603 = vmatpush.bf16.msra.mxu0 %v1030
    %1604 = vmatpush.bf16.msra.mxu0 %v1026
    %1605 = vmatmul.bf16.gmra.mxu0 %v267
    %v1606 = vpop.f32.mrf.mxu0
    %v1607 = vadd.f32 %v1594, %v1606
    %v1608 = vpop.f32.mrf.mxu0
    %1609 = vdwg.mxu0
    %1610 = vmatpush.bf16.msra.mxu0 0
    %1611 = vmatpush.bf16.msra.mxu0 0
    %1612 = vmatpush.bf16.msra.mxu0 0
    %1613 = vmatpush.bf16.msra.mxu0 0
    %1614 = vmatpush.bf16.msra.mxu0 0
    %1615 = vmatpush.bf16.msra.mxu0 0
    %1616 = vmatpush.bf16.msra.mxu0 0
    %1617 = vmatpush.bf16.msra.mxu0 %v1058
    %1618 = vmatmul.bf16.gmra.mxu0 %v1257
    %v1619 = vpop.f32.mrf.mxu0
    %v1620 = vadd.f32 %v1607, %v1619
    %v1621 = vpop.f32.mrf.mxu0
    %1622 = vdwg.mxu0
    %v1623 = vmax.f32 %v1347, 0.0
    %v1624 = vmax.f32 %v1438, 0.0
    %v1625 = vmax.f32 %v1529, 0.0
    %v1626 = vmax.f32 %v1620, 0.0
    %v1627 = vpack.c.bf16 %v1623, %v1623
    %v1628 = vpack.c.bf16 %v1624, %v1624
    %v1629 = vpack.c.bf16 %v1625, %v1625
    %v1630 = vpack.c.bf16 %v1626, %v1626
    %v1631 = vld [vmem:[%s4] sm:$0xff]
    %v1632 = vld [vmem:[%s4 + $0x8] sm:$0xff]
    %v1633 = vld [vmem:[%s4 + $0x10] sm:$0xff]
    %v1634 = vld [vmem:[%s4 + $0x18] sm:$0xff]
    %v1635 = vld [vmem:[%s4 + $0x20] sm:$0xff]
    %v1636 = vld [vmem:[%s4 + $0x28] sm:$0xff]
    %v1637 = vld [vmem:[%s4 + $0x30] sm:$0xff]
    %v1638 = vld [vmem:[%s4 + $0x38] sm:$0xff]
    %v1639 = vld [vmem:[%s4 + $0x40] sm:$0xff]
    %v1640 = vld [vmem:[%s4 + $0x48] sm:$0xff]
    %v1641 = vld [vmem:[%s4 + $0x50] sm:$0xff]
    %v1642 = vld [vmem:[%s4 + $0x58] sm:$0xff]
    %v1643 = vld [vmem:[%s4 + $0x60] sm:$0xff]
    %v1644 = vld [vmem:[%s4 + $0x68] sm:$0xff]
    %v1645 = vld [vmem:[%s4 + $0x70] sm:$0xff]
    %v1646 = vld [vmem:[%s4 + $0x78] sm:$0xff]
    %v1647 = vld [vmem:[%s4 + $0x80] sm:$0xff]
    %v1648 = vld [vmem:[%s4 + $0x88] sm:$0xff]
    %v1649 = vld [vmem:[%s4 + $0x90] sm:$0xff]
    %v1650 = vld [vmem:[%s4 + $0x98] sm:$0xff]
    %v1651 = vld [vmem:[%s4 + $0xa0] sm:$0xff]
    %v1652 = vld [vmem:[%s4 + $0xa8] sm:$0xff]
    %v1653 = vld [vmem:[%s4 + $0xb0] sm:$0xff]
    %v1654 = vld [vmem:[%s4 + $0xb8] sm:$0xff]
    %v1655 = vld [vmem:[%s4 + $0xc0] sm:$0xff]
    %v1656 = vld [vmem:[%s4 + $0xc8] sm:$0xff]
    %v1657 = vld [vmem:[%s4 + $0xd0] sm:$0xff]
    %v1658 = vld [vmem:[%s4 + $0xd8] sm:$0xff]
    %v1659 = vld [vmem:[%s4 + $0xe0] sm:$0xff]
    %v1660 = vld [vmem:[%s4 + $0xe8] sm:$0xff]
    %v1661 = vld [vmem:[%s4 + $0xf0] sm:$0xff]
    %v1662 = vld [vmem:[%s4 + $0xf8] sm:$0xff]
    %v1663 = vld [vmem:[%s4 + $0x100] sm:$0xff]
    %v1664 = vld [vmem:[%s4 + $0x108] sm:$0xff]
    %v1665 = vld [vmem:[%s4 + $0x110] sm:$0xff]
    %v1666 = vld [vmem:[%s4 + $0x118] sm:$0xff]
    %v1667 = vld [vmem:[%s4 + $0x120] sm:$0xff]
    %v1668 = vld [vmem:[%s4 + $0x128] sm:$0xff]
    %v1669 = vld [vmem:[%s4 + $0x130] sm:$0xff]
    %v1670 = vld [vmem:[%s4 + $0x138] sm:$0xff]
    %v1671 = vld [vmem:[%s4 + $0x140] sm:$0xff]
    %v1672 = vld [vmem:[%s4 + $0x148] sm:$0xff]
    %v1673 = vld [vmem:[%s4 + $0x150] sm:$0xff]
    %v1674 = vld [vmem:[%s4 + $0x158] sm:$0xff]
    %v1675 = vld [vmem:[%s4 + $0x160] sm:$0xff]
    %v1676 = vld [vmem:[%s4 + $0x168] sm:$0xff]
    %v1677 = vld [vmem:[%s4 + $0x170] sm:$0xff]
    %v1678 = vld [vmem:[%s4 + $0x178] sm:$0xff]
    %v1679 = vld [vmem:[%s4 + $0x180] sm:$0xff]
    %v1680 = vld [vmem:[%s4 + $0x188] sm:$0xff]
    %v1681 = vld [vmem:[%s4 + $0x190] sm:$0xff]
    %v1682 = vld [vmem:[%s4 + $0x198] sm:$0xff]
    %v1683 = vld [vmem:[%s4 + $0x1a0] sm:$0xff]
    %v1684 = vld [vmem:[%s4 + $0x1a8] sm:$0xff]
    %v1685 = vld [vmem:[%s4 + $0x1b0] sm:$0xff]
    %v1686 = vld [vmem:[%s4 + $0x1b8] sm:$0xff]
    %v1687 = vld [vmem:[%s4 + $0x1c0] sm:$0xff]
    %v1688 = vld [vmem:[%s4 + $0x1c8] sm:$0xff]
    %v1689 = vld [vmem:[%s4 + $0x1d0] sm:$0xff]
    %v1690 = vld [vmem:[%s4 + $0x1d8] sm:$0xff]
    %v1691 = vld [vmem:[%s4 + $0x1e0] sm:$0xff]
    %v1692 = vld [vmem:[%s4 + $0x1e8] sm:$0xff]
    %v1693 = vld [vmem:[%s4 + $0x1f0] sm:$0xff]
    %v1694 = vld [vmem:[%s4 + $0x1f8] sm:$0xff]
    %v1695 = vld [vmem:[%s5] sm:$0x3]
    %v1697 = vperm.slane %v1695, 0
    %v1698 = vperm.slane %v1695, 1
    %v1765 = vunpack.c.l.b16 %v1631
    %v1766 = vunpack.c.h.b16 %v1631
    %v1767 = vunpack.c.l.b16 %v1632
    %v1768 = vunpack.c.h.b16 %v1632
    %v1769 = vunpack.c.l.b16 %v1633
    %v1770 = vunpack.c.h.b16 %v1633
    %v1771 = vunpack.c.l.b16 %v1634
    %v1772 = vunpack.c.h.b16 %v1634
    %v1773 = vunpack.c.l.b16 %v1635
    %v1774 = vunpack.c.h.b16 %v1635
    %v1775 = vunpack.c.l.b16 %v1636
    %v1776 = vunpack.c.h.b16 %v1636
    %v1777 = vunpack.c.l.b16 %v1637
    %v1778 = vunpack.c.h.b16 %v1637
    %v1779 = vunpack.c.l.b16 %v1638
    %v1780 = vunpack.c.h.b16 %v1638
    %v1781 = vunpack.c.l.b16 %v1639
    %v1782 = vunpack.c.h.b16 %v1639
    %v1783 = vunpack.c.l.b16 %v1640
    %v1784 = vunpack.c.h.b16 %v1640
    %v1785 = vunpack.c.l.b16 %v1641
    %v1786 = vunpack.c.h.b16 %v1641
    %v1787 = vunpack.c.l.b16 %v1642
    %v1788 = vunpack.c.h.b16 %v1642
    %v1789 = vunpack.c.l.b16 %v1643
    %v1790 = vunpack.c.h.b16 %v1643
    %v1791 = vunpack.c.l.b16 %v1644
    %v1792 = vunpack.c.h.b16 %v1644
    %v1793 = vunpack.c.l.b16 %v1645
    %v1794 = vunpack.c.h.b16 %v1645
    %v1795 = vunpack.c.l.b16 %v1646
    %v1796 = vunpack.c.h.b16 %v1646
    %v1797 = vunpack.c.l.b16 %v1647
    %v1798 = vunpack.c.h.b16 %v1647
    %v1799 = vunpack.c.l.b16 %v1648
    %v1800 = vunpack.c.h.b16 %v1648
    %v1801 = vunpack.c.l.b16 %v1649
    %v1802 = vunpack.c.h.b16 %v1649
    %v1803 = vunpack.c.l.b16 %v1650
    %v1804 = vunpack.c.h.b16 %v1650
    %v1805 = vunpack.c.l.b16 %v1651
    %v1806 = vunpack.c.h.b16 %v1651
    %v1807 = vunpack.c.l.b16 %v1652
    %v1808 = vunpack.c.h.b16 %v1652
    %v1809 = vunpack.c.l.b16 %v1653
    %v1810 = vunpack.c.h.b16 %v1653
    %v1811 = vunpack.c.l.b16 %v1654
    %v1812 = vunpack.c.h.b16 %v1654
    %v1813 = vunpack.c.l.b16 %v1655
    %v1814 = vunpack.c.h.b16 %v1655
    %v1815 = vunpack.c.l.b16 %v1656
    %v1816 = vunpack.c.h.b16 %v1656
    %v1817 = vunpack.c.l.b16 %v1657
    %v1818 = vunpack.c.h.b16 %v1657
    %v1819 = vunpack.c.l.b16 %v1658
    %v1820 = vunpack.c.h.b16 %v1658
    %v1821 = vunpack.c.l.b16 %v1659
    %v1822 = vunpack.c.h.b16 %v1659
    %v1823 = vunpack.c.l.b16 %v1660
    %v1824 = vunpack.c.h.b16 %v1660
    %v1825 = vunpack.c.l.b16 %v1661
    %v1826 = vunpack.c.h.b16 %v1661
    %v1827 = vunpack.c.l.b16 %v1662
    %v1828 = vunpack.c.h.b16 %v1662
    %v1829 = vunpack.c.l.b16 %v1663
    %v1830 = vunpack.c.h.b16 %v1663
    %v1831 = vunpack.c.l.b16 %v1664
    %v1832 = vunpack.c.h.b16 %v1664
    %v1833 = vunpack.c.l.b16 %v1665
    %v1834 = vunpack.c.h.b16 %v1665
    %v1835 = vunpack.c.l.b16 %v1666
    %v1836 = vunpack.c.h.b16 %v1666
    %v1837 = vunpack.c.l.b16 %v1667
    %v1838 = vunpack.c.h.b16 %v1667
    %v1839 = vunpack.c.l.b16 %v1668
    %v1840 = vunpack.c.h.b16 %v1668
    %v1841 = vunpack.c.l.b16 %v1669
    %v1842 = vunpack.c.h.b16 %v1669
    %v1843 = vunpack.c.l.b16 %v1670
    %v1844 = vunpack.c.h.b16 %v1670
    %v1845 = vunpack.c.l.b16 %v1671
    %v1846 = vunpack.c.h.b16 %v1671
    %v1847 = vunpack.c.l.b16 %v1672
    %v1848 = vunpack.c.h.b16 %v1672
    %v1849 = vunpack.c.l.b16 %v1673
    %v1850 = vunpack.c.h.b16 %v1673
    %v1851 = vunpack.c.l.b16 %v1674
    %v1852 = vunpack.c.h.b16 %v1674
    %v1853 = vunpack.c.l.b16 %v1675
    %v1854 = vunpack.c.h.b16 %v1675
    %v1855 = vunpack.c.l.b16 %v1676
    %v1856 = vunpack.c.h.b16 %v1676
    %v1857 = vunpack.c.l.b16 %v1677
    %v1858 = vunpack.c.h.b16 %v1677
    %v1859 = vunpack.c.l.b16 %v1678
    %v1860 = vunpack.c.h.b16 %v1678
    %v1861 = vunpack.c.l.b16 %v1679
    %v1862 = vunpack.c.h.b16 %v1679
    %v1863 = vunpack.c.l.b16 %v1680
    %v1864 = vunpack.c.h.b16 %v1680
    %v1865 = vunpack.c.l.b16 %v1681
    %v1866 = vunpack.c.h.b16 %v1681
    %v1867 = vunpack.c.l.b16 %v1682
    %v1868 = vunpack.c.h.b16 %v1682
    %v1869 = vunpack.c.l.b16 %v1683
    %v1870 = vunpack.c.h.b16 %v1683
    %v1871 = vunpack.c.l.b16 %v1684
    %v1872 = vunpack.c.h.b16 %v1684
    %v1873 = vunpack.c.l.b16 %v1685
    %v1874 = vunpack.c.h.b16 %v1685
    %v1875 = vunpack.c.l.b16 %v1686
    %v1876 = vunpack.c.h.b16 %v1686
    %v1877 = vunpack.c.l.b16 %v1687
    %v1878 = vunpack.c.h.b16 %v1687
    %v1879 = vunpack.c.l.b16 %v1688
    %v1880 = vunpack.c.h.b16 %v1688
    %v1881 = vunpack.c.l.b16 %v1689
    %v1882 = vunpack.c.h.b16 %v1689
    %v1883 = vunpack.c.l.b16 %v1690
    %v1884 = vunpack.c.h.b16 %v1690
    %v1885 = vunpack.c.l.b16 %v1691
    %v1886 = vunpack.c.h.b16 %v1691
    %v1887 = vunpack.c.l.b16 %v1692
    %v1888 = vunpack.c.h.b16 %v1692
    %v1889 = vunpack.c.l.b16 %v1693
    %v1890 = vunpack.c.h.b16 %v1693
    %v1891 = vunpack.c.l.b16 %v1694
    %v1892 = vunpack.c.h.b16 %v1694
    %v1893 = vpack.c.b16 %v1767, %v1765
    %v1894 = vpack.c.b16 %v1768, %v1766
    %v1895 = vpack.c.b16 %v1771, %v1769
    %v1896 = vpack.c.b16 %v1772, %v1770
    %v1897 = vpack.c.b16 %v1775, %v1773
    %v1898 = vpack.c.b16 %v1776, %v1774
    %v1899 = vpack.c.b16 %v1779, %v1777
    %v1900 = vpack.c.b16 %v1780, %v1778
    %v1901 = vpack.c.b16 %v1783, %v1781
    %v1902 = vpack.c.b16 %v1784, %v1782
    %v1903 = vpack.c.b16 %v1787, %v1785
    %v1904 = vpack.c.b16 %v1788, %v1786
    %v1905 = vpack.c.b16 %v1791, %v1789
    %v1906 = vpack.c.b16 %v1792, %v1790
    %v1907 = vpack.c.b16 %v1795, %v1793
    %v1908 = vpack.c.b16 %v1796, %v1794
    %v1909 = vpack.c.b16 %v1799, %v1797
    %v1910 = vpack.c.b16 %v1800, %v1798
    %v1911 = vpack.c.b16 %v1803, %v1801
    %v1912 = vpack.c.b16 %v1804, %v1802
    %v1913 = vpack.c.b16 %v1807, %v1805
    %v1914 = vpack.c.b16 %v1808, %v1806
    %v1915 = vpack.c.b16 %v1811, %v1809
    %v1916 = vpack.c.b16 %v1812, %v1810
    %v1917 = vpack.c.b16 %v1815, %v1813
    %v1918 = vpack.c.b16 %v1816, %v1814
    %v1919 = vpack.c.b16 %v1819, %v1817
    %v1920 = vpack.c.b16 %v1820, %v1818
    %v1921 = vpack.c.b16 %v1823, %v1821
    %v1922 = vpack.c.b16 %v1824, %v1822
    %v1923 = vpack.c.b16 %v1827, %v1825
    %v1924 = vpack.c.b16 %v1828, %v1826
    %v1925 = vpack.c.b16 %v1831, %v1829
    %v1926 = vpack.c.b16 %v1832, %v1830
    %v1927 = vpack.c.b16 %v1835, %v1833
    %v1928 = vpack.c.b16 %v1836, %v1834
    %v1929 = vpack.c.b16 %v1839, %v1837
    %v1930 = vpack.c.b16 %v1840, %v1838
    %v1931 = vpack.c.b16 %v1843, %v1841
    %v1932 = vpack.c.b16 %v1844, %v1842
    %v1933 = vpack.c.b16 %v1847, %v1845
    %v1934 = vpack.c.b16 %v1848, %v1846
    %v1935 = vpack.c.b16 %v1851, %v1849
    %v1936 = vpack.c.b16 %v1852, %v1850
    %v1937 = vpack.c.b16 %v1855, %v1853
    %v1938 = vpack.c.b16 %v1856, %v1854
    %v1939 = vpack.c.b16 %v1859, %v1857
    %v1940 = vpack.c.b16 %v1860, %v1858
    %v1941 = vpack.c.b16 %v1863, %v1861
    %v1942 = vpack.c.b16 %v1864, %v1862
    %v1943 = vpack.c.b16 %v1867, %v1865
    %v1944 = vpack.c.b16 %v1868, %v1866
    %v1945 = vpack.c.b16 %v1871, %v1869
    %v1946 = vpack.c.b16 %v1872, %v1870
    %v1947 = vpack.c.b16 %v1875, %v1873
    %v1948 = vpack.c.b16 %v1876, %v1874
    %v1949 = vpack.c.b16 %v1879, %v1877
    %v1950 = vpack.c.b16 %v1880, %v1878
    %v1951 = vpack.c.b16 %v1883, %v1881
    %v1952 = vpack.c.b16 %v1884, %v1882
    %v1953 = vpack.c.b16 %v1887, %v1885
    %v1954 = vpack.c.b16 %v1888, %v1886
    %v1955 = vpack.c.b16 %v1891, %v1889
    %v1956 = vpack.c.b16 %v1892, %v1890
    %2021 = vmatpush.bf16.msra.mxu0 %v1907
    %2022 = vmatpush.bf16.msra.mxu0 %v1905
    %2023 = vmatpush.bf16.msra.mxu0 %v1903
    %2024 = vmatpush.bf16.msra.mxu0 %v1901
    %2025 = vmatpush.bf16.msra.mxu0 %v1899
    %2026 = vmatpush.bf16.msra.mxu0 %v1897
    %2027 = vmatpush.bf16.msra.mxu0 %v1895
    %2028 = vmatpush.bf16.msra.mxu0 %v1893
    %2029 = vmatmul.bf16.gmra.mxu0 %v1627
    %v2030 = vpop.f32.mrf.mxu0
    %v2031 = vadd.f32 %v1697, %v2030
    %v2032 = vpop.f32.mrf.mxu0
    %2033 = vdwg.mxu0
    %2034 = vmatpush.bf16.msra.mxu0 %v1923
    %2035 = vmatpush.bf16.msra.mxu0 %v1921
    %2036 = vmatpush.bf16.msra.mxu0 %v1919
    %2037 = vmatpush.bf16.msra.mxu0 %v1917
    %2038 = vmatpush.bf16.msra.mxu0 %v1915
    %2039 = vmatpush.bf16.msra.mxu0 %v1913
    %2040 = vmatpush.bf16.msra.mxu0 %v1911
    %2041 = vmatpush.bf16.msra.mxu0 %v1909
    %2042 = vmatmul.bf16.gmra.mxu0 %v1628
    %v2043 = vpop.f32.mrf.mxu0
    %v2044 = vadd.f32 %v2031, %v2043
    %v2045 = vpop.f32.mrf.mxu0
    %2046 = vdwg.mxu0
    %2047 = vmatpush.bf16.msra.mxu0 %v1939
    %2048 = vmatpush.bf16.msra.mxu0 %v1937
    %2049 = vmatpush.bf16.msra.mxu0 %v1935
    %2050 = vmatpush.bf16.msra.mxu0 %v1933
    %2051 = vmatpush.bf16.msra.mxu0 %v1931
    %2052 = vmatpush.bf16.msra.mxu0 %v1929
    %2053 = vmatpush.bf16.msra.mxu0 %v1927
    %2054 = vmatpush.bf16.msra.mxu0 %v1925
    %2055 = vmatmul.bf16.gmra.mxu0 %v1629
    %v2056 = vpop.f32.mrf.mxu0
    %v2057 = vadd.f32 %v2044, %v2056
    %v2058 = vpop.f32.mrf.mxu0
    %2059 = vdwg.mxu0
    %2060 = vmatpush.bf16.msra.mxu0 %v1955
    %2061 = vmatpush.bf16.msra.mxu0 %v1953
    %2062 = vmatpush.bf16.msra.mxu0 %v1951
    %2063 = vmatpush.bf16.msra.mxu0 %v1949
    %2064 = vmatpush.bf16.msra.mxu0 %v1947
    %2065 = vmatpush.bf16.msra.mxu0 %v1945
    %2066 = vmatpush.bf16.msra.mxu0 %v1943
    %2067 = vmatpush.bf16.msra.mxu0 %v1941
    %2068 = vmatmul.bf16.gmra.mxu0 %v1630
    %v2069 = vpop.f32.mrf.mxu0
    %v2070 = vadd.f32 %v2057, %v2069
    %v2071 = vpop.f32.mrf.mxu0
    %2072 = vdwg.mxu0
    %2073 = vmatpush.bf16.msra.mxu0 %v1908
    %2074 = vmatpush.bf16.msra.mxu0 %v1906
    %2075 = vmatpush.bf16.msra.mxu0 %v1904
    %2076 = vmatpush.bf16.msra.mxu0 %v1902
    %2077 = vmatpush.bf16.msra.mxu0 %v1900
    %2078 = vmatpush.bf16.msra.mxu0 %v1898
    %2079 = vmatpush.bf16.msra.mxu0 %v1896
    %2080 = vmatpush.bf16.msra.mxu0 %v1894
    %2081 = vmatmul.bf16.gmra.mxu0 %v1627
    %v2082 = vpop.f32.mrf.mxu0
    %v2083 = vadd.f32 %v1698, %v2082
    %v2084 = vpop.f32.mrf.mxu0
    %2085 = vdwg.mxu0
    %2086 = vmatpush.bf16.msra.mxu0 %v1924
    %2087 = vmatpush.bf16.msra.mxu0 %v1922
    %2088 = vmatpush.bf16.msra.mxu0 %v1920
    %2089 = vmatpush.bf16.msra.mxu0 %v1918
    %2090 = vmatpush.bf16.msra.mxu0 %v1916
    %2091 = vmatpush.bf16.msra.mxu0 %v1914
    %2092 = vmatpush.bf16.msra.mxu0 %v1912
    %2093 = vmatpush.bf16.msra.mxu0 %v1910
    %2094 = vmatmul.bf16.gmra.mxu0 %v1628
    %v2095 = vpop.f32.mrf.mxu0
    %v2096 = vadd.f32 %v2083, %v2095
    %v2097 = vpop.f32.mrf.mxu0
    %2098 = vdwg.mxu0
    %2099 = vmatpush.bf16.msra.mxu0 %v1940
    %2100 = vmatpush.bf16.msra.mxu0 %v1938
    %2101 = vmatpush.bf16.msra.mxu0 %v1936
    %2102 = vmatpush.bf16.msra.mxu0 %v1934
    %2103 = vmatpush.bf16.msra.mxu0 %v1932
    %2104 = vmatpush.bf16.msra.mxu0 %v1930
    %2105 = vmatpush.bf16.msra.mxu0 %v1928
    %2106 = vmatpush.bf16.msra.mxu0 %v1926
    %2107 = vmatmul.bf16.gmra.mxu0 %v1629
    %v2108 = vpop.f32.mrf.mxu0
    %v2109 = vadd.f32 %v2096, %v2108
    %v2110 = vpop.f32.mrf.mxu0
    %2111 = vdwg.mxu0
    %2112 = vmatpush.bf16.msra.mxu0 %v1956
    %2113 = vmatpush.bf16.msra.mxu0 %v1954
    %2114 = vmatpush.bf16.msra.mxu0 %v1952
    %2115 = vmatpush.bf16.msra.mxu0 %v1950
    %2116 = vmatpush.bf16.msra.mxu0 %v1948
    %2117 = vmatpush.bf16.msra.mxu0 %v1946
    %2118 = vmatpush.bf16.msra.mxu0 %v1944
    %2119 = vmatpush.bf16.msra.mxu0 %v1942
    %2120 = vmatmul.bf16.gmra.mxu0 %v1630
    %v2121 = vpop.f32.mrf.mxu0
    %v2122 = vadd.f32 %v2109, %v2121
    %v2123 = vpop.f32.mrf.mxu0
    %2124 = vdwg.mxu0
    %2125 = vst [vmem:[#allocation2] sm:$0xff] 0.0
    %v2126 = vld [vmem:[%s1] sm:$0xff]
    %2127 = vst.msk [vmem:[#allocation2] sm:$0xff] %vm1255, %v2126
    %v2128 = vld [vmem:[#allocation2] sm:$0xff]
    %v2129 = vmul.f32 %v2122, 0.5
    %v2130 = vmul.f32 %v2129, 1.442695
    %v2131 = vpow.pop %v2130
    %v2132 = vmul.f32 %v2128, %v2131
    %v2133 = vadd.f32 %v2070, %v2132
    %v2134 = vpack.c.bf16 %v2133, %v2133
    %v2135 = vld [vmem:[%s6] sm:$0xff]
    %v2136 = vld [vmem:[%s6 + $0x8] sm:$0xff]
    %v2137 = vld [vmem:[%s6 + $0x10] sm:$0xff]
    %v2138 = vld [vmem:[%s6 + $0x18] sm:$0xff]
    %v2139 = vld [vmem:[%s6 + $0x20] sm:$0xff]
    %v2140 = vld [vmem:[%s6 + $0x28] sm:$0xff]
    %v2141 = vld [vmem:[%s6 + $0x30] sm:$0xff]
    %v2142 = vld [vmem:[%s6 + $0x38] sm:$0xff]
    %v2143 = vld [vmem:[%s6 + $0x40] sm:$0xff]
    %v2144 = vld [vmem:[%s6 + $0x48] sm:$0xff]
    %v2145 = vld [vmem:[%s6 + $0x50] sm:$0xff]
    %v2146 = vld [vmem:[%s6 + $0x58] sm:$0xff]
    %v2147 = vld [vmem:[%s6 + $0x60] sm:$0xff]
    %v2148 = vld [vmem:[%s6 + $0x68] sm:$0xff]
    %v2149 = vld [vmem:[%s6 + $0x70] sm:$0xff]
    %v2150 = vld [vmem:[%s6 + $0x78] sm:$0xff]
    %v2151 = vld [vmem:[%s6 + $0x80] sm:$0xff]
    %v2152 = vld [vmem:[%s6 + $0x88] sm:$0xff]
    %v2153 = vld [vmem:[%s6 + $0x90] sm:$0xff]
    %v2154 = vld [vmem:[%s6 + $0x98] sm:$0xff]
    %v2155 = vld [vmem:[%s6 + $0xa0] sm:$0xff]
    %v2156 = vld [vmem:[%s6 + $0xa8] sm:$0xff]
    %v2157 = vld [vmem:[%s6 + $0xb0] sm:$0xff]
    %v2158 = vld [vmem:[%s6 + $0xb8] sm:$0xff]
    %v2159 = vld [vmem:[%s6 + $0xc0] sm:$0xff]
    %v2160 = vld [vmem:[%s6 + $0xc8] sm:$0xff]
    %v2161 = vld [vmem:[%s6 + $0xd0] sm:$0xff]
    %v2162 = vld [vmem:[%s6 + $0xd8] sm:$0xff]
    %v2163 = vld [vmem:[%s6 + $0xe0] sm:$0xff]
    %v2164 = vld [vmem:[%s6 + $0xe8] sm:$0xff]
    %v2165 = vld [vmem:[%s6 + $0xf0] sm:$0xff]
    %v2166 = vld [vmem:[%s6 + $0xf8] sm:$0xff]
    %v2167 = vld [vmem:[%s7] sm:$0xf]
    %v2169 = vperm.slane %v2167, 0
    %v2170 = vperm.slane %v2167, 1
    %v2171 = vperm.slane %v2167, 2
    %v2172 = vperm.slane %v2167, 3
    %v2209 = vunpack.c.l.b16 %v2135
    %v2210 = vunpack.c.h.b16 %v2135
    %v2211 = vunpack.c.l.b16 %v2136
    %v2212 = vunpack.c.h.b16 %v2136
    %v2213 = vunpack.c.l.b16 %v2137
    %v2214 = vunpack.c.h.b16 %v2137
    %v2215 = vunpack.c.l.b16 %v2138
    %v2216 = vunpack.c.h.b16 %v2138
    %v2217 = vunpack.c.l.b16 %v2139
    %v2218 = vunpack.c.h.b16 %v2139
    %v2219 = vunpack.c.l.b16 %v2140
    %v2220 = vunpack.c.h.b16 %v2140
    %v2221 = vunpack.c.l.b16 %v2141
    %v2222 = vunpack.c.h.b16 %v2141
    %v2223 = vunpack.c.l.b16 %v2142
    %v2224 = vunpack.c.h.b16 %v2142
    %v2225 = vunpack.c.l.b16 %v2143
    %v2226 = vunpack.c.h.b16 %v2143
    %v2227 = vunpack.c.l.b16 %v2144
    %v2228 = vunpack.c.h.b16 %v2144
    %v2229 = vunpack.c.l.b16 %v2145
    %v2230 = vunpack.c.h.b16 %v2145
    %v2231 = vunpack.c.l.b16 %v2146
    %v2232 = vunpack.c.h.b16 %v2146
    %v2233 = vunpack.c.l.b16 %v2147
    %v2234 = vunpack.c.h.b16 %v2147
    %v2235 = vunpack.c.l.b16 %v2148
    %v2236 = vunpack.c.h.b16 %v2148
    %v2237 = vunpack.c.l.b16 %v2149
    %v2238 = vunpack.c.h.b16 %v2149
    %v2239 = vunpack.c.l.b16 %v2150
    %v2240 = vunpack.c.h.b16 %v2150
    %v2241 = vunpack.c.l.b16 %v2151
    %v2242 = vunpack.c.h.b16 %v2151
    %v2243 = vunpack.c.l.b16 %v2152
    %v2244 = vunpack.c.h.b16 %v2152
    %v2245 = vunpack.c.l.b16 %v2153
    %v2246 = vunpack.c.h.b16 %v2153
    %v2247 = vunpack.c.l.b16 %v2154
    %v2248 = vunpack.c.h.b16 %v2154
    %v2249 = vunpack.c.l.b16 %v2155
    %v2250 = vunpack.c.h.b16 %v2155
    %v2251 = vunpack.c.l.b16 %v2156
    %v2252 = vunpack.c.h.b16 %v2156
    %v2253 = vunpack.c.l.b16 %v2157
    %v2254 = vunpack.c.h.b16 %v2157
    %v2255 = vunpack.c.l.b16 %v2158
    %v2256 = vunpack.c.h.b16 %v2158
    %v2257 = vunpack.c.l.b16 %v2159
    %v2258 = vunpack.c.h.b16 %v2159
    %v2259 = vunpack.c.l.b16 %v2160
    %v2260 = vunpack.c.h.b16 %v2160
    %v2261 = vunpack.c.l.b16 %v2161
    %v2262 = vunpack.c.h.b16 %v2161
    %v2263 = vunpack.c.l.b16 %v2162
    %v2264 = vunpack.c.h.b16 %v2162
    %v2265 = vunpack.c.l.b16 %v2163
    %v2266 = vunpack.c.h.b16 %v2163
    %v2267 = vunpack.c.l.b16 %v2164
    %v2268 = vunpack.c.h.b16 %v2164
    %v2269 = vunpack.c.l.b16 %v2165
    %v2270 = vunpack.c.h.b16 %v2165
    %v2271 = vunpack.c.l.b16 %v2166
    %v2272 = vunpack.c.h.b16 %v2166
    %v2273 = vpack.c.b16 %v2213, %v2209
    %v2274 = vpack.c.b16 %v2214, %v2210
    %v2275 = vpack.c.b16 %v2215, %v2211
    %v2276 = vpack.c.b16 %v2216, %v2212
    %v2277 = vpack.c.b16 %v2221, %v2217
    %v2278 = vpack.c.b16 %v2222, %v2218
    %v2279 = vpack.c.b16 %v2223, %v2219
    %v2280 = vpack.c.b16 %v2224, %v2220
    %v2281 = vpack.c.b16 %v2229, %v2225
    %v2282 = vpack.c.b16 %v2230, %v2226
    %v2283 = vpack.c.b16 %v2231, %v2227
    %v2284 = vpack.c.b16 %v2232, %v2228
    %v2285 = vpack.c.b16 %v2237, %v2233
    %v2286 = vpack.c.b16 %v2238, %v2234
    %v2287 = vpack.c.b16 %v2239, %v2235
    %v2288 = vpack.c.b16 %v2240, %v2236
    %v2289 = vpack.c.b16 %v2245, %v2241
    %v2290 = vpack.c.b16 %v2246, %v2242
    %v2291 = vpack.c.b16 %v2247, %v2243
    %v2292 = vpack.c.b16 %v2248, %v2244
    %v2293 = vpack.c.b16 %v2253, %v2249
    %v2294 = vpack.c.b16 %v2254, %v2250
    %v2295 = vpack.c.b16 %v2255, %v2251
    %v2296 = vpack.c.b16 %v2256, %v2252
    %v2297 = vpack.c.b16 %v2261, %v2257
    %v2298 = vpack.c.b16 %v2262, %v2258
    %v2299 = vpack.c.b16 %v2263, %v2259
    %v2300 = vpack.c.b16 %v2264, %v2260
    %v2301 = vpack.c.b16 %v2269, %v2265
    %v2302 = vpack.c.b16 %v2270, %v2266
    %v2303 = vpack.c.b16 %v2271, %v2267
    %v2304 = vpack.c.b16 %v2272, %v2268
    %2337 = vmatpush.bf16.msra.mxu0 %v2301
    %2338 = vmatpush.bf16.msra.mxu0 %v2297
    %2339 = vmatpush.bf16.msra.mxu0 %v2293
    %2340 = vmatpush.bf16.msra.mxu0 %v2289
    %2341 = vmatpush.bf16.msra.mxu0 %v2285
    %2342 = vmatpush.bf16.msra.mxu0 %v2281
    %2343 = vmatpush.bf16.msra.mxu0 %v2277
    %2344 = vmatpush.bf16.msra.mxu0 %v2273
    %2345 = vmatmul.bf16.gmra.mxu0 %v2134
    %v2346 = vpop.f32.mrf.mxu0
    %v2347 = vadd.f32 %v2169, %v2346
    %v2348 = vpop.f32.mrf.mxu0
    %2349 = vdwg.mxu0
    %2350 = vmatpush.bf16.msra.mxu0 %v2302
    %2351 = vmatpush.bf16.msra.mxu0 %v2298
    %2352 = vmatpush.bf16.msra.mxu0 %v2294
    %2353 = vmatpush.bf16.msra.mxu0 %v2290
    %2354 = vmatpush.bf16.msra.mxu0 %v2286
    %2355 = vmatpush.bf16.msra.mxu0 %v2282
    %2356 = vmatpush.bf16.msra.mxu0 %v2278
    %2357 = vmatpush.bf16.msra.mxu0 %v2274
    %2358 = vmatmul.bf16.gmra.mxu0 %v2134
    %v2359 = vpop.f32.mrf.mxu0
    %v2360 = vadd.f32 %v2170, %v2359
    %v2361 = vpop.f32.mrf.mxu0
    %2362 = vdwg.mxu0
    %2363 = vmatpush.bf16.msra.mxu0 %v2303
    %2364 = vmatpush.bf16.msra.mxu0 %v2299
    %2365 = vmatpush.bf16.msra.mxu0 %v2295
    %2366 = vmatpush.bf16.msra.mxu0 %v2291
    %2367 = vmatpush.bf16.msra.mxu0 %v2287
    %2368 = vmatpush.bf16.msra.mxu0 %v2283
    %2369 = vmatpush.bf16.msra.mxu0 %v2279
    %2370 = vmatpush.bf16.msra.mxu0 %v2275
    %2371 = vmatmul.bf16.gmra.mxu0 %v2134
    %v2372 = vpop.f32.mrf.mxu0
    %v2373 = vadd.f32 %v2171, %v2372
    %v2374 = vpop.f32.mrf.mxu0
    %2375 = vdwg.mxu0
    %2376 = vmatpush.bf16.msra.mxu0 %v2304
    %2377 = vmatpush.bf16.msra.mxu0 %v2300
    %2378 = vmatpush.bf16.msra.mxu0 %v2296
    %2379 = vmatpush.bf16.msra.mxu0 %v2292
    %2380 = vmatpush.bf16.msra.mxu0 %v2288
    %2381 = vmatpush.bf16.msra.mxu0 %v2284
    %2382 = vmatpush.bf16.msra.mxu0 %v2280
    %2383 = vmatpush.bf16.msra.mxu0 %v2276
    %2384 = vmatmul.bf16.gmra.mxu0 %v2134
    %v2385 = vpop.f32.mrf.mxu0
    %v2386 = vadd.f32 %v2172, %v2385
    %v2387 = vpop.f32.mrf.mxu0
    %2388 = vdwg.mxu0
    %v2389 = vmax.f32 %v2347, 0.0
    %v2390 = vmax.f32 %v2360, 0.0
    %v2391 = vmax.f32 %v2373, 0.0
    %v2392 = vmax.f32 %v2386, 0.0
    %v2393 = vpack.c.bf16 %v2389, %v2389
    %v2394 = vpack.c.bf16 %v2390, %v2390
    %v2395 = vpack.c.bf16 %v2391, %v2391
    %v2396 = vpack.c.bf16 %v2392, %v2392
    %v2397 = vld [vmem:[%s8] sm:$0xff]
    %v2398 = vld [vmem:[%s8 + $0x8] sm:$0xff]
    %v2399 = vld [vmem:[%s8 + $0x10] sm:$0xff]
    %v2400 = vld [vmem:[%s8 + $0x18] sm:$0xf]
    %v2401 = vld [vmem:[%s8 + $0x1c] sm:$0xff]
    %v2402 = vld [vmem:[%s8 + $0x24] sm:$0xff]
    %v2403 = vld [vmem:[%s8 + $0x2c] sm:$0xff]
    %v2404 = vld [vmem:[%s8 + $0x34] sm:$0xf]
    %v2405 = vld [vmem:[%s8 + $0x38] sm:$0xff]
    %v2406 = vld [vmem:[%s8 + $0x40] sm:$0xff]
    %v2407 = vld [vmem:[%s8 + $0x48] sm:$0xff]
    %v2408 = vld [vmem:[%s8 + $0x50] sm:$0xf]
    %v2409 = vld [vmem:[%s8 + $0x54] sm:$0xff]
    %v2410 = vld [vmem:[%s8 + $0x5c] sm:$0xff]
    %v2411 = vld [vmem:[%s8 + $0x64] sm:$0xff]
    %v2412 = vld [vmem:[%s8 + $0x6c] sm:$0xf]
    %v2413 = vld [vmem:[%s8 + $0x70] sm:$0xff]
    %v2414 = vld [vmem:[%s8 + $0x78] sm:$0xff]
    %v2415 = vld [vmem:[%s8 + $0x80] sm:$0xff]
    %v2416 = vld [vmem:[%s8 + $0x88] sm:$0xf]
    %v2417 = vld [vmem:[%s8 + $0x8c] sm:$0xff]
    %v2418 = vld [vmem:[%s8 + $0x94] sm:$0xff]
    %v2419 = vld [vmem:[%s8 + $0x9c] sm:$0xff]
    %v2420 = vld [vmem:[%s8 + $0xa4] sm:$0xf]
    %v2421 = vld [vmem:[%s8 + $0xa8] sm:$0xff]
    %v2422 = vld [vmem:[%s8 + $0xb0] sm:$0xff]
    %v2423 = vld [vmem:[%s8 + $0xb8] sm:$0xff]
    %v2424 = vld [vmem:[%s8 + $0xc0] sm:$0xf]
    %v2425 = vld [vmem:[%s8 + $0xc4] sm:$0xff]
    %v2426 = vld [vmem:[%s8 + $0xcc] sm:$0xff]
    %v2427 = vld [vmem:[%s8 + $0xd4] sm:$0xff]
    %v2428 = vld [vmem:[%s8 + $0xdc] sm:$0xf]
    %v2429 = vld [vmem:[%s8 + $0xe0] sm:$0xff]
    %v2430 = vld [vmem:[%s8 + $0xe8] sm:$0xff]
    %v2431 = vld [vmem:[%s8 + $0xf0] sm:$0xff]
    %v2432 = vld [vmem:[%s8 + $0xf8] sm:$0xf]
    %v2433 = vld [vmem:[%s8 + $0xfc] sm:$0xff]
    %v2434 = vld [vmem:[%s8 + $0x104] sm:$0xff]
    %v2435 = vld [vmem:[%s8 + $0x10c] sm:$0xff]
    %v2436 = vld [vmem:[%s8 + $0x114] sm:$0xf]
    %v2437 = vld [vmem:[%s8 + $0x118] sm:$0xff]
    %v2438 = vld [vmem:[%s8 + $0x120] sm:$0xff]
    %v2439 = vld [vmem:[%s8 + $0x128] sm:$0xff]
    %v2440 = vld [vmem:[%s8 + $0x130] sm:$0xf]
    %v2441 = vld [vmem:[%s8 + $0x134] sm:$0xff]
    %v2442 = vld [vmem:[%s8 + $0x13c] sm:$0xff]
    %v2443 = vld [vmem:[%s8 + $0x144] sm:$0xff]
    %v2444 = vld [vmem:[%s8 + $0x14c] sm:$0xf]
    %v2445 = vld [vmem:[%s8 + $0x150] sm:$0xff]
    %v2446 = vld [vmem:[%s8 + $0x158] sm:$0xff]
    %v2447 = vld [vmem:[%s8 + $0x160] sm:$0xff]
    %v2448 = vld [vmem:[%s8 + $0x168] sm:$0xf]
    %v2449 = vld [vmem:[%s8 + $0x16c] sm:$0xff]
    %v2450 = vld [vmem:[%s8 + $0x174] sm:$0xff]
    %v2451 = vld [vmem:[%s8 + $0x17c] sm:$0xff]
    %v2452 = vld [vmem:[%s8 + $0x184] sm:$0xf]
    %v2453 = vld [vmem:[%s8 + $0x188] sm:$0xff]
    %v2454 = vld [vmem:[%s8 + $0x190] sm:$0xff]
    %v2455 = vld [vmem:[%s8 + $0x198] sm:$0xff]
    %v2456 = vld [vmem:[%s8 + $0x1a0] sm:$0xf]
    %v2457 = vld [vmem:[%s8 + $0x1a4] sm:$0xff]
    %v2458 = vld [vmem:[%s8 + $0x1ac] sm:$0xff]
    %v2459 = vld [vmem:[%s8 + $0x1b4] sm:$0xff]
    %v2460 = vld [vmem:[%s8 + $0x1bc] sm:$0xf]
    %v2461 = vld [vmem:[%s8 + $0x1c0] sm:$0xff]
    %v2462 = vld [vmem:[%s8 + $0x1c8] sm:$0xff]
    %v2463 = vld [vmem:[%s8 + $0x1d0] sm:$0xff]
    %v2464 = vld [vmem:[%s8 + $0x1d8] sm:$0xf]
    %v2465 = vld [vmem:[%s8 + $0x1dc] sm:$0xff]
    %v2466 = vld [vmem:[%s8 + $0x1e4] sm:$0xff]
    %v2467 = vld [vmem:[%s8 + $0x1ec] sm:$0xff]
    %v2468 = vld [vmem:[%s8 + $0x1f4] sm:$0xf]
    %v2469 = vld [vmem:[%s8 + $0x1f8] sm:$0xff]
    %v2470 = vld [vmem:[%s8 + $0x200] sm:$0xff]
    %v2471 = vld [vmem:[%s8 + $0x208] sm:$0xff]
    %v2472 = vld [vmem:[%s8 + $0x210] sm:$0xf]
    %v2473 = vld [vmem:[%s8 + $0x214] sm:$0xff]
    %v2474 = vld [vmem:[%s8 + $0x21c] sm:$0xff]
    %v2475 = vld [vmem:[%s8 + $0x224] sm:$0xff]
    %v2476 = vld [vmem:[%s8 + $0x22c] sm:$0xf]
    %v2477 = vld [vmem:[%s8 + $0x230] sm:$0xff]
    %v2478 = vld [vmem:[%s8 + $0x238] sm:$0xff]
    %v2479 = vld [vmem:[%s8 + $0x240] sm:$0xff]
    %v2480 = vld [vmem:[%s8 + $0x248] sm:$0xf]
    %v2481 = vld [vmem:[%s8 + $0x24c] sm:$0xff]
    %v2482 = vld [vmem:[%s8 + $0x254] sm:$0xff]
    %v2483 = vld [vmem:[%s8 + $0x25c] sm:$0xff]
    %v2484 = vld [vmem:[%s8 + $0x264] sm:$0xf]
    %v2485 = vld [vmem:[%s8 + $0x268] sm:$0xff]
    %v2486 = vld [vmem:[%s8 + $0x270] sm:$0xff]
    %v2487 = vld [vmem:[%s8 + $0x278] sm:$0xff]
    %v2488 = vld [vmem:[%s8 + $0x280] sm:$0xf]
    %v2489 = vld [vmem:[%s8 + $0x284] sm:$0xff]
    %v2490 = vld [vmem:[%s8 + $0x28c] sm:$0xff]
    %v2491 = vld [vmem:[%s8 + $0x294] sm:$0xff]
    %v2492 = vld [vmem:[%s8 + $0x29c] sm:$0xf]
    %v2493 = vld [vmem:[%s8 + $0x2a0] sm:$0xff]
    %v2494 = vld [vmem:[%s8 + $0x2a8] sm:$0xff]
    %v2495 = vld [vmem:[%s8 + $0x2b0] sm:$0xff]
    %v2496 = vld [vmem:[%s8 + $0x2b8] sm:$0xf]
    %v2497 = vld [vmem:[%s8 + $0x2bc] sm:$0xff]
    %v2498 = vld [vmem:[%s8 + $0x2c4] sm:$0xff]
    %v2499 = vld [vmem:[%s8 + $0x2cc] sm:$0xff]
    %v2500 = vld [vmem:[%s8 + $0x2d4] sm:$0xf]
    %v2501 = vld [vmem:[%s8 + $0x2d8] sm:$0xff]
    %v2502 = vld [vmem:[%s8 + $0x2e0] sm:$0xff]
    %v2503 = vld [vmem:[%s8 + $0x2e8] sm:$0xff]
    %v2504 = vld [vmem:[%s8 + $0x2f0] sm:$0xf]
    %v2505 = vld [vmem:[%s8 + $0x2f4] sm:$0xff]
    %v2506 = vld [vmem:[%s8 + $0x2fc] sm:$0xff]
    %v2507 = vld [vmem:[%s8 + $0x304] sm:$0xff]
    %v2508 = vld [vmem:[%s8 + $0x30c] sm:$0xf]
    %v2509 = vld [vmem:[%s8 + $0x310] sm:$0xff]
    %v2510 = vld [vmem:[%s8 + $0x318] sm:$0xff]
    %v2511 = vld [vmem:[%s8 + $0x320] sm:$0xff]
    %v2512 = vld [vmem:[%s8 + $0x328] sm:$0xf]
    %v2513 = vld [vmem:[%s8 + $0x32c] sm:$0xff]
    %v2514 = vld [vmem:[%s8 + $0x334] sm:$0xff]
    %v2515 = vld [vmem:[%s8 + $0x33c] sm:$0xff]
    %v2516 = vld [vmem:[%s8 + $0x344] sm:$0xf]
    %v2517 = vld [vmem:[%s8 + $0x348] sm:$0xff]
    %v2518 = vld [vmem:[%s8 + $0x350] sm:$0xff]
    %v2519 = vld [vmem:[%s8 + $0x358] sm:$0xff]
    %v2520 = vld [vmem:[%s8 + $0x360] sm:$0xf]
    %v2521 = vld [vmem:[%s8 + $0x364] sm:$0xff]
    %v2522 = vld [vmem:[%s8 + $0x36c] sm:$0xff]
    %v2523 = vld [vmem:[%s8 + $0x374] sm:$0xff]
    %v2524 = vld [vmem:[%s8 + $0x37c] sm:$0xf]
    %v2525 = vld [vmem:[%s8 + $0x380] sm:$0xff]
    %v2526 = vld [vmem:[%s8 + $0x388] sm:$0xff]
    %v2527 = vld [vmem:[%s8 + $0x390] sm:$0xff]
    %v2528 = vld [vmem:[%s8 + $0x398] sm:$0xf]
    %v2529 = vld [vmem:[%s8 + $0x39c] sm:$0xff]
    %v2530 = vld [vmem:[%s8 + $0x3a4] sm:$0xff]
    %v2531 = vld [vmem:[%s8 + $0x3ac] sm:$0xff]
    %v2532 = vld [vmem:[%s8 + $0x3b4] sm:$0xf]
    %v2533 = vld [vmem:[%s8 + $0x3b8] sm:$0xff]
    %v2534 = vld [vmem:[%s8 + $0x3c0] sm:$0xff]
    %v2535 = vld [vmem:[%s8 + $0x3c8] sm:$0xff]
    %v2536 = vld [vmem:[%s8 + $0x3d0] sm:$0xf]
    %v2537 = vld [vmem:[%s8 + $0x3d4] sm:$0xff]
    %v2538 = vld [vmem:[%s8 + $0x3dc] sm:$0xff]
    %v2539 = vld [vmem:[%s8 + $0x3e4] sm:$0xff]
    %v2540 = vld [vmem:[%s8 + $0x3ec] sm:$0xf]
    %v2541 = vld [vmem:[%s8 + $0x3f0] sm:$0xff]
    %v2542 = vld [vmem:[%s8 + $0x3f8] sm:$0xff]
    %v2543 = vld [vmem:[%s8 + $0x400] sm:$0xff]
    %v2544 = vld [vmem:[%s8 + $0x408] sm:$0xf]
    %v2545 = vld [vmem:[%s8 + $0x40c] sm:$0xff]
    %v2546 = vld [vmem:[%s8 + $0x414] sm:$0xff]
    %v2547 = vld [vmem:[%s8 + $0x41c] sm:$0xff]
    %v2548 = vld [vmem:[%s8 + $0x424] sm:$0xf]
    %v2549 = vld [vmem:[%s8 + $0x428] sm:$0xff]
    %v2550 = vld [vmem:[%s8 + $0x430] sm:$0xff]
    %v2551 = vld [vmem:[%s8 + $0x438] sm:$0xff]
    %v2552 = vld [vmem:[%s8 + $0x440] sm:$0xf]
    %v2553 = vld [vmem:[%s8 + $0x444] sm:$0xff]
    %v2554 = vld [vmem:[%s8 + $0x44c] sm:$0xff]
    %v2555 = vld [vmem:[%s8 + $0x454] sm:$0xff]
    %v2556 = vld [vmem:[%s8 + $0x45c] sm:$0xf]
    %v2557 = vld [vmem:[%s8 + $0x460] sm:$0xff]
    %v2558 = vld [vmem:[%s8 + $0x468] sm:$0xff]
    %v2559 = vld [vmem:[%s8 + $0x470] sm:$0xff]
    %v2560 = vld [vmem:[%s8 + $0x478] sm:$0xf]
    %v2561 = vld [vmem:[%s8 + $0x47c] sm:$0xff]
    %v2562 = vld [vmem:[%s8 + $0x484] sm:$0xff]
    %v2563 = vld [vmem:[%s8 + $0x48c] sm:$0xff]
    %v2564 = vld [vmem:[%s8 + $0x494] sm:$0xf]
    %v2565 = vld [vmem:[%s8 + $0x498] sm:$0xff]
    %v2566 = vld [vmem:[%s8 + $0x4a0] sm:$0xff]
    %v2567 = vld [vmem:[%s8 + $0x4a8] sm:$0xff]
    %v2568 = vld [vmem:[%s8 + $0x4b0] sm:$0xf]
    %v2569 = vld [vmem:[%s8 + $0x4b4] sm:$0xff]
    %v2570 = vld [vmem:[%s8 + $0x4bc] sm:$0xff]
    %v2571 = vld [vmem:[%s8 + $0x4c4] sm:$0xff]
    %v2572 = vld [vmem:[%s8 + $0x4cc] sm:$0xf]
    %v2573 = vld [vmem:[%s8 + $0x4d0] sm:$0xff]
    %v2574 = vld [vmem:[%s8 + $0x4d8] sm:$0xff]
    %v2575 = vld [vmem:[%s8 + $0x4e0] sm:$0xff]
    %v2576 = vld [vmem:[%s8 + $0x4e8] sm:$0xf]
    %v2577 = vld [vmem:[%s8 + $0x4ec] sm:$0xff]
    %v2578 = vld [vmem:[%s8 + $0x4f4] sm:$0xff]
    %v2579 = vld [vmem:[%s8 + $0x4fc] sm:$0xff]
    %v2580 = vld [vmem:[%s8 + $0x504] sm:$0xf]
    %v2581 = vld [vmem:[%s8 + $0x508] sm:$0xff]
    %v2582 = vld [vmem:[%s8 + $0x510] sm:$0xff]
    %v2583 = vld [vmem:[%s8 + $0x518] sm:$0xff]
    %v2584 = vld [vmem:[%s8 + $0x520] sm:$0xf]
    %v2585 = vld [vmem:[%s8 + $0x524] sm:$0xff]
    %v2586 = vld [vmem:[%s8 + $0x52c] sm:$0xff]
    %v2587 = vld [vmem:[%s8 + $0x534] sm:$0xff]
    %v2588 = vld [vmem:[%s8 + $0x53c] sm:$0xf]
    %v2589 = vld [vmem:[%s8 + $0x540] sm:$0xff]
    %v2590 = vld [vmem:[%s8 + $0x548] sm:$0xff]
    %v2591 = vld [vmem:[%s8 + $0x550] sm:$0xff]
    %v2592 = vld [vmem:[%s8 + $0x558] sm:$0xf]
    %v2593 = vld [vmem:[%s8 + $0x55c] sm:$0xff]
    %v2594 = vld [vmem:[%s8 + $0x564] sm:$0xff]
    %v2595 = vld [vmem:[%s8 + $0x56c] sm:$0xff]
    %v2596 = vld [vmem:[%s8 + $0x574] sm:$0xf]
    %v2597 = vld [vmem:[%s8 + $0x578] sm:$0xff]
    %v2598 = vld [vmem:[%s8 + $0x580] sm:$0xff]
    %v2599 = vld [vmem:[%s8 + $0x588] sm:$0xff]
    %v2600 = vld [vmem:[%s8 + $0x590] sm:$0xf]
    %v2601 = vld [vmem:[%s8 + $0x594] sm:$0xff]
    %v2602 = vld [vmem:[%s8 + $0x59c] sm:$0xff]
    %v2603 = vld [vmem:[%s8 + $0x5a4] sm:$0xff]
    %v2604 = vld [vmem:[%s8 + $0x5ac] sm:$0xf]
    %v2605 = vld [vmem:[%s8 + $0x5b0] sm:$0xff]
    %v2606 = vld [vmem:[%s8 + $0x5b8] sm:$0xff]
    %v2607 = vld [vmem:[%s8 + $0x5c0] sm:$0xff]
    %v2608 = vld [vmem:[%s8 + $0x5c8] sm:$0xf]
    %v2609 = vld [vmem:[%s8 + $0x5cc] sm:$0xff]
    %v2610 = vld [vmem:[%s8 + $0x5d4] sm:$0xff]
    %v2611 = vld [vmem:[%s8 + $0x5dc] sm:$0xff]
    %v2612 = vld [vmem:[%s8 + $0x5e4] sm:$0xf]
    %v2613 = vld [vmem:[%s8 + $0x5e8] sm:$0xff]
    %v2614 = vld [vmem:[%s8 + $0x5f0] sm:$0xff]
    %v2615 = vld [vmem:[%s8 + $0x5f8] sm:$0xff]
    %v2616 = vld [vmem:[%s8 + $0x600] sm:$0xf]
    %v2617 = vld [vmem:[%s8 + $0x604] sm:$0xff]
    %v2618 = vld [vmem:[%s8 + $0x60c] sm:$0xff]
    %v2619 = vld [vmem:[%s8 + $0x614] sm:$0xff]
    %v2620 = vld [vmem:[%s8 + $0x61c] sm:$0xf]
    %v2621 = vld [vmem:[%s8 + $0x620] sm:$0xff]
    %v2622 = vld [vmem:[%s8 + $0x628] sm:$0xff]
    %v2623 = vld [vmem:[%s8 + $0x630] sm:$0xff]
    %v2624 = vld [vmem:[%s8 + $0x638] sm:$0xf]
    %v2625 = vld [vmem:[%s8 + $0x63c] sm:$0xff]
    %v2626 = vld [vmem:[%s8 + $0x644] sm:$0xff]
    %v2627 = vld [vmem:[%s8 + $0x64c] sm:$0xff]
    %v2628 = vld [vmem:[%s8 + $0x654] sm:$0xf]
    %v2629 = vld [vmem:[%s8 + $0x658] sm:$0xff]
    %v2630 = vld [vmem:[%s8 + $0x660] sm:$0xff]
    %v2631 = vld [vmem:[%s8 + $0x668] sm:$0xff]
    %v2632 = vld [vmem:[%s8 + $0x670] sm:$0xf]
    %v2633 = vld [vmem:[%s8 + $0x674] sm:$0xff]
    %v2634 = vld [vmem:[%s8 + $0x67c] sm:$0xff]
    %v2635 = vld [vmem:[%s8 + $0x684] sm:$0xff]
    %v2636 = vld [vmem:[%s8 + $0x68c] sm:$0xf]
    %v2637 = vld [vmem:[%s8 + $0x690] sm:$0xff]
    %v2638 = vld [vmem:[%s8 + $0x698] sm:$0xff]
    %v2639 = vld [vmem:[%s8 + $0x6a0] sm:$0xff]
    %v2640 = vld [vmem:[%s8 + $0x6a8] sm:$0xf]
    %v2641 = vld [vmem:[%s8 + $0x6ac] sm:$0xff]
    %v2642 = vld [vmem:[%s8 + $0x6b4] sm:$0xff]
    %v2643 = vld [vmem:[%s8 + $0x6bc] sm:$0xff]
    %v2644 = vld [vmem:[%s8 + $0x6c4] sm:$0xf]
    %v2645 = vld [vmem:[%s8 + $0x6c8] sm:$0xff]
    %v2646 = vld [vmem:[%s8 + $0x6d0] sm:$0xff]
    %v2647 = vld [vmem:[%s8 + $0x6d8] sm:$0xff]
    %v2648 = vld [vmem:[%s8 + $0x6e0] sm:$0xf]
    %v2649 = vld [vmem:[%s8 + $0x6e4] sm:$0xff]
    %v2650 = vld [vmem:[%s8 + $0x6ec] sm:$0xff]
    %v2651 = vld [vmem:[%s8 + $0x6f4] sm:$0xff]
    %v2652 = vld [vmem:[%s8 + $0x6fc] sm:$0xf]
    %v2653 = vld [vmem:[%s9] sm:$0x7f]
    %v2655 = vperm.slane %v2653, 0
    %v2656 = vperm.slane %v2653, 1
    %v2657 = vperm.slane %v2653, 2
    %v2658 = vperm.slane %v2653, 3
    %v2659 = vperm.slane %v2653, 4
    %v2660 = vperm.slane %v2653, 5
    %v2661 = vperm.slane %v2653, 6
    %v2925 = vunpack.c.l.b16 %v2397
    %v2926 = vunpack.c.h.b16 %v2397
    %v2927 = vunpack.c.l.b16 %v2398
    %v2928 = vunpack.c.h.b16 %v2398
    %v2929 = vunpack.c.l.b16 %v2399
    %v2930 = vunpack.c.h.b16 %v2399
    %v2931 = vunpack.c.l.b16 %v2400
    %v2932 = vunpack.c.l.b16 %v2401
    %v2933 = vunpack.c.h.b16 %v2401
    %v2934 = vunpack.c.l.b16 %v2402
    %v2935 = vunpack.c.h.b16 %v2402
    %v2936 = vunpack.c.l.b16 %v2403
    %v2937 = vunpack.c.h.b16 %v2403
    %v2938 = vunpack.c.l.b16 %v2404
    %v2939 = vunpack.c.l.b16 %v2405
    %v2940 = vunpack.c.h.b16 %v2405
    %v2941 = vunpack.c.l.b16 %v2406
    %v2942 = vunpack.c.h.b16 %v2406
    %v2943 = vunpack.c.l.b16 %v2407
    %v2944 = vunpack.c.h.b16 %v2407
    %v2945 = vunpack.c.l.b16 %v2408
    %v2946 = vunpack.c.l.b16 %v2409
    %v2947 = vunpack.c.h.b16 %v2409
    %v2948 = vunpack.c.l.b16 %v2410
    %v2949 = vunpack.c.h.b16 %v2410
    %v2950 = vunpack.c.l.b16 %v2411
    %v2951 = vunpack.c.h.b16 %v2411
    %v2952 = vunpack.c.l.b16 %v2412
    %v2953 = vunpack.c.l.b16 %v2413
    %v2954 = vunpack.c.h.b16 %v2413
    %v2955 = vunpack.c.l.b16 %v2414
    %v2956 = vunpack.c.h.b16 %v2414
    %v2957 = vunpack.c.l.b16 %v2415
    %v2958 = vunpack.c.h.b16 %v2415
    %v2959 = vunpack.c.l.b16 %v2416
    %v2960 = vunpack.c.l.b16 %v2417
    %v2961 = vunpack.c.h.b16 %v2417
    %v2962 = vunpack.c.l.b16 %v2418
    %v2963 = vunpack.c.h.b16 %v2418
    %v2964 = vunpack.c.l.b16 %v2419
    %v2965 = vunpack.c.h.b16 %v2419
    %v2966 = vunpack.c.l.b16 %v2420
    %v2967 = vunpack.c.l.b16 %v2421
    %v2968 = vunpack.c.h.b16 %v2421
    %v2969 = vunpack.c.l.b16 %v2422
    %v2970 = vunpack.c.h.b16 %v2422
    %v2971 = vunpack.c.l.b16 %v2423
    %v2972 = vunpack.c.h.b16 %v2423
    %v2973 = vunpack.c.l.b16 %v2424
    %v2974 = vunpack.c.l.b16 %v2425
    %v2975 = vunpack.c.h.b16 %v2425
    %v2976 = vunpack.c.l.b16 %v2426
    %v2977 = vunpack.c.h.b16 %v2426
    %v2978 = vunpack.c.l.b16 %v2427
    %v2979 = vunpack.c.h.b16 %v2427
    %v2980 = vunpack.c.l.b16 %v2428
    %v2981 = vunpack.c.l.b16 %v2429
    %v2982 = vunpack.c.h.b16 %v2429
    %v2983 = vunpack.c.l.b16 %v2430
    %v2984 = vunpack.c.h.b16 %v2430
    %v2985 = vunpack.c.l.b16 %v2431
    %v2986 = vunpack.c.h.b16 %v2431
    %v2987 = vunpack.c.l.b16 %v2432
    %v2988 = vunpack.c.l.b16 %v2433
    %v2989 = vunpack.c.h.b16 %v2433
    %v2990 = vunpack.c.l.b16 %v2434
    %v2991 = vunpack.c.h.b16 %v2434
    %v2992 = vunpack.c.l.b16 %v2435
    %v2993 = vunpack.c.h.b16 %v2435
    %v2994 = vunpack.c.l.b16 %v2436
    %v2995 = vunpack.c.l.b16 %v2437
    %v2996 = vunpack.c.h.b16 %v2437
    %v2997 = vunpack.c.l.b16 %v2438
    %v2998 = vunpack.c.h.b16 %v2438
    %v2999 = vunpack.c.l.b16 %v2439
    %v3000 = vunpack.c.h.b16 %v2439
    %v3001 = vunpack.c.l.b16 %v2440
    %v3002 = vunpack.c.l.b16 %v2441
    %v3003 = vunpack.c.h.b16 %v2441
    %v3004 = vunpack.c.l.b16 %v2442
    %v3005 = vunpack.c.h.b16 %v2442
    %v3006 = vunpack.c.l.b16 %v2443
    %v3007 = vunpack.c.h.b16 %v2443
    %v3008 = vunpack.c.l.b16 %v2444
    %v3009 = vunpack.c.l.b16 %v2445
    %v3010 = vunpack.c.h.b16 %v2445
    %v3011 = vunpack.c.l.b16 %v2446
    %v3012 = vunpack.c.h.b16 %v2446
    %v3013 = vunpack.c.l.b16 %v2447
    %v3014 = vunpack.c.h.b16 %v2447
    %v3015 = vunpack.c.l.b16 %v2448
    %v3016 = vunpack.c.l.b16 %v2449
    %v3017 = vunpack.c.h.b16 %v2449
    %v3018 = vunpack.c.l.b16 %v2450
    %v3019 = vunpack.c.h.b16 %v2450
    %v3020 = vunpack.c.l.b16 %v2451
    %v3021 = vunpack.c.h.b16 %v2451
    %v3022 = vunpack.c.l.b16 %v2452
    %v3023 = vunpack.c.l.b16 %v2453
    %v3024 = vunpack.c.h.b16 %v2453
    %v3025 = vunpack.c.l.b16 %v2454
    %v3026 = vunpack.c.h.b16 %v2454
    %v3027 = vunpack.c.l.b16 %v2455
    %v3028 = vunpack.c.h.b16 %v2455
    %v3029 = vunpack.c.l.b16 %v2456
    %v3030 = vunpack.c.l.b16 %v2457
    %v3031 = vunpack.c.h.b16 %v2457
    %v3032 = vunpack.c.l.b16 %v2458
    %v3033 = vunpack.c.h.b16 %v2458
    %v3034 = vunpack.c.l.b16 %v2459
    %v3035 = vunpack.c.h.b16 %v2459
    %v3036 = vunpack.c.l.b16 %v2460
    %v3037 = vunpack.c.l.b16 %v2461
    %v3038 = vunpack.c.h.b16 %v2461
    %v3039 = vunpack.c.l.b16 %v2462
    %v3040 = vunpack.c.h.b16 %v2462
    %v3041 = vunpack.c.l.b16 %v2463
    %v3042 = vunpack.c.h.b16 %v2463
    %v3043 = vunpack.c.l.b16 %v2464
    %v3044 = vunpack.c.l.b16 %v2465
    %v3045 = vunpack.c.h.b16 %v2465
    %v3046 = vunpack.c.l.b16 %v2466
    %v3047 = vunpack.c.h.b16 %v2466
    %v3048 = vunpack.c.l.b16 %v2467
    %v3049 = vunpack.c.h.b16 %v2467
    %v3050 = vunpack.c.l.b16 %v2468
    %v3051 = vunpack.c.l.b16 %v2469
    %v3052 = vunpack.c.h.b16 %v2469
    %v3053 = vunpack.c.l.b16 %v2470
    %v3054 = vunpack.c.h.b16 %v2470
    %v3055 = vunpack.c.l.b16 %v2471
    %v3056 = vunpack.c.h.b16 %v2471
    %v3057 = vunpack.c.l.b16 %v2472
    %v3058 = vunpack.c.l.b16 %v2473
    %v3059 = vunpack.c.h.b16 %v2473
    %v3060 = vunpack.c.l.b16 %v2474
    %v3061 = vunpack.c.h.b16 %v2474
    %v3062 = vunpack.c.l.b16 %v2475
    %v3063 = vunpack.c.h.b16 %v2475
    %v3064 = vunpack.c.l.b16 %v2476
    %v3065 = vunpack.c.l.b16 %v2477
    %v3066 = vunpack.c.h.b16 %v2477
    %v3067 = vunpack.c.l.b16 %v2478
    %v3068 = vunpack.c.h.b16 %v2478
    %v3069 = vunpack.c.l.b16 %v2479
    %v3070 = vunpack.c.h.b16 %v2479
    %v3071 = vunpack.c.l.b16 %v2480
    %v3072 = vunpack.c.l.b16 %v2481
    %v3073 = vunpack.c.h.b16 %v2481
    %v3074 = vunpack.c.l.b16 %v2482
    %v3075 = vunpack.c.h.b16 %v2482
    %v3076 = vunpack.c.l.b16 %v2483
    %v3077 = vunpack.c.h.b16 %v2483
    %v3078 = vunpack.c.l.b16 %v2484
    %v3079 = vunpack.c.l.b16 %v2485
    %v3080 = vunpack.c.h.b16 %v2485
    %v3081 = vunpack.c.l.b16 %v2486
    %v3082 = vunpack.c.h.b16 %v2486
    %v3083 = vunpack.c.l.b16 %v2487
    %v3084 = vunpack.c.h.b16 %v2487
    %v3085 = vunpack.c.l.b16 %v2488
    %v3086 = vunpack.c.l.b16 %v2489
    %v3087 = vunpack.c.h.b16 %v2489
    %v3088 = vunpack.c.l.b16 %v2490
    %v3089 = vunpack.c.h.b16 %v2490
    %v3090 = vunpack.c.l.b16 %v2491
    %v3091 = vunpack.c.h.b16 %v2491
    %v3092 = vunpack.c.l.b16 %v2492
    %v3093 = vunpack.c.l.b16 %v2493
    %v3094 = vunpack.c.h.b16 %v2493
    %v3095 = vunpack.c.l.b16 %v2494
    %v3096 = vunpack.c.h.b16 %v2494
    %v3097 = vunpack.c.l.b16 %v2495
    %v3098 = vunpack.c.h.b16 %v2495
    %v3099 = vunpack.c.l.b16 %v2496
    %v3100 = vunpack.c.l.b16 %v2497
    %v3101 = vunpack.c.h.b16 %v2497
    %v3102 = vunpack.c.l.b16 %v2498
    %v3103 = vunpack.c.h.b16 %v2498
    %v3104 = vunpack.c.l.b16 %v2499
    %v3105 = vunpack.c.h.b16 %v2499
    %v3106 = vunpack.c.l.b16 %v2500
    %v3107 = vunpack.c.l.b16 %v2501
    %v3108 = vunpack.c.h.b16 %v2501
    %v3109 = vunpack.c.l.b16 %v2502
    %v3110 = vunpack.c.h.b16 %v2502
    %v3111 = vunpack.c.l.b16 %v2503
    %v3112 = vunpack.c.h.b16 %v2503
    %v3113 = vunpack.c.l.b16 %v2504
    %v3114 = vunpack.c.l.b16 %v2505
    %v3115 = vunpack.c.h.b16 %v2505
    %v3116 = vunpack.c.l.b16 %v2506
    %v3117 = vunpack.c.h.b16 %v2506
    %v3118 = vunpack.c.l.b16 %v2507
    %v3119 = vunpack.c.h.b16 %v2507
    %v3120 = vunpack.c.l.b16 %v2508
    %v3121 = vunpack.c.l.b16 %v2509
    %v3122 = vunpack.c.h.b16 %v2509
    %v3123 = vunpack.c.l.b16 %v2510
    %v3124 = vunpack.c.h.b16 %v2510
    %v3125 = vunpack.c.l.b16 %v2511
    %v3126 = vunpack.c.h.b16 %v2511
    %v3127 = vunpack.c.l.b16 %v2512
    %v3128 = vunpack.c.l.b16 %v2513
    %v3129 = vunpack.c.h.b16 %v2513
    %v3130 = vunpack.c.l.b16 %v2514
    %v3131 = vunpack.c.h.b16 %v2514
    %v3132 = vunpack.c.l.b16 %v2515
    %v3133 = vunpack.c.h.b16 %v2515
    %v3134 = vunpack.c.l.b16 %v2516
    %v3135 = vunpack.c.l.b16 %v2517
    %v3136 = vunpack.c.h.b16 %v2517
    %v3137 = vunpack.c.l.b16 %v2518
    %v3138 = vunpack.c.h.b16 %v2518
    %v3139 = vunpack.c.l.b16 %v2519
    %v3140 = vunpack.c.h.b16 %v2519
    %v3141 = vunpack.c.l.b16 %v2520
    %v3142 = vunpack.c.l.b16 %v2521
    %v3143 = vunpack.c.h.b16 %v2521
    %v3144 = vunpack.c.l.b16 %v2522
    %v3145 = vunpack.c.h.b16 %v2522
    %v3146 = vunpack.c.l.b16 %v2523
    %v3147 = vunpack.c.h.b16 %v2523
    %v3148 = vunpack.c.l.b16 %v2524
    %v3149 = vunpack.c.l.b16 %v2525
    %v3150 = vunpack.c.h.b16 %v2525
    %v3151 = vunpack.c.l.b16 %v2526
    %v3152 = vunpack.c.h.b16 %v2526
    %v3153 = vunpack.c.l.b16 %v2527
    %v3154 = vunpack.c.h.b16 %v2527
    %v3155 = vunpack.c.l.b16 %v2528
    %v3156 = vunpack.c.l.b16 %v2529
    %v3157 = vunpack.c.h.b16 %v2529
    %v3158 = vunpack.c.l.b16 %v2530
    %v3159 = vunpack.c.h.b16 %v2530
    %v3160 = vunpack.c.l.b16 %v2531
    %v3161 = vunpack.c.h.b16 %v2531
    %v3162 = vunpack.c.l.b16 %v2532
    %v3163 = vunpack.c.l.b16 %v2533
    %v3164 = vunpack.c.h.b16 %v2533
    %v3165 = vunpack.c.l.b16 %v2534
    %v3166 = vunpack.c.h.b16 %v2534
    %v3167 = vunpack.c.l.b16 %v2535
    %v3168 = vunpack.c.h.b16 %v2535
    %v3169 = vunpack.c.l.b16 %v2536
    %v3170 = vunpack.c.l.b16 %v2537
    %v3171 = vunpack.c.h.b16 %v2537
    %v3172 = vunpack.c.l.b16 %v2538
    %v3173 = vunpack.c.h.b16 %v2538
    %v3174 = vunpack.c.l.b16 %v2539
    %v3175 = vunpack.c.h.b16 %v2539
    %v3176 = vunpack.c.l.b16 %v2540
    %v3177 = vunpack.c.l.b16 %v2541
    %v3178 = vunpack.c.h.b16 %v2541
    %v3179 = vunpack.c.l.b16 %v2542
    %v3180 = vunpack.c.h.b16 %v2542
    %v3181 = vunpack.c.l.b16 %v2543
    %v3182 = vunpack.c.h.b16 %v2543
    %v3183 = vunpack.c.l.b16 %v2544
    %v3184 = vunpack.c.l.b16 %v2545
    %v3185 = vunpack.c.h.b16 %v2545
    %v3186 = vunpack.c.l.b16 %v2546
    %v3187 = vunpack.c.h.b16 %v2546
    %v3188 = vunpack.c.l.b16 %v2547
    %v3189 = vunpack.c.h.b16 %v2547
    %v3190 = vunpack.c.l.b16 %v2548
    %v3191 = vunpack.c.l.b16 %v2549
    %v3192 = vunpack.c.h.b16 %v2549
    %v3193 = vunpack.c.l.b16 %v2550
    %v3194 = vunpack.c.h.b16 %v2550
    %v3195 = vunpack.c.l.b16 %v2551
    %v3196 = vunpack.c.h.b16 %v2551
    %v3197 = vunpack.c.l.b16 %v2552
    %v3198 = vunpack.c.l.b16 %v2553
    %v3199 = vunpack.c.h.b16 %v2553
    %v3200 = vunpack.c.l.b16 %v2554
    %v3201 = vunpack.c.h.b16 %v2554
    %v3202 = vunpack.c.l.b16 %v2555
    %v3203 = vunpack.c.h.b16 %v2555
    %v3204 = vunpack.c.l.b16 %v2556
    %v3205 = vunpack.c.l.b16 %v2557
    %v3206 = vunpack.c.h.b16 %v2557
    %v3207 = vunpack.c.l.b16 %v2558
    %v3208 = vunpack.c.h.b16 %v2558
    %v3209 = vunpack.c.l.b16 %v2559
    %v3210 = vunpack.c.h.b16 %v2559
    %v3211 = vunpack.c.l.b16 %v2560
    %v3212 = vunpack.c.l.b16 %v2561
    %v3213 = vunpack.c.h.b16 %v2561
    %v3214 = vunpack.c.l.b16 %v2562
    %v3215 = vunpack.c.h.b16 %v2562
    %v3216 = vunpack.c.l.b16 %v2563
    %v3217 = vunpack.c.h.b16 %v2563
    %v3218 = vunpack.c.l.b16 %v2564
    %v3219 = vunpack.c.l.b16 %v2565
    %v3220 = vunpack.c.h.b16 %v2565
    %v3221 = vunpack.c.l.b16 %v2566
    %v3222 = vunpack.c.h.b16 %v2566
    %v3223 = vunpack.c.l.b16 %v2567
    %v3224 = vunpack.c.h.b16 %v2567
    %v3225 = vunpack.c.l.b16 %v2568
    %v3226 = vunpack.c.l.b16 %v2569
    %v3227 = vunpack.c.h.b16 %v2569
    %v3228 = vunpack.c.l.b16 %v2570
    %v3229 = vunpack.c.h.b16 %v2570
    %v3230 = vunpack.c.l.b16 %v2571
    %v3231 = vunpack.c.h.b16 %v2571
    %v3232 = vunpack.c.l.b16 %v2572
    %v3233 = vunpack.c.l.b16 %v2573
    %v3234 = vunpack.c.h.b16 %v2573
    %v3235 = vunpack.c.l.b16 %v2574
    %v3236 = vunpack.c.h.b16 %v2574
    %v3237 = vunpack.c.l.b16 %v2575
    %v3238 = vunpack.c.h.b16 %v2575
    %v3239 = vunpack.c.l.b16 %v2576
    %v3240 = vunpack.c.l.b16 %v2577
    %v3241 = vunpack.c.h.b16 %v2577
    %v3242 = vunpack.c.l.b16 %v2578
    %v3243 = vunpack.c.h.b16 %v2578
    %v3244 = vunpack.c.l.b16 %v2579
    %v3245 = vunpack.c.h.b16 %v2579
    %v3246 = vunpack.c.l.b16 %v2580
    %v3247 = vunpack.c.l.b16 %v2581
    %v3248 = vunpack.c.h.b16 %v2581
    %v3249 = vunpack.c.l.b16 %v2582
    %v3250 = vunpack.c.h.b16 %v2582
    %v3251 = vunpack.c.l.b16 %v2583
    %v3252 = vunpack.c.h.b16 %v2583
    %v3253 = vunpack.c.l.b16 %v2584
    %v3254 = vunpack.c.l.b16 %v2585
    %v3255 = vunpack.c.h.b16 %v2585
    %v3256 = vunpack.c.l.b16 %v2586
    %v3257 = vunpack.c.h.b16 %v2586
    %v3258 = vunpack.c.l.b16 %v2587
    %v3259 = vunpack.c.h.b16 %v2587
    %v3260 = vunpack.c.l.b16 %v2588
    %v3261 = vunpack.c.l.b16 %v2589
    %v3262 = vunpack.c.h.b16 %v2589
    %v3263 = vunpack.c.l.b16 %v2590
    %v3264 = vunpack.c.h.b16 %v2590
    %v3265 = vunpack.c.l.b16 %v2591
    %v3266 = vunpack.c.h.b16 %v2591
    %v3267 = vunpack.c.l.b16 %v2592
    %v3268 = vunpack.c.l.b16 %v2593
    %v3269 = vunpack.c.h.b16 %v2593
    %v3270 = vunpack.c.l.b16 %v2594
    %v3271 = vunpack.c.h.b16 %v2594
    %v3272 = vunpack.c.l.b16 %v2595
    %v3273 = vunpack.c.h.b16 %v2595
    %v3274 = vunpack.c.l.b16 %v2596
    %v3275 = vunpack.c.l.b16 %v2597
    %v3276 = vunpack.c.h.b16 %v2597
    %v3277 = vunpack.c.l.b16 %v2598
    %v3278 = vunpack.c.h.b16 %v2598
    %v3279 = vunpack.c.l.b16 %v2599
    %v3280 = vunpack.c.h.b16 %v2599
    %v3281 = vunpack.c.l.b16 %v2600
    %v3282 = vunpack.c.l.b16 %v2601
    %v3283 = vunpack.c.h.b16 %v2601
    %v3284 = vunpack.c.l.b16 %v2602
    %v3285 = vunpack.c.h.b16 %v2602
    %v3286 = vunpack.c.l.b16 %v2603
    %v3287 = vunpack.c.h.b16 %v2603
    %v3288 = vunpack.c.l.b16 %v2604
    %v3289 = vunpack.c.l.b16 %v2605
    %v3290 = vunpack.c.h.b16 %v2605
    %v3291 = vunpack.c.l.b16 %v2606
    %v3292 = vunpack.c.h.b16 %v2606
    %v3293 = vunpack.c.l.b16 %v2607
    %v3294 = vunpack.c.h.b16 %v2607
    %v3295 = vunpack.c.l.b16 %v2608
    %v3296 = vunpack.c.l.b16 %v2609
    %v3297 = vunpack.c.h.b16 %v2609
    %v3298 = vunpack.c.l.b16 %v2610
    %v3299 = vunpack.c.h.b16 %v2610
    %v3300 = vunpack.c.l.b16 %v2611
    %v3301 = vunpack.c.h.b16 %v2611
    %v3302 = vunpack.c.l.b16 %v2612
    %v3303 = vunpack.c.l.b16 %v2613
    %v3304 = vunpack.c.h.b16 %v2613
    %v3305 = vunpack.c.l.b16 %v2614
    %v3306 = vunpack.c.h.b16 %v2614
    %v3307 = vunpack.c.l.b16 %v2615
    %v3308 = vunpack.c.h.b16 %v2615
    %v3309 = vunpack.c.l.b16 %v2616
    %v3310 = vunpack.c.l.b16 %v2617
    %v3311 = vunpack.c.h.b16 %v2617
    %v3312 = vunpack.c.l.b16 %v2618
    %v3313 = vunpack.c.h.b16 %v2618
    %v3314 = vunpack.c.l.b16 %v2619
    %v3315 = vunpack.c.h.b16 %v2619
    %v3316 = vunpack.c.l.b16 %v2620
    %v3317 = vunpack.c.l.b16 %v2621
    %v3318 = vunpack.c.h.b16 %v2621
    %v3319 = vunpack.c.l.b16 %v2622
    %v3320 = vunpack.c.h.b16 %v2622
    %v3321 = vunpack.c.l.b16 %v2623
    %v3322 = vunpack.c.h.b16 %v2623
    %v3323 = vunpack.c.l.b16 %v2624
    %v3324 = vunpack.c.l.b16 %v2625
    %v3325 = vunpack.c.h.b16 %v2625
    %v3326 = vunpack.c.l.b16 %v2626
    %v3327 = vunpack.c.h.b16 %v2626
    %v3328 = vunpack.c.l.b16 %v2627
    %v3329 = vunpack.c.h.b16 %v2627
    %v3330 = vunpack.c.l.b16 %v2628
    %v3331 = vunpack.c.l.b16 %v2629
    %v3332 = vunpack.c.h.b16 %v2629
    %v3333 = vunpack.c.l.b16 %v2630
    %v3334 = vunpack.c.h.b16 %v2630
    %v3335 = vunpack.c.l.b16 %v2631
    %v3336 = vunpack.c.h.b16 %v2631
    %v3337 = vunpack.c.l.b16 %v2632
    %v3338 = vunpack.c.l.b16 %v2633
    %v3339 = vunpack.c.h.b16 %v2633
    %v3340 = vunpack.c.l.b16 %v2634
    %v3341 = vunpack.c.h.b16 %v2634
    %v3342 = vunpack.c.l.b16 %v2635
    %v3343 = vunpack.c.h.b16 %v2635
    %v3344 = vunpack.c.l.b16 %v2636
    %v3345 = vunpack.c.l.b16 %v2637
    %v3346 = vunpack.c.h.b16 %v2637
    %v3347 = vunpack.c.l.b16 %v2638
    %v3348 = vunpack.c.h.b16 %v2638
    %v3349 = vunpack.c.l.b16 %v2639
    %v3350 = vunpack.c.h.b16 %v2639
    %v3351 = vunpack.c.l.b16 %v2640
    %v3352 = vunpack.c.l.b16 %v2641
    %v3353 = vunpack.c.h.b16 %v2641
    %v3354 = vunpack.c.l.b16 %v2642
    %v3355 = vunpack.c.h.b16 %v2642
    %v3356 = vunpack.c.l.b16 %v2643
    %v3357 = vunpack.c.h.b16 %v2643
    %v3358 = vunpack.c.l.b16 %v2644
    %v3359 = vunpack.c.l.b16 %v2645
    %v3360 = vunpack.c.h.b16 %v2645
    %v3361 = vunpack.c.l.b16 %v2646
    %v3362 = vunpack.c.h.b16 %v2646
    %v3363 = vunpack.c.l.b16 %v2647
    %v3364 = vunpack.c.h.b16 %v2647
    %v3365 = vunpack.c.l.b16 %v2648
    %v3366 = vunpack.c.l.b16 %v2649
    %v3367 = vunpack.c.h.b16 %v2649
    %v3368 = vunpack.c.l.b16 %v2650
    %v3369 = vunpack.c.h.b16 %v2650
    %v3370 = vunpack.c.l.b16 %v2651
    %v3371 = vunpack.c.h.b16 %v2651
    %v3372 = vunpack.c.l.b16 %v2652
    %v3373 = vpack.c.b16 %v2932, %v2925
    %v3374 = vpack.c.b16 %v2933, %v2926
    %v3375 = vpack.c.b16 %v2934, %v2927
    %v3376 = vpack.c.b16 %v2935, %v2928
    %v3377 = vpack.c.b16 %v2936, %v2929
    %v3378 = vpack.c.b16 %v2937, %v2930
    %v3379 = vpack.c.b16 %v2938, %v2931
    %v3380 = vpack.c.b16 %v2946, %v2939
    %v3381 = vpack.c.b16 %v2947, %v2940
    %v3382 = vpack.c.b16 %v2948, %v2941
    %v3383 = vpack.c.b16 %v2949, %v2942
    %v3384 = vpack.c.b16 %v2950, %v2943
    %v3385 = vpack.c.b16 %v2951, %v2944
    %v3386 = vpack.c.b16 %v2952, %v2945
    %v3387 = vpack.c.b16 %v2960, %v2953
    %v3388 = vpack.c.b16 %v2961, %v2954
    %v3389 = vpack.c.b16 %v2962, %v2955
    %v3390 = vpack.c.b16 %v2963, %v2956
    %v3391 = vpack.c.b16 %v2964, %v2957
    %v3392 = vpack.c.b16 %v2965, %v2958
    %v3393 = vpack.c.b16 %v2966, %v2959
    %v3394 = vpack.c.b16 %v2974, %v2967
    %v3395 = vpack.c.b16 %v2975, %v2968
    %v3396 = vpack.c.b16 %v2976, %v2969
    %v3397 = vpack.c.b16 %v2977, %v2970
    %v3398 = vpack.c.b16 %v2978, %v2971
    %v3399 = vpack.c.b16 %v2979, %v2972
    %v3400 = vpack.c.b16 %v2980, %v2973
    %v3401 = vpack.c.b16 %v2988, %v2981
    %v3402 = vpack.c.b16 %v2989, %v2982
    %v3403 = vpack.c.b16 %v2990, %v2983
    %v3404 = vpack.c.b16 %v2991, %v2984
    %v3405 = vpack.c.b16 %v2992, %v2985
    %v3406 = vpack.c.b16 %v2993, %v2986
    %v3407 = vpack.c.b16 %v2994, %v2987
    %v3408 = vpack.c.b16 %v3002, %v2995
    %v3409 = vpack.c.b16 %v3003, %v2996
    %v3410 = vpack.c.b16 %v3004, %v2997
    %v3411 = vpack.c.b16 %v3005, %v2998
    %v3412 = vpack.c.b16 %v3006, %v2999
    %v3413 = vpack.c.b16 %v3007, %v3000
    %v3414 = vpack.c.b16 %v3008, %v3001
    %v3415 = vpack.c.b16 %v3016, %v3009
    %v3416 = vpack.c.b16 %v3017, %v3010
    %v3417 = vpack.c.b16 %v3018, %v3011
    %v3418 = vpack.c.b16 %v3019, %v3012
    %v3419 = vpack.c.b16 %v3020, %v3013
    %v3420 = vpack.c.b16 %v3021, %v3014
    %v3421 = vpack.c.b16 %v3022, %v3015
    %v3422 = vpack.c.b16 %v3030, %v3023
    %v3423 = vpack.c.b16 %v3031, %v3024
    %v3424 = vpack.c.b16 %v3032, %v3025
    %v3425 = vpack.c.b16 %v3033, %v3026
    %v3426 = vpack.c.b16 %v3034, %v3027
    %v3427 = vpack.c.b16 %v3035, %v3028
    %v3428 = vpack.c.b16 %v3036, %v3029
    %v3429 = vpack.c.b16 %v3044, %v3037
    %v3430 = vpack.c.b16 %v3045, %v3038
    %v3431 = vpack.c.b16 %v3046, %v3039
    %v3432 = vpack.c.b16 %v3047, %v3040
    %v3433 = vpack.c.b16 %v3048, %v3041
    %v3434 = vpack.c.b16 %v3049, %v3042
    %v3435 = vpack.c.b16 %v3050, %v3043
    %v3436 = vpack.c.b16 %v3058, %v3051
    %v3437 = vpack.c.b16 %v3059, %v3052
    %v3438 = vpack.c.b16 %v3060, %v3053
    %v3439 = vpack.c.b16 %v3061, %v3054
    %v3440 = vpack.c.b16 %v3062, %v3055
    %v3441 = vpack.c.b16 %v3063, %v3056
    %v3442 = vpack.c.b16 %v3064, %v3057
    %v3443 = vpack.c.b16 %v3072, %v3065
    %v3444 = vpack.c.b16 %v3073, %v3066
    %v3445 = vpack.c.b16 %v3074, %v3067
    %v3446 = vpack.c.b16 %v3075, %v3068
    %v3447 = vpack.c.b16 %v3076, %v3069
    %v3448 = vpack.c.b16 %v3077, %v3070
    %v3449 = vpack.c.b16 %v3078, %v3071
    %v3450 = vpack.c.b16 %v3086, %v3079
    %v3451 = vpack.c.b16 %v3087, %v3080
    %v3452 = vpack.c.b16 %v3088, %v3081
    %v3453 = vpack.c.b16 %v3089, %v3082
    %v3454 = vpack.c.b16 %v3090, %v3083
    %v3455 = vpack.c.b16 %v3091, %v3084
    %v3456 = vpack.c.b16 %v3092, %v3085
    %v3457 = vpack.c.b16 %v3100, %v3093
    %v3458 = vpack.c.b16 %v3101, %v3094
    %v3459 = vpack.c.b16 %v3102, %v3095
    %v3460 = vpack.c.b16 %v3103, %v3096
    %v3461 = vpack.c.b16 %v3104, %v3097
    %v3462 = vpack.c.b16 %v3105, %v3098
    %v3463 = vpack.c.b16 %v3106, %v3099
    %v3464 = vpack.c.b16 %v3114, %v3107
    %v3465 = vpack.c.b16 %v3115, %v3108
    %v3466 = vpack.c.b16 %v3116, %v3109
    %v3467 = vpack.c.b16 %v3117, %v3110
    %v3468 = vpack.c.b16 %v3118, %v3111
    %v3469 = vpack.c.b16 %v3119, %v3112
    %v3470 = vpack.c.b16 %v3120, %v3113
    %v3471 = vpack.c.b16 %v3128, %v3121
    %v3472 = vpack.c.b16 %v3129, %v3122
    %v3473 = vpack.c.b16 %v3130, %v3123
    %v3474 = vpack.c.b16 %v3131, %v3124
    %v3475 = vpack.c.b16 %v3132, %v3125
    %v3476 = vpack.c.b16 %v3133, %v3126
    %v3477 = vpack.c.b16 %v3134, %v3127
    %v3478 = vpack.c.b16 %v3142, %v3135
    %v3479 = vpack.c.b16 %v3143, %v3136
    %v3480 = vpack.c.b16 %v3144, %v3137
    %v3481 = vpack.c.b16 %v3145, %v3138
    %v3482 = vpack.c.b16 %v3146, %v3139
    %v3483 = vpack.c.b16 %v3147, %v3140
    %v3484 = vpack.c.b16 %v3148, %v3141
    %v3485 = vpack.c.b16 %v3156, %v3149
    %v3486 = vpack.c.b16 %v3157, %v3150
    %v3487 = vpack.c.b16 %v3158, %v3151
    %v3488 = vpack.c.b16 %v3159, %v3152
    %v3489 = vpack.c.b16 %v3160, %v3153
    %v3490 = vpack.c.b16 %v3161, %v3154
    %v3491 = vpack.c.b16 %v3162, %v3155
    %v3492 = vpack.c.b16 %v3170, %v3163
    %v3493 = vpack.c.b16 %v3171, %v3164
    %v3494 = vpack.c.b16 %v3172, %v3165
    %v3495 = vpack.c.b16 %v3173, %v3166
    %v3496 = vpack.c.b16 %v3174, %v3167
    %v3497 = vpack.c.b16 %v3175, %v3168
    %v3498 = vpack.c.b16 %v3176, %v3169
    %v3499 = vpack.c.b16 %v3184, %v3177
    %v3500 = vpack.c.b16 %v3185, %v3178
    %v3501 = vpack.c.b16 %v3186, %v3179
    %v3502 = vpack.c.b16 %v3187, %v3180
    %v3503 = vpack.c.b16 %v3188, %v3181
    %v3504 = vpack.c.b16 %v3189, %v3182
    %v3505 = vpack.c.b16 %v3190, %v3183
    %v3506 = vpack.c.b16 %v3198, %v3191
    %v3507 = vpack.c.b16 %v3199, %v3192
    %v3508 = vpack.c.b16 %v3200, %v3193
    %v3509 = vpack.c.b16 %v3201, %v3194
    %v3510 = vpack.c.b16 %v3202, %v3195
    %v3511 = vpack.c.b16 %v3203, %v3196
    %v3512 = vpack.c.b16 %v3204, %v3197
    %v3513 = vpack.c.b16 %v3212, %v3205
    %v3514 = vpack.c.b16 %v3213, %v3206
    %v3515 = vpack.c.b16 %v3214, %v3207
    %v3516 = vpack.c.b16 %v3215, %v3208
    %v3517 = vpack.c.b16 %v3216, %v3209
    %v3518 = vpack.c.b16 %v3217, %v3210
    %v3519 = vpack.c.b16 %v3218, %v3211
    %v3520 = vpack.c.b16 %v3226, %v3219
    %v3521 = vpack.c.b16 %v3227, %v3220
    %v3522 = vpack.c.b16 %v3228, %v3221
    %v3523 = vpack.c.b16 %v3229, %v3222
    %v3524 = vpack.c.b16 %v3230, %v3223
    %v3525 = vpack.c.b16 %v3231, %v3224
    %v3526 = vpack.c.b16 %v3232, %v3225
    %v3527 = vpack.c.b16 %v3240, %v3233
    %v3528 = vpack.c.b16 %v3241, %v3234
    %v3529 = vpack.c.b16 %v3242, %v3235
    %v3530 = vpack.c.b16 %v3243, %v3236
    %v3531 = vpack.c.b16 %v3244, %v3237
    %v3532 = vpack.c.b16 %v3245, %v3238
    %v3533 = vpack.c.b16 %v3246, %v3239
    %v3534 = vpack.c.b16 %v3254, %v3247
    %v3535 = vpack.c.b16 %v3255, %v3248
    %v3536 = vpack.c.b16 %v3256, %v3249
    %v3537 = vpack.c.b16 %v3257, %v3250
    %v3538 = vpack.c.b16 %v3258, %v3251
    %v3539 = vpack.c.b16 %v3259, %v3252
    %v3540 = vpack.c.b16 %v3260, %v3253
    %v3541 = vpack.c.b16 %v3268, %v3261
    %v3542 = vpack.c.b16 %v3269, %v3262
    %v3543 = vpack.c.b16 %v3270, %v3263
    %v3544 = vpack.c.b16 %v3271, %v3264
    %v3545 = vpack.c.b16 %v3272, %v3265
    %v3546 = vpack.c.b16 %v3273, %v3266
    %v3547 = vpack.c.b16 %v3274, %v3267
    %v3548 = vpack.c.b16 %v3282, %v3275
    %v3549 = vpack.c.b16 %v3283, %v3276
    %v3550 = vpack.c.b16 %v3284, %v3277
    %v3551 = vpack.c.b16 %v3285, %v3278
    %v3552 = vpack.c.b16 %v3286, %v3279
    %v3553 = vpack.c.b16 %v3287, %v3280
    %v3554 = vpack.c.b16 %v3288, %v3281
    %v3555 = vpack.c.b16 %v3296, %v3289
    %v3556 = vpack.c.b16 %v3297, %v3290
    %v3557 = vpack.c.b16 %v3298, %v3291
    %v3558 = vpack.c.b16 %v3299, %v3292
    %v3559 = vpack.c.b16 %v3300, %v3293
    %v3560 = vpack.c.b16 %v3301, %v3294
    %v3561 = vpack.c.b16 %v3302, %v3295
    %v3562 = vpack.c.b16 %v3310, %v3303
    %v3563 = vpack.c.b16 %v3311, %v3304
    %v3564 = vpack.c.b16 %v3312, %v3305
    %v3565 = vpack.c.b16 %v3313, %v3306
    %v3566 = vpack.c.b16 %v3314, %v3307
    %v3567 = vpack.c.b16 %v3315, %v3308
    %v3568 = vpack.c.b16 %v3316, %v3309
    %v3569 = vpack.c.b16 %v3324, %v3317
    %v3570 = vpack.c.b16 %v3325, %v3318
    %v3571 = vpack.c.b16 %v3326, %v3319
    %v3572 = vpack.c.b16 %v3327, %v3320
    %v3573 = vpack.c.b16 %v3328, %v3321
    %v3574 = vpack.c.b16 %v3329, %v3322
    %v3575 = vpack.c.b16 %v3330, %v3323
    %v3576 = vpack.c.b16 %v3338, %v3331
    %v3577 = vpack.c.b16 %v3339, %v3332
    %v3578 = vpack.c.b16 %v3340, %v3333
    %v3579 = vpack.c.b16 %v3341, %v3334
    %v3580 = vpack.c.b16 %v3342, %v3335
    %v3581 = vpack.c.b16 %v3343, %v3336
    %v3582 = vpack.c.b16 %v3344, %v3337
    %v3583 = vpack.c.b16 %v3352, %v3345
    %v3584 = vpack.c.b16 %v3353, %v3346
    %v3585 = vpack.c.b16 %v3354, %v3347
    %v3586 = vpack.c.b16 %v3355, %v3348
    %v3587 = vpack.c.b16 %v3356, %v3349
    %v3588 = vpack.c.b16 %v3357, %v3350
    %v3589 = vpack.c.b16 %v3358, %v3351
    %v3590 = vpack.c.b16 %v3366, %v3359
    %v3591 = vpack.c.b16 %v3367, %v3360
    %v3592 = vpack.c.b16 %v3368, %v3361
    %v3593 = vpack.c.b16 %v3369, %v3362
    %v3594 = vpack.c.b16 %v3370, %v3363
    %v3595 = vpack.c.b16 %v3371, %v3364
    %v3596 = vpack.c.b16 %v3372, %v3365
    %3821 = vmatpush.bf16.msra.mxu0 %v3422
    %3822 = vmatpush.bf16.msra.mxu0 %v3415
    %3823 = vmatpush.bf16.msra.mxu0 %v3408
    %3824 = vmatpush.bf16.msra.mxu0 %v3401
    %3825 = vmatpush.bf16.msra.mxu0 %v3394
    %3826 = vmatpush.bf16.msra.mxu0 %v3387
    %3827 = vmatpush.bf16.msra.mxu0 %v3380
    %3828 = vmatpush.bf16.msra.mxu0 %v3373
    %3829 = vmatmul.bf16.gmra.mxu0 %v2393
    %v3830 = vpop.f32.mrf.mxu0
    %v3831 = vadd.f32 %v2655, %v3830
    %v3832 = vpop.f32.mrf.mxu0
    %3833 = vdwg.mxu0
    %3834 = vmatpush.bf16.msra.mxu0 %v3478
    %3835 = vmatpush.bf16.msra.mxu0 %v3471
    %3836 = vmatpush.bf16.msra.mxu0 %v3464
    %3837 = vmatpush.bf16.msra.mxu0 %v3457
    %3838 = vmatpush.bf16.msra.mxu0 %v3450
    %3839 = vmatpush.bf16.msra.mxu0 %v3443
    %3840 = vmatpush.bf16.msra.mxu0 %v3436
    %3841 = vmatpush.bf16.msra.mxu0 %v3429
    %3842 = vmatmul.bf16.gmra.mxu0 %v2394
    %v3843 = vpop.f32.mrf.mxu0
    %v3844 = vadd.f32 %v3831, %v3843
    %v3845 = vpop.f32.mrf.mxu0
    %3846 = vdwg.mxu0
    %3847 = vmatpush.bf16.msra.mxu0 %v3534
    %3848 = vmatpush.bf16.msra.mxu0 %v3527
    %3849 = vmatpush.bf16.msra.mxu0 %v3520
    %3850 = vmatpush.bf16.msra.mxu0 %v3513
    %3851 = vmatpush.bf16.msra.mxu0 %v3506
    %3852 = vmatpush.bf16.msra.mxu0 %v3499
    %3853 = vmatpush.bf16.msra.mxu0 %v3492
    %3854 = vmatpush.bf16.msra.mxu0 %v3485
    %3855 = vmatmul.bf16.gmra.mxu0 %v2395
    %v3856 = vpop.f32.mrf.mxu0
    %v3857 = vadd.f32 %v3844, %v3856
    %v3858 = vpop.f32.mrf.mxu0
    %3859 = vdwg.mxu0
    %3860 = vmatpush.bf16.msra.mxu0 %v3590
    %3861 = vmatpush.bf16.msra.mxu0 %v3583
    %3862 = vmatpush.bf16.msra.mxu0 %v3576
    %3863 = vmatpush.bf16.msra.mxu0 %v3569
    %3864 = vmatpush.bf16.msra.mxu0 %v3562
    %3865 = vmatpush.bf16.msra.mxu0 %v3555
    %3866 = vmatpush.bf16.msra.mxu0 %v3548
    %3867 = vmatpush.bf16.msra.mxu0 %v3541
    %3868 = vmatmul.bf16.gmra.mxu0 %v2396
    %v3869 = vpop.f32.mrf.mxu0
    %v3870 = vadd.f32 %v3857, %v3869
    %v3871 = vpop.f32.mrf.mxu0
    %3872 = vdwg.mxu0
    %3873 = vmatpush.bf16.msra.mxu0 %v3423
    %3874 = vmatpush.bf16.msra.mxu0 %v3416
    %3875 = vmatpush.bf16.msra.mxu0 %v3409
    %3876 = vmatpush.bf16.msra.mxu0 %v3402
    %3877 = vmatpush.bf16.msra.mxu0 %v3395
    %3878 = vmatpush.bf16.msra.mxu0 %v3388
    %3879 = vmatpush.bf16.msra.mxu0 %v3381
    %3880 = vmatpush.bf16.msra.mxu0 %v3374
    %3881 = vmatmul.bf16.gmra.mxu0 %v2393
    %v3882 = vpop.f32.mrf.mxu0
    %v3883 = vadd.f32 %v2656, %v3882
    %v3884 = vpop.f32.mrf.mxu0
    %3885 = vdwg.mxu0
    %3886 = vmatpush.bf16.msra.mxu0 %v3479
    %3887 = vmatpush.bf16.msra.mxu0 %v3472
    %3888 = vmatpush.bf16.msra.mxu0 %v3465
    %3889 = vmatpush.bf16.msra.mxu0 %v3458
    %3890 = vmatpush.bf16.msra.mxu0 %v3451
    %3891 = vmatpush.bf16.msra.mxu0 %v3444
    %3892 = vmatpush.bf16.msra.mxu0 %v3437
    %3893 = vmatpush.bf16.msra.mxu0 %v3430
    %3894 = vmatmul.bf16.gmra.mxu0 %v2394
    %v3895 = vpop.f32.mrf.mxu0
    %v3896 = vadd.f32 %v3883, %v3895
    %v3897 = vpop.f32.mrf.mxu0
    %3898 = vdwg.mxu0
    %3899 = vmatpush.bf16.msra.mxu0 %v3535
    %3900 = vmatpush.bf16.msra.mxu0 %v3528
    %3901 = vmatpush.bf16.msra.mxu0 %v3521
    %3902 = vmatpush.bf16.msra.mxu0 %v3514
    %3903 = vmatpush.bf16.msra.mxu0 %v3507
    %3904 = vmatpush.bf16.msra.mxu0 %v3500
    %3905 = vmatpush.bf16.msra.mxu0 %v3493
    %3906 = vmatpush.bf16.msra.mxu0 %v3486
    %3907 = vmatmul.bf16.gmra.mxu0 %v2395
    %v3908 = vpop.f32.mrf.mxu0
    %v3909 = vadd.f32 %v3896, %v3908
    %v3910 = vpop.f32.mrf.mxu0
    %3911 = vdwg.mxu0
    %3912 = vmatpush.bf16.msra.mxu0 %v3591
    %3913 = vmatpush.bf16.msra.mxu0 %v3584
    %3914 = vmatpush.bf16.msra.mxu0 %v3577
    %3915 = vmatpush.bf16.msra.mxu0 %v3570
    %3916 = vmatpush.bf16.msra.mxu0 %v3563
    %3917 = vmatpush.bf16.msra.mxu0 %v3556
    %3918 = vmatpush.bf16.msra.mxu0 %v3549
    %3919 = vmatpush.bf16.msra.mxu0 %v3542
    %3920 = vmatmul.bf16.gmra.mxu0 %v2396
    %v3921 = vpop.f32.mrf.mxu0
    %v3922 = vadd.f32 %v3909, %v3921
    %v3923 = vpop.f32.mrf.mxu0
    %3924 = vdwg.mxu0
    %3925 = vmatpush.bf16.msra.mxu0 %v3424
    %3926 = vmatpush.bf16.msra.mxu0 %v3417
    %3927 = vmatpush.bf16.msra.mxu0 %v3410
    %3928 = vmatpush.bf16.msra.mxu0 %v3403
    %3929 = vmatpush.bf16.msra.mxu0 %v3396
    %3930 = vmatpush.bf16.msra.mxu0 %v3389
    %3931 = vmatpush.bf16.msra.mxu0 %v3382
    %3932 = vmatpush.bf16.msra.mxu0 %v3375
    %3933 = vmatmul.bf16.gmra.mxu0 %v2393
    %v3934 = vpop.f32.mrf.mxu0
    %v3935 = vadd.f32 %v2657, %v3934
    %v3936 = vpop.f32.mrf.mxu0
    %3937 = vdwg.mxu0
    %3938 = vmatpush.bf16.msra.mxu0 %v3480
    %3939 = vmatpush.bf16.msra.mxu0 %v3473
    %3940 = vmatpush.bf16.msra.mxu0 %v3466
    %3941 = vmatpush.bf16.msra.mxu0 %v3459
    %3942 = vmatpush.bf16.msra.mxu0 %v3452
    %3943 = vmatpush.bf16.msra.mxu0 %v3445
    %3944 = vmatpush.bf16.msra.mxu0 %v3438
    %3945 = vmatpush.bf16.msra.mxu0 %v3431
    %3946 = vmatmul.bf16.gmra.mxu0 %v2394
    %v3947 = vpop.f32.mrf.mxu0
    %v3948 = vadd.f32 %v3935, %v3947
    %v3949 = vpop.f32.mrf.mxu0
    %3950 = vdwg.mxu0
    %3951 = vmatpush.bf16.msra.mxu0 %v3536
    %3952 = vmatpush.bf16.msra.mxu0 %v3529
    %3953 = vmatpush.bf16.msra.mxu0 %v3522
    %3954 = vmatpush.bf16.msra.mxu0 %v3515
    %3955 = vmatpush.bf16.msra.mxu0 %v3508
    %3956 = vmatpush.bf16.msra.mxu0 %v3501
    %3957 = vmatpush.bf16.msra.mxu0 %v3494
    %3958 = vmatpush.bf16.msra.mxu0 %v3487
    %3959 = vmatmul.bf16.gmra.mxu0 %v2395
    %v3960 = vpop.f32.mrf.mxu0
    %v3961 = vadd.f32 %v3948, %v3960
    %v3962 = vpop.f32.mrf.mxu0
    %3963 = vdwg.mxu0
    %3964 = vmatpush.bf16.msra.mxu0 %v3592
    %3965 = vmatpush.bf16.msra.mxu0 %v3585
    %3966 = vmatpush.bf16.msra.mxu0 %v3578
    %3967 = vmatpush.bf16.msra.mxu0 %v3571
    %3968 = vmatpush.bf16.msra.mxu0 %v3564
    %3969 = vmatpush.bf16.msra.mxu0 %v3557
    %3970 = vmatpush.bf16.msra.mxu0 %v3550
    %3971 = vmatpush.bf16.msra.mxu0 %v3543
    %3972 = vmatmul.bf16.gmra.mxu0 %v2396
    %v3973 = vpop.f32.mrf.mxu0
    %v3974 = vadd.f32 %v3961, %v3973
    %v3975 = vpop.f32.mrf.mxu0
    %3976 = vdwg.mxu0
    %3977 = vmatpush.bf16.msra.mxu0 %v3425
    %3978 = vmatpush.bf16.msra.mxu0 %v3418
    %3979 = vmatpush.bf16.msra.mxu0 %v3411
    %3980 = vmatpush.bf16.msra.mxu0 %v3404
    %3981 = vmatpush.bf16.msra.mxu0 %v3397
    %3982 = vmatpush.bf16.msra.mxu0 %v3390
    %3983 = vmatpush.bf16.msra.mxu0 %v3383
    %3984 = vmatpush.bf16.msra.mxu0 %v3376
    %3985 = vmatmul.bf16.gmra.mxu0 %v2393
    %v3986 = vpop.f32.mrf.mxu0
    %v3987 = vadd.f32 %v2658, %v3986
    %v3988 = vpop.f32.mrf.mxu0
    %3989 = vdwg.mxu0
    %3990 = vmatpush.bf16.msra.mxu0 %v3481
    %3991 = vmatpush.bf16.msra.mxu0 %v3474
    %3992 = vmatpush.bf16.msra.mxu0 %v3467
    %3993 = vmatpush.bf16.msra.mxu0 %v3460
    %3994 = vmatpush.bf16.msra.mxu0 %v3453
    %3995 = vmatpush.bf16.msra.mxu0 %v3446
    %3996 = vmatpush.bf16.msra.mxu0 %v3439
    %3997 = vmatpush.bf16.msra.mxu0 %v3432
    %3998 = vmatmul.bf16.gmra.mxu0 %v2394
    %v3999 = vpop.f32.mrf.mxu0
    %v4000 = vadd.f32 %v3987, %v3999
    %v4001 = vpop.f32.mrf.mxu0
    %4002 = vdwg.mxu0
    %4003 = vmatpush.bf16.msra.mxu0 %v3537
    %4004 = vmatpush.bf16.msra.mxu0 %v3530
    %4005 = vmatpush.bf16.msra.mxu0 %v3523
    %4006 = vmatpush.bf16.msra.mxu0 %v3516
    %4007 = vmatpush.bf16.msra.mxu0 %v3509
    %4008 = vmatpush.bf16.msra.mxu0 %v3502
    %4009 = vmatpush.bf16.msra.mxu0 %v3495
    %4010 = vmatpush.bf16.msra.mxu0 %v3488
    %4011 = vmatmul.bf16.gmra.mxu0 %v2395
    %v4012 = vpop.f32.mrf.mxu0
    %v4013 = vadd.f32 %v4000, %v4012
    %v4014 = vpop.f32.mrf.mxu0
    %4015 = vdwg.mxu0
    %4016 = vmatpush.bf16.msra.mxu0 %v3593
    %4017 = vmatpush.bf16.msra.mxu0 %v3586
    %4018 = vmatpush.bf16.msra.mxu0 %v3579
    %4019 = vmatpush.bf16.msra.mxu0 %v3572
    %4020 = vmatpush.bf16.msra.mxu0 %v3565
    %4021 = vmatpush.bf16.msra.mxu0 %v3558
    %4022 = vmatpush.bf16.msra.mxu0 %v3551
    %4023 = vmatpush.bf16.msra.mxu0 %v3544
    %4024 = vmatmul.bf16.gmra.mxu0 %v2396
    %v4025 = vpop.f32.mrf.mxu0
    %v4026 = vadd.f32 %v4013, %v4025
    %v4027 = vpop.f32.mrf.mxu0
    %4028 = vdwg.mxu0
    %4029 = vmatpush.bf16.msra.mxu0 %v3426
    %4030 = vmatpush.bf16.msra.mxu0 %v3419
    %4031 = vmatpush.bf16.msra.mxu0 %v3412
    %4032 = vmatpush.bf16.msra.mxu0 %v3405
    %4033 = vmatpush.bf16.msra.mxu0 %v3398
    %4034 = vmatpush.bf16.msra.mxu0 %v3391
    %4035 = vmatpush.bf16.msra.mxu0 %v3384
    %4036 = vmatpush.bf16.msra.mxu0 %v3377
    %4037 = vmatmul.bf16.gmra.mxu0 %v2393
    %v4038 = vpop.f32.mrf.mxu0
    %v4039 = vadd.f32 %v2659, %v4038
    %v4040 = vpop.f32.mrf.mxu0
    %4041 = vdwg.mxu0
    %4042 = vmatpush.bf16.msra.mxu0 %v3482
    %4043 = vmatpush.bf16.msra.mxu0 %v3475
    %4044 = vmatpush.bf16.msra.mxu0 %v3468
    %4045 = vmatpush.bf16.msra.mxu0 %v3461
    %4046 = vmatpush.bf16.msra.mxu0 %v3454
    %4047 = vmatpush.bf16.msra.mxu0 %v3447
    %4048 = vmatpush.bf16.msra.mxu0 %v3440
    %4049 = vmatpush.bf16.msra.mxu0 %v3433
    %4050 = vmatmul.bf16.gmra.mxu0 %v2394
    %v4051 = vpop.f32.mrf.mxu0
    %v4052 = vadd.f32 %v4039, %v4051
    %v4053 = vpop.f32.mrf.mxu0
    %4054 = vdwg.mxu0
    %4055 = vmatpush.bf16.msra.mxu0 %v3538
    %4056 = vmatpush.bf16.msra.mxu0 %v3531
    %4057 = vmatpush.bf16.msra.mxu0 %v3524
    %4058 = vmatpush.bf16.msra.mxu0 %v3517
    %4059 = vmatpush.bf16.msra.mxu0 %v3510
    %4060 = vmatpush.bf16.msra.mxu0 %v3503
    %4061 = vmatpush.bf16.msra.mxu0 %v3496
    %4062 = vmatpush.bf16.msra.mxu0 %v3489
    %4063 = vmatmul.bf16.gmra.mxu0 %v2395
    %v4064 = vpop.f32.mrf.mxu0
    %v4065 = vadd.f32 %v4052, %v4064
    %v4066 = vpop.f32.mrf.mxu0
    %4067 = vdwg.mxu0
    %4068 = vmatpush.bf16.msra.mxu0 %v3594
    %4069 = vmatpush.bf16.msra.mxu0 %v3587
    %4070 = vmatpush.bf16.msra.mxu0 %v3580
    %4071 = vmatpush.bf16.msra.mxu0 %v3573
    %4072 = vmatpush.bf16.msra.mxu0 %v3566
    %4073 = vmatpush.bf16.msra.mxu0 %v3559
    %4074 = vmatpush.bf16.msra.mxu0 %v3552
    %4075 = vmatpush.bf16.msra.mxu0 %v3545
    %4076 = vmatmul.bf16.gmra.mxu0 %v2396
    %v4077 = vpop.f32.mrf.mxu0
    %v4078 = vadd.f32 %v4065, %v4077
    %v4079 = vpop.f32.mrf.mxu0
    %4080 = vdwg.mxu0
    %4081 = vmatpush.bf16.msra.mxu0 %v3427
    %4082 = vmatpush.bf16.msra.mxu0 %v3420
    %4083 = vmatpush.bf16.msra.mxu0 %v3413
    %4084 = vmatpush.bf16.msra.mxu0 %v3406
    %4085 = vmatpush.bf16.msra.mxu0 %v3399
    %4086 = vmatpush.bf16.msra.mxu0 %v3392
    %4087 = vmatpush.bf16.msra.mxu0 %v3385
    %4088 = vmatpush.bf16.msra.mxu0 %v3378
    %4089 = vmatmul.bf16.gmra.mxu0 %v2393
    %v4090 = vpop.f32.mrf.mxu0
    %v4091 = vadd.f32 %v2660, %v4090
    %v4092 = vpop.f32.mrf.mxu0
    %4093 = vdwg.mxu0
    %4094 = vmatpush.bf16.msra.mxu0 %v3483
    %4095 = vmatpush.bf16.msra.mxu0 %v3476
    %4096 = vmatpush.bf16.msra.mxu0 %v3469
    %4097 = vmatpush.bf16.msra.mxu0 %v3462
    %4098 = vmatpush.bf16.msra.mxu0 %v3455
    %4099 = vmatpush.bf16.msra.mxu0 %v3448
    %4100 = vmatpush.bf16.msra.mxu0 %v3441
    %4101 = vmatpush.bf16.msra.mxu0 %v3434
    %4102 = vmatmul.bf16.gmra.mxu0 %v2394
    %v4103 = vpop.f32.mrf.mxu0
    %v4104 = vadd.f32 %v4091, %v4103
    %v4105 = vpop.f32.mrf.mxu0
    %4106 = vdwg.mxu0
    %4107 = vmatpush.bf16.msra.mxu0 %v3539
    %4108 = vmatpush.bf16.msra.mxu0 %v3532
    %4109 = vmatpush.bf16.msra.mxu0 %v3525
    %4110 = vmatpush.bf16.msra.mxu0 %v3518
    %4111 = vmatpush.bf16.msra.mxu0 %v3511
    %4112 = vmatpush.bf16.msra.mxu0 %v3504
    %4113 = vmatpush.bf16.msra.mxu0 %v3497
    %4114 = vmatpush.bf16.msra.mxu0 %v3490
    %4115 = vmatmul.bf16.gmra.mxu0 %v2395
    %v4116 = vpop.f32.mrf.mxu0
    %v4117 = vadd.f32 %v4104, %v4116
    %v4118 = vpop.f32.mrf.mxu0
    %4119 = vdwg.mxu0
    %4120 = vmatpush.bf16.msra.mxu0 %v3595
    %4121 = vmatpush.bf16.msra.mxu0 %v3588
    %4122 = vmatpush.bf16.msra.mxu0 %v3581
    %4123 = vmatpush.bf16.msra.mxu0 %v3574
    %4124 = vmatpush.bf16.msra.mxu0 %v3567
    %4125 = vmatpush.bf16.msra.mxu0 %v3560
    %4126 = vmatpush.bf16.msra.mxu0 %v3553
    %4127 = vmatpush.bf16.msra.mxu0 %v3546
    %4128 = vmatmul.bf16.gmra.mxu0 %v2396
    %v4129 = vpop.f32.mrf.mxu0
    %v4130 = vadd.f32 %v4117, %v4129
    %v4131 = vpop.f32.mrf.mxu0
    %4132 = vdwg.mxu0
    %4133 = vmatpush.bf16.msra.mxu0 %v3428
    %4134 = vmatpush.bf16.msra.mxu0 %v3421
    %4135 = vmatpush.bf16.msra.mxu0 %v3414
    %4136 = vmatpush.bf16.msra.mxu0 %v3407
    %4137 = vmatpush.bf16.msra.mxu0 %v3400
    %4138 = vmatpush.bf16.msra.mxu0 %v3393
    %4139 = vmatpush.bf16.msra.mxu0 %v3386
    %4140 = vmatpush.bf16.msra.mxu0 %v3379
    %4141 = vmatmul.bf16.gmra.mxu0 %v2393
    %v4142 = vpop.f32.mrf.mxu0
    %v4143 = vadd.f32 %v2661, %v4142
    %v4144 = vpop.f32.mrf.mxu0
    %4145 = vdwg.mxu0
    %4146 = vmatpush.bf16.msra.mxu0 %v3484
    %4147 = vmatpush.bf16.msra.mxu0 %v3477
    %4148 = vmatpush.bf16.msra.mxu0 %v3470
    %4149 = vmatpush.bf16.msra.mxu0 %v3463
    %4150 = vmatpush.bf16.msra.mxu0 %v3456
    %4151 = vmatpush.bf16.msra.mxu0 %v3449
    %4152 = vmatpush.bf16.msra.mxu0 %v3442
    %4153 = vmatpush.bf16.msra.mxu0 %v3435
    %4154 = vmatmul.bf16.gmra.mxu0 %v2394
    %v4155 = vpop.f32.mrf.mxu0
    %v4156 = vadd.f32 %v4143, %v4155
    %v4157 = vpop.f32.mrf.mxu0
    %4158 = vdwg.mxu0
    %4159 = vmatpush.bf16.msra.mxu0 %v3540
    %4160 = vmatpush.bf16.msra.mxu0 %v3533
    %4161 = vmatpush.bf16.msra.mxu0 %v3526
    %4162 = vmatpush.bf16.msra.mxu0 %v3519
    %4163 = vmatpush.bf16.msra.mxu0 %v3512
    %4164 = vmatpush.bf16.msra.mxu0 %v3505
    %4165 = vmatpush.bf16.msra.mxu0 %v3498
    %4166 = vmatpush.bf16.msra.mxu0 %v3491
    %4167 = vmatmul.bf16.gmra.mxu0 %v2395
    %v4168 = vpop.f32.mrf.mxu0
    %v4169 = vadd.f32 %v4156, %v4168
    %v4170 = vpop.f32.mrf.mxu0
    %4171 = vdwg.mxu0
    %4172 = vmatpush.bf16.msra.mxu0 %v3596
    %4173 = vmatpush.bf16.msra.mxu0 %v3589
    %4174 = vmatpush.bf16.msra.mxu0 %v3582
    %4175 = vmatpush.bf16.msra.mxu0 %v3575
    %4176 = vmatpush.bf16.msra.mxu0 %v3568
    %4177 = vmatpush.bf16.msra.mxu0 %v3561
    %4178 = vmatpush.bf16.msra.mxu0 %v3554
    %4179 = vmatpush.bf16.msra.mxu0 %v3547
    %4180 = vmatmul.bf16.gmra.mxu0 %v2396
    %v4181 = vpop.f32.mrf.mxu0
    %v4182 = vadd.f32 %v4169, %v4181
    %v4183 = vpop.f32.mrf.mxu0
    %4184 = vdwg.mxu0
    %v4185 = vmul.f32 %v3870, 0.5
    %v4186 = vmul.f32 %v3922, 0.5
    %v4187 = vmul.f32 %v3974, 0.5
    %v4188 = vmul.f32 %v4026, 0.5
    %v4189 = vmul.f32 %v4078, 0.5
    %v4190 = vmul.f32 %v4130, 0.5
    %v4191 = vmul.f32 %v4182, 0.5
    %v4192 = vtanh.pop %v4185
    %v4193 = vtanh.pop %v4186
    %v4194 = vtanh.pop %v4187
    %v4195 = vtanh.pop %v4188
    %v4196 = vtanh.pop %v4189
    %v4197 = vtanh.pop %v4190
    %v4198 = vtanh.pop %v4191
    %v4199 = vmul.f32 %v4192, 0.5
    %v4200 = vmul.f32 %v4193, 0.5
    %v4201 = vmul.f32 %v4194, 0.5
    %v4202 = vmul.f32 %v4195, 0.5
    %v4203 = vmul.f32 %v4196, 0.5
    %v4204 = vmul.f32 %v4197, 0.5
    %v4205 = vmul.f32 %v4198, 0.5
    %v4206 = vadd.f32 %v4199, 0.5
    %v4207 = vadd.f32 %v4200, 0.5
    %v4208 = vadd.f32 %v4201, 0.5
    %v4209 = vadd.f32 %v4202, 0.5
    %v4210 = vadd.f32 %v4203, 0.5
    %v4211 = vadd.f32 %v4204, 0.5
    %v4212 = vadd.f32 %v4205, 0.5
    %v4213 = vpack.c.bf16 %v4207, %v4206
    %v4214 = vpack.c.bf16 %v4209, %v4208
    %v4215 = vpack.c.bf16 %v4211, %v4210
    %v4216 = vpack.c.bf16 %v4212, %v4212
    %4217 = vst [vmem:[#allocation3] sm:$0xff] %v4213
    %4218 = vst [vmem:[#allocation3 + $0x8] sm:$0xff] %v4214
    %4219 = vst [vmem:[#allocation3 + $0x10] sm:$0xff] %v4215
    %vm4220 = vcmask 125952
    %4221 = vst.msk [vmem:[#allocation3 + $0x18] sm:$0xf] %vm4220, %v4216
    %4222 = vst [vmem:[#allocation2] sm:$0xff] %v2070
    %v4223 = vld [vmem:[#allocation2] sm:$0xff]
    %4224 = vst.msk [vmem:[#allocation5] sm:$0xff] %vm1255, %v4223
    %4225 = vst [vmem:[#allocation2] sm:$0xff] %v2122
    %v4226 = vld [vmem:[#allocation2] sm:$0xff]
    %4227 = vst.msk [vmem:[#allocation7] sm:$0xff] %vm1255, %v4226
    // Predicated region
    $region42: #{vae_forward.1} parent=1 // pred_check
      _
    $region43: #{vae_forward.1} parent=1 // pred_check_branch
      %4229 = sbr.rel (0) target = $region45
    $region44: #{vae_forward.1} parent=1 // pred_region
      %4231 = vsyncadd [#allocation4], 0
      %s4233 = sshll.u32 [#allocation3], 4
      %s4234 = int_to_ptr.vmem [resolvable:$true] %s4233
      %s4235 = sshll.u32 %s10, 4
      %s4236 = int_to_ptr.hbm [resolvable:$true] %s4235
      %4238 = dma.vmem_to_hbm [thread:$0]  %s4234, 448, %s4236, [#allocation4]
    $region45: #{vae_forward.1} parent=1 // pred_fallthru
      _
    // Predicated region
    $region46: #{vae_forward.1} parent=1 // pred_check
      _
    $region47: #{vae_forward.1} parent=1 // pred_check_branch
      %4240 = sbr.rel (0) target = $region49
    $region48: #{vae_forward.1} parent=1 // pred_region
      %4242 = vsyncadd [#allocation6], 0
      %s4244 = sshll.u32 [#allocation5], 4
      %s4245 = int_to_ptr.vmem [resolvable:$true] %s4244
      %s4246 = sshll.u32 %s11, 4
      %s4247 = int_to_ptr.hbm [resolvable:$true] %s4246
      %4249 = dma.vmem_to_hbm [thread:$0]  %s4245, 128, %s4247, [#allocation6]
    $region49: #{vae_forward.1} parent=1 // pred_fallthru
      _
    // Predicated region
    $region50: #{vae_forward.1} parent=1 // pred_check
      _
    $region51: #{vae_forward.1} parent=1 // pred_check_branch
      %4251 = sbr.rel (0) target = $region53
    $region52: #{vae_forward.1} parent=1 // pred_region
      %4253 = vsyncadd [#allocation6], 0
      %s4255 = sshll.u32 [#allocation7], 4
      %s4256 = int_to_ptr.vmem [resolvable:$true] %s4255
      %s4257 = sshll.u32 %s12, 4
      %s4258 = int_to_ptr.hbm [resolvable:$true] %s4257
      %4260 = dma.vmem_to_hbm [thread:$0]  %s4256, 128, %s4258, [#allocation6]
    $region53: #{vae_forward.1} parent=1 // pred_fallthru
      _
    // Predicated region
    $region54: #{vae_forward.1} parent=1 // pred_check
      _
    $region55: #{vae_forward.1} parent=1 // pred_check_branch
      %4262 = sbr.rel (0) target = $region57
    $region56: #{vae_forward.1} parent=1 // pred_region
      %4264 = dma.done [#allocation4], 448
    $region57: #{vae_forward.1} parent=1 // pred_fallthru
      _
    // Predicated region
    $region58: #{vae_forward.1} parent=1 // pred_check
      _
    $region59: #{vae_forward.1} parent=1 // pred_check_branch
      %4266 = sbr.rel (0) target = $region61
    $region60: #{vae_forward.1} parent=1 // pred_region
      %4268 = dma.done [#allocation6], 128
    $region61: #{vae_forward.1} parent=1 // pred_fallthru
      _
    // Predicated region
    $region62: #{vae_forward.1} parent=1 // pred_check
      _
    $region63: #{vae_forward.1} parent=1 // pred_check_branch
      %4270 = sbr.rel (0) target = $region65
    $region64: #{vae_forward.1} parent=1 // pred_region
      %4272 = dma.done [#allocation6], 128
    $region65: #{vae_forward.1} parent=1 // pred_fallthru
      _
    %4273 = vsyncpa [#allocation4], 1
    %4274 = vsyncpa [#allocation6], 1

</llo_original>
